<compile_context>
chip_gen: v7x
topology: tpu7x:2x2x1
jax: 0.10.0
libtpu: 0.0.40
codegen_flags: <defaults>
</compile_context>

<pallas_src>
import functools

import jax
import jax.numpy as jnp
from jax.experimental import pallas as pl
from jax.experimental.pallas import tpu as pltpu


# ----------------------------- Pallas kernel --------------------------------


def _fused_block_kernel(x_ref, w1_ref, s1_ref, b1_ref, w2_ref, s2_ref, b2_ref,
                        out_ref, xpad_ref, y1pad_ref, *, H, W, TH, d):
    """Computes one TH-row output strip of the fused residual basic block.

    x_ref:     (1, H, W, Cp)       full (channel-padded) image for this batch elem
    w1_ref:    (3, 3*Cp, Cp)       conv1 weights laid out (kh, kw*Cin, Cout)
    s1_ref:    (1, Cp)             BN1 scale = gamma / sqrt(var + eps)
    b1_ref:    (1, Cp)             BN1 bias  = beta + (conv_b - mean) * scale
    w2_ref/s2_ref/b2_ref:          same for conv2 / BN2
    out_ref:   (1, TH, W, Cp)      output strip
    xpad_ref:  (TH+4d, W+2d, Cp)   VMEM scratch: zero-padded input window
    y1pad_ref: (TH+2d, W+2d, Cp)   VMEM scratch: zero-padded intermediate
    """
    Cp = x_ref.shape[-1]
    h = pl.program_id(1)
    r0 = h * TH                      # first output row of this strip
    R1 = TH + 2 * d                  # intermediate (y1) rows needed by conv2

    # ---- stage 0: zero-padded input window (conv1 'same' padding, in VMEM) ----
    xpad_ref[...] = jnp.zeros_like(xpad_ref)
    for j in range(TH + 4 * d):
        r = r0 - 2 * d + j           # image row feeding window row j
        @pl.when(jnp.logical_and(r >= 0, r < H))
        def _copy(j=j, r=r):
            xpad_ref[j:j + 1, d:W + d, :] = x_ref[0, pl.ds(r, 1), :, :]

    # ---- stage 1: conv1 + BN1 -> zero-padded intermediate kept in VMEM ----
    # kw folded into the contraction: gathered view (rows, W, 3*Cp), built once.
    xg1 = jnp.concatenate(
        [xpad_ref[:, kw * d:kw * d + W, :] for kw in range(3)], axis=-1)
    acc1 = jnp.zeros((R1 * W, Cp), jnp.float32)
    for kh in range(3):
        patch = xg1[kh * d:kh * d + R1].reshape(R1 * W, 3 * Cp)
        acc1 = acc1 + jnp.dot(patch, w1_ref[kh],
                              preferred_element_type=jnp.float32)
    y1 = (acc1 * s1_ref[...] + b1_ref[...]).reshape(R1, W, Cp)
    # y1 rows outside the image must be exact zeros (they are conv2's padding).
    row = jax.lax.broadcasted_iota(jnp.int32, (R1, W, Cp), 0) + (r0 - d)
    y1 = jnp.where(jnp.logical_and(row >= 0, row < H), y1, 0.0)
    y1pad_ref[...] = jnp.zeros_like(y1pad_ref)
    y1pad_ref[:, d:W + d, :] = y1

    # ---- stage 2: conv2 + BN2 + residual add + ReLU (fused epilogue) ----
    xg2 = jnp.concatenate(
        [y1pad_ref[:, kw * d:kw * d + W, :] for kw in range(3)], axis=-1)
    acc2 = jnp.zeros((TH * W, Cp), jnp.float32)
    for kh in range(3):
        patch = xg2[kh * d:kh * d + TH].reshape(TH * W, 3 * Cp)
        acc2 = acc2 + jnp.dot(patch, w2_ref[kh],
                              preferred_element_type=jnp.float32)
    r0a = pl.multiple_of(r0, TH)
    identity = x_ref[0, pl.ds(r0a, TH), :, :].astype(jnp.float32)
    y2 = acc2 * s2_ref[...] + b2_ref[...] + identity.reshape(TH * W, Cp)
    out_ref[...] = jnp.maximum(y2, 0.0).reshape(1, TH, W, Cp).astype(out_ref.dtype)


# ------------------------------ JAX wrapper ----------------------------------


def _round_up(x, m):
    return (x + m - 1) // m * m


def _fold_bn(conv_bias, gamma, beta, mean, var, eps=1e-5):
    scale = gamma / jnp.sqrt(var + eps)
    bias = beta + (conv_bias - mean) * scale
    return scale, bias


def residual_basic_block(x_nchw, params, *, dilation=1):
    """Pallas implementation of ResidualBasicBlock.forward (stride=1, no downsample)."""
    N, Cin, H, W = x_nchw.shape
    Cout = params["w1"].shape[-1]
    # Identity-add path requires matching channels (stride=1, downsample=None).
    assert Cin == Cout, "stride>1 / downsample path not supported"  # TODO(synk)

    d = dilation
    Cp = _round_up(max(Cin, Cout), 128)          # lane-dense channel padding

    # NCHW -> NHWC, channels zero-padded to Cp (padded channels stay exactly 0).
    x = jnp.transpose(x_nchw, (0, 2, 3, 1))
    x = jnp.pad(x, ((0, 0), (0, 0), (0, 0), (0, Cp - Cin)))

    s1, b1 = _fold_bn(params["b1"], params["gamma1"], params["beta1"],
                      params["mean1"], params["var1"])
    s2, b2 = _fold_bn(params["b2"], params["gamma2"], params["beta2"],
                      params["mean2"], params["var2"])

    def padc(v):                                  # (C,) -> (1, Cp), zero-padded
        return jnp.pad(v, (0, Cp - v.shape[0])).reshape(1, Cp)

    def padw(w):                                  # (3,3,Cin,Cout) -> (3, 3*Cp, Cp)
        w = jnp.pad(w, ((0, 0), (0, 0),
                        (0, Cp - w.shape[2]), (0, Cp - w.shape[3])))
        return w.reshape(3, 3 * Cp, Cp)

    s1p, b1p, s2p, b2p = padc(s1), padc(b1), padc(s2), padc(b2)
    w1g, w2g = padw(params["w1"]), padw(params["w2"])

    TH = 8 if H % 8 == 0 else H                   # row-strip height
    NH = H // TH

    kernel = functools.partial(_fused_block_kernel, H=H, W=W, TH=TH, d=d)
    out = pl.pallas_call(
        kernel,
        out_shape=jax.ShapeDtypeStruct((N, H, W, Cp), x.dtype),
        grid=(N, NH),
        in_specs=[
            pl.BlockSpec((1, H, W, Cp), lambda n, h: (n, 0, 0, 0)),
            pl.BlockSpec((3, 3 * Cp, Cp), lambda n, h: (0, 0, 0)),
            pl.BlockSpec((1, Cp), lambda n, h: (0, 0)),
            pl.BlockSpec((1, Cp), lambda n, h: (0, 0)),
            pl.BlockSpec((3, 3 * Cp, Cp), lambda n, h: (0, 0, 0)),
            pl.BlockSpec((1, Cp), lambda n, h: (0, 0)),
            pl.BlockSpec((1, Cp), lambda n, h: (0, 0)),
        ],
        out_specs=pl.BlockSpec((1, TH, W, Cp), lambda n, h: (n, h, 0, 0)),
        scratch_shapes=[
            pltpu.VMEM((TH + 4 * d, W + 2 * d, Cp), jnp.float32),
            pltpu.VMEM((TH + 2 * d, W + 2 * d, Cp), jnp.float32),
        ],
        compiler_params=pltpu.CompilerParams(
            dimension_semantics=("parallel", "parallel"),
            vmem_limit_bytes=32 * 1024 * 1024),
    )(x, w1g, s1p, b1p, w2g, s2p, b2p)

    out = out[..., :Cout]                         # drop padded channels
    return jnp.transpose(out, (0, 3, 1, 2))       # NHWC -> NCHW


# ------------------------- pure-JAX reference check --------------------------


def _reference_block(x_nchw, params, *, dilation=1):
    def conv(x, w_hwio, b):
        y = jax.lax.conv_general_dilated(
            x, w_hwio, window_strides=(1, 1),
            padding=[(dilation, dilation), (dilation, dilation)],
            rhs_dilation=(dilation, dilation),
            dimension_numbers=("NCHW", "HWIO", "NCHW"))
        return y + b.reshape(1, -1, 1, 1)

    def bn(x, gamma, beta, mean, var, eps=1e-5):
        inv = gamma / jnp.sqrt(var + eps)
        return (x - mean.reshape(1, -1, 1, 1)) * inv.reshape(1, -1, 1, 1) \
            + beta.reshape(1, -1, 1, 1)

    identity = x_nchw
    y = conv(x_nchw, params["w1"], params["b1"])
    y = bn(y, params["gamma1"], params["beta1"], params["mean1"], params["var1"])
    y = conv(y, params["w2"], params["b2"])
    y = bn(y, params["gamma2"], params["beta2"], params["mean2"], params["var2"])
    return jnp.maximum(y + identity, 0.0)


# ----------------------------------- main ------------------------------------

if __name__ == "__main__":
    key = jax.random.PRNGKey(0)
    ks = jax.random.split(key, 12)

    N, C_in, C_out, H, W = 2, 4, 4, 16, 16
    dilation = 1

    x = jax.random.normal(ks[0], (N, C_in, H, W), jnp.float32)

    params = {
        # conv weights stored HWIO (kh, kw, Cin, Cout)
        "w1": 0.1 * jax.random.normal(ks[1], (3, 3, C_in, C_out), jnp.float32),
        "b1": 0.05 * jax.random.normal(ks[2], (C_out,), jnp.float32),
        "gamma1": 1.0 + 0.1 * jax.random.normal(ks[3], (C_out,), jnp.float32),
        "beta1": 0.1 * jax.random.normal(ks[4], (C_out,), jnp.float32),
        "mean1": 0.1 * jax.random.normal(ks[5], (C_out,), jnp.float32),
        "var1": jnp.abs(1.0 + 0.1 * jax.random.normal(ks[6], (C_out,), jnp.float32)),
        "w2": 0.1 * jax.random.normal(ks[7], (3, 3, C_out, C_out), jnp.float32),
        "b2": 0.05 * jax.random.normal(ks[8], (C_out,), jnp.float32),
        "gamma2": 1.0 + 0.1 * jax.random.normal(ks[9], (C_out,), jnp.float32),
        "beta2": 0.1 * jax.random.normal(ks[10], (C_out,), jnp.float32),
        "mean2": 0.1 * jax.random.normal(ks[11], (C_out,), jnp.float32),
        "var2": jnp.abs(1.0 + 0.05 * jax.random.normal(ks[0], (C_out,), jnp.float32)),
    }

    out = residual_basic_block(x, params, dilation=dilation)
    out = jax.block_until_ready(out)

    ref = jax.block_until_ready(_reference_block(x, params, dilation=dilation))
    assert out.shape == (N, C_out, H, W)
    assert jnp.allclose(out, ref, atol=1e-2, rtol=1e-2), \
        f"max abs err = {jnp.max(jnp.abs(out - ref))}"

    print("KERNEL_OK")
</pallas_src>

<mosaic_0001>
module attributes {stable_mosaic.version = 11 : i64} {
  func.func @_fused_block_kernel(%arg0: i32, %arg1: i32, %arg2: memref<1x16x16x128xf32, #tpu.memory_space<vmem>>, %arg3: memref<3x384x128xf32, #tpu.memory_space<vmem>>, %arg4: memref<1x128xf32, #tpu.memory_space<vmem>>, %arg5: memref<1x128xf32, #tpu.memory_space<vmem>>, %arg6: memref<3x384x128xf32, #tpu.memory_space<vmem>>, %arg7: memref<1x128xf32, #tpu.memory_space<vmem>>, %arg8: memref<1x128xf32, #tpu.memory_space<vmem>>, %arg9: memref<1x8x16x128xf32, #tpu.memory_space<vmem>>, %arg10: memref<12x18x128xf32, #tpu.memory_space<vmem>>, %arg11: memref<10x18x128xf32, #tpu.memory_space<vmem>>) attributes {dimension_semantics = [#tpu.dimension_semantics<parallel>, #tpu.dimension_semantics<parallel>], iteration_bounds = array<i64: 2, 2>, scalar_prefetch = 0 : i64, scratch_operands = 2 : i64, tpu.core_type = #tpu.core_type<tc>, window_params = [{transform_indices = @transform_0, window_bounds = array<i64: 1, 16, 16, 128>}, {pipeline_mode = #tpu.pipeline_mode<synchronous>, transform_indices = @transform_1, window_bounds = array<i64: 3, 384, 128>}, {pipeline_mode = #tpu.pipeline_mode<synchronous>, transform_indices = @transform_2, window_bounds = array<i64: 1, 128>}, {pipeline_mode = #tpu.pipeline_mode<synchronous>, transform_indices = @transform_3, window_bounds = array<i64: 1, 128>}, {pipeline_mode = #tpu.pipeline_mode<synchronous>, transform_indices = @transform_4, window_bounds = array<i64: 3, 384, 128>}, {pipeline_mode = #tpu.pipeline_mode<synchronous>, transform_indices = @transform_5, window_bounds = array<i64: 1, 128>}, {pipeline_mode = #tpu.pipeline_mode<synchronous>, transform_indices = @transform_6, window_bounds = array<i64: 1, 128>}, {transform_indices = @transform_7, window_bounds = array<i64: 1, 8, 16, 128>}]} {
    %c8_i32 = arith.constant 8 : i32
    %0 = arith.muli %arg1, %c8_i32 : i32
    %cst = arith.constant 0.000000e+00 : f32
    %1 = vector.broadcast %cst : f32 to vector<12x18x128xf32>
    %c0 = arith.constant 0 : index
    %c0_0 = arith.constant 0 : index
    %c0_1 = arith.constant 0 : index
    %2 = vector.load %arg10[%c0, %c0_0, %c0_1] : memref<12x18x128xf32, #tpu.memory_space<vmem>>, vector<12x18x128xf32>
    tpu.vector_store %arg10[%c0, %c0_0, %c0_1], %1 {strides = array<i32>} : memref<12x18x128xf32, #tpu.memory_space<vmem>>, vector<12x18x128xf32>,
    %c2_i32 = arith.constant 2 : i32
    %3 = arith.subi %0, %c2_i32 : i32
    %c0_i32 = arith.constant 0 : i32
    %4 = arith.addi %3, %c0_i32 : i32
    %c0_i32_2 = arith.constant 0 : i32
    %5 = arith.cmpi sge, %4, %c0_i32_2 : i32
    %c16_i32 = arith.constant 16 : i32
    %6 = arith.cmpi slt, %4, %c16_i32 : i32
    %7 = arith.andi %5, %6 : i1
    %8 = arith.extui %7 : i1 to i32
    %c0_i32_3 = arith.constant 0 : i32
    %9 = arith.cmpi ne, %8, %c0_i32_3 : i32
    scf.if %9 {
      %c0_119 = arith.constant 0 : index
      %170 = arith.index_cast %4 : i32 to index
      %c0_120 = arith.constant 0 : index
      %c0_121 = arith.constant 0 : index
      %171 = vector.load %arg2[%c0_119, %170, %c0_120, %c0_121] : memref<1x16x16x128xf32, #tpu.memory_space<vmem>>, vector<1x1x16x128xf32>
      %172 = vector.shape_cast %171 : vector<1x1x16x128xf32> to vector<1x16x128xf32>
      %c0_122 = arith.constant 0 : index
      %c1_123 = arith.constant 1 : index
      %c0_124 = arith.constant 0 : index
      %173 = vector.load %arg10[%c0_122, %c1_123, %c0_124] : memref<12x18x128xf32, #tpu.memory_space<vmem>>, vector<1x16x128xf32>
      tpu.vector_store %arg10[%c0_122, %c1_123, %c0_124], %172 {strides = array<i32>} : memref<12x18x128xf32, #tpu.memory_space<vmem>>, vector<1x16x128xf32>,
    } else {
    }
    %c2_i32_4 = arith.constant 2 : i32
    %10 = arith.subi %0, %c2_i32_4 : i32
    %c1_i32 = arith.constant 1 : i32
    %11 = arith.addi %10, %c1_i32 : i32
    %c0_i32_5 = arith.constant 0 : i32
    %12 = arith.cmpi sge, %11, %c0_i32_5 : i32
    %c16_i32_6 = arith.constant 16 : i32
    %13 = arith.cmpi slt, %11, %c16_i32_6 : i32
    %14 = arith.andi %12, %13 : i1
    %15 = arith.extui %14 : i1 to i32
    %c0_i32_7 = arith.constant 0 : i32
    %16 = arith.cmpi ne, %15, %c0_i32_7 : i32
    scf.if %16 {
      %c0_119 = arith.constant 0 : index
      %170 = arith.index_cast %11 : i32 to index
      %c0_120 = arith.constant 0 : index
      %c0_121 = arith.constant 0 : index
      %171 = vector.load %arg2[%c0_119, %170, %c0_120, %c0_121] : memref<1x16x16x128xf32, #tpu.memory_space<vmem>>, vector<1x1x16x128xf32>
      %172 = vector.shape_cast %171 : vector<1x1x16x128xf32> to vector<1x16x128xf32>
      %c1_122 = arith.constant 1 : index
      %c1_123 = arith.constant 1 : index
      %c0_124 = arith.constant 0 : index
      %173 = vector.load %arg10[%c1_122, %c1_123, %c0_124] : memref<12x18x128xf32, #tpu.memory_space<vmem>>, vector<1x16x128xf32>
      tpu.vector_store %arg10[%c1_122, %c1_123, %c0_124], %172 {strides = array<i32>} : memref<12x18x128xf32, #tpu.memory_space<vmem>>, vector<1x16x128xf32>,
    } else {
    }
    %c2_i32_8 = arith.constant 2 : i32
    %17 = arith.subi %0, %c2_i32_8 : i32
    %c2_i32_9 = arith.constant 2 : i32
    %18 = arith.addi %17, %c2_i32_9 : i32
    %c0_i32_10 = arith.constant 0 : i32
    %19 = arith.cmpi sge, %18, %c0_i32_10 : i32
    %c16_i32_11 = arith.constant 16 : i32
    %20 = arith.cmpi slt, %18, %c16_i32_11 : i32
    %21 = arith.andi %19, %20 : i1
    %22 = arith.extui %21 : i1 to i32
    %c0_i32_12 = arith.constant 0 : i32
    %23 = arith.cmpi ne, %22, %c0_i32_12 : i32
    scf.if %23 {
      %c0_119 = arith.constant 0 : index
      %170 = arith.index_cast %18 : i32 to index
      %c0_120 = arith.constant 0 : index
      %c0_121 = arith.constant 0 : index
      %171 = vector.load %arg2[%c0_119, %170, %c0_120, %c0_121] : memref<1x16x16x128xf32, #tpu.memory_space<vmem>>, vector<1x1x16x128xf32>
      %172 = vector.shape_cast %171 : vector<1x1x16x128xf32> to vector<1x16x128xf32>
      %c2_122 = arith.constant 2 : index
      %c1_123 = arith.constant 1 : index
      %c0_124 = arith.constant 0 : index
      %173 = vector.load %arg10[%c2_122, %c1_123, %c0_124] : memref<12x18x128xf32, #tpu.memory_space<vmem>>, vector<1x16x128xf32>
      tpu.vector_store %arg10[%c2_122, %c1_123, %c0_124], %172 {strides = array<i32>} : memref<12x18x128xf32, #tpu.memory_space<vmem>>, vector<1x16x128xf32>,
    } else {
    }
    %c2_i32_13 = arith.constant 2 : i32
    %24 = arith.subi %0, %c2_i32_13 : i32
    %c3_i32 = arith.constant 3 : i32
    %25 = arith.addi %24, %c3_i32 : i32
    %c0_i32_14 = arith.constant 0 : i32
    %26 = arith.cmpi sge, %25, %c0_i32_14 : i32
    %c16_i32_15 = arith.constant 16 : i32
    %27 = arith.cmpi slt, %25, %c16_i32_15 : i32
    %28 = arith.andi %26, %27 : i1
    %29 = arith.extui %28 : i1 to i32
    %c0_i32_16 = arith.constant 0 : i32
    %30 = arith.cmpi ne, %29, %c0_i32_16 : i32
    scf.if %30 {
      %c0_119 = arith.constant 0 : index
      %170 = arith.index_cast %25 : i32 to index
      %c0_120 = arith.constant 0 : index
      %c0_121 = arith.constant 0 : index
      %171 = vector.load %arg2[%c0_119, %170, %c0_120, %c0_121] : memref<1x16x16x128xf32, #tpu.memory_space<vmem>>, vector<1x1x16x128xf32>
      %172 = vector.shape_cast %171 : vector<1x1x16x128xf32> to vector<1x16x128xf32>
      %c3 = arith.constant 3 : index
      %c1_122 = arith.constant 1 : index
      %c0_123 = arith.constant 0 : index
      %173 = vector.load %arg10[%c3, %c1_122, %c0_123] : memref<12x18x128xf32, #tpu.memory_space<vmem>>, vector<1x16x128xf32>
      tpu.vector_store %arg10[%c3, %c1_122, %c0_123], %172 {strides = array<i32>} : memref<12x18x128xf32, #tpu.memory_space<vmem>>, vector<1x16x128xf32>,
    } else {
    }
    %c2_i32_17 = arith.constant 2 : i32
    %31 = arith.subi %0, %c2_i32_17 : i32
    %c4_i32 = arith.constant 4 : i32
    %32 = arith.addi %31, %c4_i32 : i32
    %c0_i32_18 = arith.constant 0 : i32
    %33 = arith.cmpi sge, %32, %c0_i32_18 : i32
    %c16_i32_19 = arith.constant 16 : i32
    %34 = arith.cmpi slt, %32, %c16_i32_19 : i32
    %35 = arith.andi %33, %34 : i1
    %36 = arith.extui %35 : i1 to i32
    %c0_i32_20 = arith.constant 0 : i32
    %37 = arith.cmpi ne, %36, %c0_i32_20 : i32
    scf.if %37 {
      %c0_119 = arith.constant 0 : index
      %170 = arith.index_cast %32 : i32 to index
      %c0_120 = arith.constant 0 : index
      %c0_121 = arith.constant 0 : index
      %171 = vector.load %arg2[%c0_119, %170, %c0_120, %c0_121] : memref<1x16x16x128xf32, #tpu.memory_space<vmem>>, vector<1x1x16x128xf32>
      %172 = vector.shape_cast %171 : vector<1x1x16x128xf32> to vector<1x16x128xf32>
      %c4 = arith.constant 4 : index
      %c1_122 = arith.constant 1 : index
      %c0_123 = arith.constant 0 : index
      %173 = vector.load %arg10[%c4, %c1_122, %c0_123] : memref<12x18x128xf32, #tpu.memory_space<vmem>>, vector<1x16x128xf32>
      tpu.vector_store %arg10[%c4, %c1_122, %c0_123], %172 {strides = array<i32>} : memref<12x18x128xf32, #tpu.memory_space<vmem>>, vector<1x16x128xf32>,
    } else {
    }
    %c2_i32_21 = arith.constant 2 : i32
    %38 = arith.subi %0, %c2_i32_21 : i32
    %c5_i32 = arith.constant 5 : i32
    %39 = arith.addi %38, %c5_i32 : i32
    %c0_i32_22 = arith.constant 0 : i32
    %40 = arith.cmpi sge, %39, %c0_i32_22 : i32
    %c16_i32_23 = arith.constant 16 : i32
    %41 = arith.cmpi slt, %39, %c16_i32_23 : i32
    %42 = arith.andi %40, %41 : i1
    %43 = arith.extui %42 : i1 to i32
    %c0_i32_24 = arith.constant 0 : i32
    %44 = arith.cmpi ne, %43, %c0_i32_24 : i32
    scf.if %44 {
      %c0_119 = arith.constant 0 : index
      %170 = arith.index_cast %39 : i32 to index
      %c0_120 = arith.constant 0 : index
      %c0_121 = arith.constant 0 : index
      %171 = vector.load %arg2[%c0_119, %170, %c0_120, %c0_121] : memref<1x16x16x128xf32, #tpu.memory_space<vmem>>, vector<1x1x16x128xf32>
      %172 = vector.shape_cast %171 : vector<1x1x16x128xf32> to vector<1x16x128xf32>
      %c5 = arith.constant 5 : index
      %c1_122 = arith.constant 1 : index
      %c0_123 = arith.constant 0 : index
      %173 = vector.load %arg10[%c5, %c1_122, %c0_123] : memref<12x18x128xf32, #tpu.memory_space<vmem>>, vector<1x16x128xf32>
      tpu.vector_store %arg10[%c5, %c1_122, %c0_123], %172 {strides = array<i32>} : memref<12x18x128xf32, #tpu.memory_space<vmem>>, vector<1x16x128xf32>,
    } else {
    }
    %c2_i32_25 = arith.constant 2 : i32
    %45 = arith.subi %0, %c2_i32_25 : i32
    %c6_i32 = arith.constant 6 : i32
    %46 = arith.addi %45, %c6_i32 : i32
    %c0_i32_26 = arith.constant 0 : i32
    %47 = arith.cmpi sge, %46, %c0_i32_26 : i32
    %c16_i32_27 = arith.constant 16 : i32
    %48 = arith.cmpi slt, %46, %c16_i32_27 : i32
    %49 = arith.andi %47, %48 : i1
    %50 = arith.extui %49 : i1 to i32
    %c0_i32_28 = arith.constant 0 : i32
    %51 = arith.cmpi ne, %50, %c0_i32_28 : i32
    scf.if %51 {
      %c0_119 = arith.constant 0 : index
      %170 = arith.index_cast %46 : i32 to index
      %c0_120 = arith.constant 0 : index
      %c0_121 = arith.constant 0 : index
      %171 = vector.load %arg2[%c0_119, %170, %c0_120, %c0_121] : memref<1x16x16x128xf32, #tpu.memory_space<vmem>>, vector<1x1x16x128xf32>
      %172 = vector.shape_cast %171 : vector<1x1x16x128xf32> to vector<1x16x128xf32>
      %c6 = arith.constant 6 : index
      %c1_122 = arith.constant 1 : index
      %c0_123 = arith.constant 0 : index
      %173 = vector.load %arg10[%c6, %c1_122, %c0_123] : memref<12x18x128xf32, #tpu.memory_space<vmem>>, vector<1x16x128xf32>
      tpu.vector_store %arg10[%c6, %c1_122, %c0_123], %172 {strides = array<i32>} : memref<12x18x128xf32, #tpu.memory_space<vmem>>, vector<1x16x128xf32>,
    } else {
    }
    %c2_i32_29 = arith.constant 2 : i32
    %52 = arith.subi %0, %c2_i32_29 : i32
    %c7_i32 = arith.constant 7 : i32
    %53 = arith.addi %52, %c7_i32 : i32
    %c0_i32_30 = arith.constant 0 : i32
    %54 = arith.cmpi sge, %53, %c0_i32_30 : i32
    %c16_i32_31 = arith.constant 16 : i32
    %55 = arith.cmpi slt, %53, %c16_i32_31 : i32
    %56 = arith.andi %54, %55 : i1
    %57 = arith.extui %56 : i1 to i32
    %c0_i32_32 = arith.constant 0 : i32
    %58 = arith.cmpi ne, %57, %c0_i32_32 : i32
    scf.if %58 {
      %c0_119 = arith.constant 0 : index
      %170 = arith.index_cast %53 : i32 to index
      %c0_120 = arith.constant 0 : index
      %c0_121 = arith.constant 0 : index
      %171 = vector.load %arg2[%c0_119, %170, %c0_120, %c0_121] : memref<1x16x16x128xf32, #tpu.memory_space<vmem>>, vector<1x1x16x128xf32>
      %172 = vector.shape_cast %171 : vector<1x1x16x128xf32> to vector<1x16x128xf32>
      %c7 = arith.constant 7 : index
      %c1_122 = arith.constant 1 : index
      %c0_123 = arith.constant 0 : index
      %173 = vector.load %arg10[%c7, %c1_122, %c0_123] : memref<12x18x128xf32, #tpu.memory_space<vmem>>, vector<1x16x128xf32>
      tpu.vector_store %arg10[%c7, %c1_122, %c0_123], %172 {strides = array<i32>} : memref<12x18x128xf32, #tpu.memory_space<vmem>>, vector<1x16x128xf32>,
    } else {
    }
    %c2_i32_33 = arith.constant 2 : i32
    %59 = arith.subi %0, %c2_i32_33 : i32
    %c8_i32_34 = arith.constant 8 : i32
    %60 = arith.addi %59, %c8_i32_34 : i32
    %c0_i32_35 = arith.constant 0 : i32
    %61 = arith.cmpi sge, %60, %c0_i32_35 : i32
    %c16_i32_36 = arith.constant 16 : i32
    %62 = arith.cmpi slt, %60, %c16_i32_36 : i32
    %63 = arith.andi %61, %62 : i1
    %64 = arith.extui %63 : i1 to i32
    %c0_i32_37 = arith.constant 0 : i32
    %65 = arith.cmpi ne, %64, %c0_i32_37 : i32
    scf.if %65 {
      %c0_119 = arith.constant 0 : index
      %170 = arith.index_cast %60 : i32 to index
      %c0_120 = arith.constant 0 : index
      %c0_121 = arith.constant 0 : index
      %171 = vector.load %arg2[%c0_119, %170, %c0_120, %c0_121] : memref<1x16x16x128xf32, #tpu.memory_space<vmem>>, vector<1x1x16x128xf32>
      %172 = vector.shape_cast %171 : vector<1x1x16x128xf32> to vector<1x16x128xf32>
      %c8 = arith.constant 8 : index
      %c1_122 = arith.constant 1 : index
      %c0_123 = arith.constant 0 : index
      %173 = vector.load %arg10[%c8, %c1_122, %c0_123] : memref<12x18x128xf32, #tpu.memory_space<vmem>>, vector<1x16x128xf32>
      tpu.vector_store %arg10[%c8, %c1_122, %c0_123], %172 {strides = array<i32>} : memref<12x18x128xf32, #tpu.memory_space<vmem>>, vector<1x16x128xf32>,
    } else {
    }
    %c2_i32_38 = arith.constant 2 : i32
    %66 = arith.subi %0, %c2_i32_38 : i32
    %c9_i32 = arith.constant 9 : i32
    %67 = arith.addi %66, %c9_i32 : i32
    %c0_i32_39 = arith.constant 0 : i32
    %68 = arith.cmpi sge, %67, %c0_i32_39 : i32
    %c16_i32_40 = arith.constant 16 : i32
    %69 = arith.cmpi slt, %67, %c16_i32_40 : i32
    %70 = arith.andi %68, %69 : i1
    %71 = arith.extui %70 : i1 to i32
    %c0_i32_41 = arith.constant 0 : i32
    %72 = arith.cmpi ne, %71, %c0_i32_41 : i32
    scf.if %72 {
      %c0_119 = arith.constant 0 : index
      %170 = arith.index_cast %67 : i32 to index
      %c0_120 = arith.constant 0 : index
      %c0_121 = arith.constant 0 : index
      %171 = vector.load %arg2[%c0_119, %170, %c0_120, %c0_121] : memref<1x16x16x128xf32, #tpu.memory_space<vmem>>, vector<1x1x16x128xf32>
      %172 = vector.shape_cast %171 : vector<1x1x16x128xf32> to vector<1x16x128xf32>
      %c9 = arith.constant 9 : index
      %c1_122 = arith.constant 1 : index
      %c0_123 = arith.constant 0 : index
      %173 = vector.load %arg10[%c9, %c1_122, %c0_123] : memref<12x18x128xf32, #tpu.memory_space<vmem>>, vector<1x16x128xf32>
      tpu.vector_store %arg10[%c9, %c1_122, %c0_123], %172 {strides = array<i32>} : memref<12x18x128xf32, #tpu.memory_space<vmem>>, vector<1x16x128xf32>,
    } else {
    }
    %c2_i32_42 = arith.constant 2 : i32
    %73 = arith.subi %0, %c2_i32_42 : i32
    %c10_i32 = arith.constant 10 : i32
    %74 = arith.addi %73, %c10_i32 : i32
    %c0_i32_43 = arith.constant 0 : i32
    %75 = arith.cmpi sge, %74, %c0_i32_43 : i32
    %c16_i32_44 = arith.constant 16 : i32
    %76 = arith.cmpi slt, %74, %c16_i32_44 : i32
    %77 = arith.andi %75, %76 : i1
    %78 = arith.extui %77 : i1 to i32
    %c0_i32_45 = arith.constant 0 : i32
    %79 = arith.cmpi ne, %78, %c0_i32_45 : i32
    scf.if %79 {
      %c0_119 = arith.constant 0 : index
      %170 = arith.index_cast %74 : i32 to index
      %c0_120 = arith.constant 0 : index
      %c0_121 = arith.constant 0 : index
      %171 = vector.load %arg2[%c0_119, %170, %c0_120, %c0_121] : memref<1x16x16x128xf32, #tpu.memory_space<vmem>>, vector<1x1x16x128xf32>
      %172 = vector.shape_cast %171 : vector<1x1x16x128xf32> to vector<1x16x128xf32>
      %c10 = arith.constant 10 : index
      %c1_122 = arith.constant 1 : index
      %c0_123 = arith.constant 0 : index
      %173 = vector.load %arg10[%c10, %c1_122, %c0_123] : memref<12x18x128xf32, #tpu.memory_space<vmem>>, vector<1x16x128xf32>
      tpu.vector_store %arg10[%c10, %c1_122, %c0_123], %172 {strides = array<i32>} : memref<12x18x128xf32, #tpu.memory_space<vmem>>, vector<1x16x128xf32>,
    } else {
    }
    %c2_i32_46 = arith.constant 2 : i32
    %80 = arith.subi %0, %c2_i32_46 : i32
    %c11_i32 = arith.constant 11 : i32
    %81 = arith.addi %80, %c11_i32 : i32
    %c0_i32_47 = arith.constant 0 : i32
    %82 = arith.cmpi sge, %81, %c0_i32_47 : i32
    %c16_i32_48 = arith.constant 16 : i32
    %83 = arith.cmpi slt, %81, %c16_i32_48 : i32
    %84 = arith.andi %82, %83 : i1
    %85 = arith.extui %84 : i1 to i32
    %c0_i32_49 = arith.constant 0 : i32
    %86 = arith.cmpi ne, %85, %c0_i32_49 : i32
    scf.if %86 {
      %c0_119 = arith.constant 0 : index
      %170 = arith.index_cast %81 : i32 to index
      %c0_120 = arith.constant 0 : index
      %c0_121 = arith.constant 0 : index
      %171 = vector.load %arg2[%c0_119, %170, %c0_120, %c0_121] : memref<1x16x16x128xf32, #tpu.memory_space<vmem>>, vector<1x1x16x128xf32>
      %172 = vector.shape_cast %171 : vector<1x1x16x128xf32> to vector<1x16x128xf32>
      %c11 = arith.constant 11 : index
      %c1_122 = arith.constant 1 : index
      %c0_123 = arith.constant 0 : index
      %173 = vector.load %arg10[%c11, %c1_122, %c0_123] : memref<12x18x128xf32, #tpu.memory_space<vmem>>, vector<1x16x128xf32>
      tpu.vector_store %arg10[%c11, %c1_122, %c0_123], %172 {strides = array<i32>} : memref<12x18x128xf32, #tpu.memory_space<vmem>>, vector<1x16x128xf32>,
    } else {
    }
    %c0_50 = arith.constant 0 : index
    %c0_51 = arith.constant 0 : index
    %c0_52 = arith.constant 0 : index
    %87 = vector.load %arg10[%c0_50, %c0_51, %c0_52] : memref<12x18x128xf32, #tpu.memory_space<vmem>>, vector<12x16x128xf32>
    %c0_53 = arith.constant 0 : index
    %c1 = arith.constant 1 : index
    %c0_54 = arith.constant 0 : index
    %88 = vector.load %arg10[%c0_53, %c1, %c0_54] : memref<12x18x128xf32, #tpu.memory_space<vmem>>, vector<12x16x128xf32>
    %c0_55 = arith.constant 0 : index
    %c2 = arith.constant 2 : index
    %c0_56 = arith.constant 0 : index
    %89 = vector.load %arg10[%c0_55, %c2, %c0_56] : memref<12x18x128xf32, #tpu.memory_space<vmem>>, vector<12x16x128xf32>
    %90 = tpu.concatenate %87, %88, %89 in 2 : vector<12x16x128xf32>, vector<12x16x128xf32>, vector<12x16x128xf32> -> vector<12x16x384xf32>
    %cst_57 = arith.constant 0.000000e+00 : f32
    %91 = vector.broadcast %cst_57 : f32 to vector<160x128xf32>
    %92 = vector.extract_strided_slice %90 {offsets = [0, 0, 0], sizes = [10, 16, 384], strides = [1, 1, 1]} : vector<12x16x384xf32> to vector<10x16x384xf32>
    %93 = vector.shape_cast %92 : vector<10x16x384xf32> to vector<160x384xf32>
    %c0_58 = arith.constant 0 : index
    %c0_59 = arith.constant 0 : index
    %c0_60 = arith.constant 0 : index
    %94 = vector.load %arg3[%c0_58, %c0_59, %c0_60] : memref<3x384x128xf32, #tpu.memory_space<vmem>>, vector<1x384x128xf32>
    %95 = vector.shape_cast %94 : vector<1x384x128xf32> to vector<384x128xf32>
    %cst_61 = arith.constant dense<0.000000e+00> : vector<160x128xf32>
    %96 = tpu.matmul %93, %95, %cst_61 {dimension_numbers = #tpu.dot_dimension_numbers<[1], [0], [0], [1], [0, 0, 1, 1], [], []>} : vector<160x384xf32>, vector<384x128xf32>, vector<160x128xf32> -> vector<160x128xf32>
    %97 = arith.addf %91, %96 : vector<160x128xf32>
    %98 = vector.extract_strided_slice %90 {offsets = [1, 0, 0], sizes = [10, 16, 384], strides = [1, 1, 1]} : vector<12x16x384xf32> to vector<10x16x384xf32>
    %99 = vector.shape_cast %98 : vector<10x16x384xf32> to vector<160x384xf32>
    %c1_62 = arith.constant 1 : index
    %c0_63 = arith.constant 0 : index
    %c0_64 = arith.constant 0 : index
    %100 = vector.load %arg3[%c1_62, %c0_63, %c0_64] : memref<3x384x128xf32, #tpu.memory_space<vmem>>, vector<1x384x128xf32>
    %101 = vector.shape_cast %100 : vector<1x384x128xf32> to vector<384x128xf32>
    %cst_65 = arith.constant dense<0.000000e+00> : vector<160x128xf32>
    %102 = tpu.matmul %99, %101, %cst_65 {dimension_numbers = #tpu.dot_dimension_numbers<[1], [0], [0], [1], [0, 0, 1, 1], [], []>} : vector<160x384xf32>, vector<384x128xf32>, vector<160x128xf32> -> vector<160x128xf32>
    %103 = arith.addf %97, %102 : vector<160x128xf32>
    %104 = vector.extract_strided_slice %90 {offsets = [2, 0, 0], sizes = [10, 16, 384], strides = [1, 1, 1]} : vector<12x16x384xf32> to vector<10x16x384xf32>
    %105 = vector.shape_cast %104 : vector<10x16x384xf32> to vector<160x384xf32>
    %c2_66 = arith.constant 2 : index
    %c0_67 = arith.constant 0 : index
    %c0_68 = arith.constant 0 : index
    %106 = vector.load %arg3[%c2_66, %c0_67, %c0_68] : memref<3x384x128xf32, #tpu.memory_space<vmem>>, vector<1x384x128xf32>
    %107 = vector.shape_cast %106 : vector<1x384x128xf32> to vector<384x128xf32>
    %cst_69 = arith.constant dense<0.000000e+00> : vector<160x128xf32>
    %108 = tpu.matmul %105, %107, %cst_69 {dimension_numbers = #tpu.dot_dimension_numbers<[1], [0], [0], [1], [0, 0, 1, 1], [], []>} : vector<160x384xf32>, vector<384x128xf32>, vector<160x128xf32> -> vector<160x128xf32>
    %109 = arith.addf %103, %108 : vector<160x128xf32>
    %c0_70 = arith.constant 0 : index
    %c0_71 = arith.constant 0 : index
    %110 = vector.load %arg4[%c0_70, %c0_71] : memref<1x128xf32, #tpu.memory_space<vmem>>, vector<1x128xf32>
    %111 = vector.broadcast %110 : vector<1x128xf32> to vector<160x128xf32>
    %112 = arith.mulf %109, %111 : vector<160x128xf32>
    %c0_72 = arith.constant 0 : index
    %c0_73 = arith.constant 0 : index
    %113 = vector.load %arg5[%c0_72, %c0_73] : memref<1x128xf32, #tpu.memory_space<vmem>>, vector<1x128xf32>
    %114 = vector.broadcast %113 : vector<1x128xf32> to vector<160x128xf32>
    %115 = arith.addf %112, %114 : vector<160x128xf32>
    %116 = vector.shape_cast %115 : vector<160x128xf32> to vector<10x16x128xf32>
    %117 = tpu.iota {dimensions = array<i32: 0>} : vector<10x16x128xi32>
    %c1_i32_74 = arith.constant 1 : i32
    %118 = arith.subi %0, %c1_i32_74 : i32
    %119 = vector.broadcast %118 : i32 to vector<10x16x128xi32>
    %120 = arith.addi %117, %119 : vector<10x16x128xi32>
    %c0_i32_75 = arith.constant 0 : i32
    %121 = vector.broadcast %c0_i32_75 : i32 to vector<10x16x128xi32>
    %122 = arith.cmpi sge, %120, %121 : vector<10x16x128xi32>
    %c16_i32_76 = arith.constant 16 : i32
    %123 = vector.broadcast %c16_i32_76 : i32 to vector<10x16x128xi32>
    %124 = arith.cmpi slt, %120, %123 : vector<10x16x128xi32>
    %125 = arith.andi %122, %124 : vector<10x16x128xi1>
    %cst_77 = arith.constant 0.000000e+00 : f32
    %126 = vector.broadcast %cst_77 : f32 to vector<10x16x128xf32>
    %127 = arith.select %125, %116, %126 : vector<10x16x128xi1>, vector<10x16x128xf32>
    %cst_78 = arith.constant 0.000000e+00 : f32
    %128 = vector.broadcast %cst_78 : f32 to vector<10x18x128xf32>
    %c0_79 = arith.constant 0 : index
    %c0_80 = arith.constant 0 : index
    %c0_81 = arith.constant 0 : index
    %129 = vector.load %arg11[%c0_79, %c0_80, %c0_81] : memref<10x18x128xf32, #tpu.memory_space<vmem>>, vector<10x18x128xf32>
    tpu.vector_store %arg11[%c0_79, %c0_80, %c0_81], %128 {strides = array<i32>} : memref<10x18x128xf32, #tpu.memory_space<vmem>>, vector<10x18x128xf32>,
    %c0_82 = arith.constant 0 : index
    %c1_83 = arith.constant 1 : index
    %c0_84 = arith.constant 0 : index
    %130 = vector.load %arg11[%c0_82, %c1_83, %c0_84] : memref<10x18x128xf32, #tpu.memory_space<vmem>>, vector<10x16x128xf32>
    tpu.vector_store %arg11[%c0_82, %c1_83, %c0_84], %127 {strides = array<i32>} : memref<10x18x128xf32, #tpu.memory_space<vmem>>, vector<10x16x128xf32>,
    %c0_85 = arith.constant 0 : index
    %c0_86 = arith.constant 0 : index
    %c0_87 = arith.constant 0 : index
    %131 = vector.load %arg11[%c0_85, %c0_86, %c0_87] : memref<10x18x128xf32, #tpu.memory_space<vmem>>, vector<10x16x128xf32>
    %c0_88 = arith.constant 0 : index
    %c1_89 = arith.constant 1 : index
    %c0_90 = arith.constant 0 : index
    %132 = vector.load %arg11[%c0_88, %c1_89, %c0_90] : memref<10x18x128xf32, #tpu.memory_space<vmem>>, vector<10x16x128xf32>
    %c0_91 = arith.constant 0 : index
    %c2_92 = arith.constant 2 : index
    %c0_93 = arith.constant 0 : index
    %133 = vector.load %arg11[%c0_91, %c2_92, %c0_93] : memref<10x18x128xf32, #tpu.memory_space<vmem>>, vector<10x16x128xf32>
    %134 = tpu.concatenate %131, %132, %133 in 2 : vector<10x16x128xf32>, vector<10x16x128xf32>, vector<10x16x128xf32> -> vector<10x16x384xf32>
    %cst_94 = arith.constant 0.000000e+00 : f32
    %135 = vector.broadcast %cst_94 : f32 to vector<128x128xf32>
    %136 = vector.extract_strided_slice %134 {offsets = [0, 0, 0], sizes = [8, 16, 384], strides = [1, 1, 1]} : vector<10x16x384xf32> to vector<8x16x384xf32>
    %137 = vector.shape_cast %136 : vector<8x16x384xf32> to vector<128x384xf32>
    %c0_95 = arith.constant 0 : index
    %c0_96 = arith.constant 0 : index
    %c0_97 = arith.constant 0 : index
    %138 = vector.load %arg6[%c0_95, %c0_96, %c0_97] : memref<3x384x128xf32, #tpu.memory_space<vmem>>, vector<1x384x128xf32>
    %139 = vector.shape_cast %138 : vector<1x384x128xf32> to vector<384x128xf32>
    %cst_98 = arith.constant dense<0.000000e+00> : vector<128x128xf32>
    %140 = tpu.matmul %137, %139, %cst_98 {dimension_numbers = #tpu.dot_dimension_numbers<[1], [0], [0], [1], [0, 0, 1, 1], [], []>} : vector<128x384xf32>, vector<384x128xf32>, vector<128x128xf32> -> vector<128x128xf32>
    %141 = arith.addf %135, %140 : vector<128x128xf32>
    %142 = vector.extract_strided_slice %134 {offsets = [1, 0, 0], sizes = [8, 16, 384], strides = [1, 1, 1]} : vector<10x16x384xf32> to vector<8x16x384xf32>
    %143 = vector.shape_cast %142 : vector<8x16x384xf32> to vector<128x384xf32>
    %c1_99 = arith.constant 1 : index
    %c0_100 = arith.constant 0 : index
    %c0_101 = arith.constant 0 : index
    %144 = vector.load %arg6[%c1_99, %c0_100, %c0_101] : memref<3x384x128xf32, #tpu.memory_space<vmem>>, vector<1x384x128xf32>
    %145 = vector.shape_cast %144 : vector<1x384x128xf32> to vector<384x128xf32>
    %cst_102 = arith.constant dense<0.000000e+00> : vector<128x128xf32>
    %146 = tpu.matmul %143, %145, %cst_102 {dimension_numbers = #tpu.dot_dimension_numbers<[1], [0], [0], [1], [0, 0, 1, 1], [], []>} : vector<128x384xf32>, vector<384x128xf32>, vector<128x128xf32> -> vector<128x128xf32>
    %147 = arith.addf %141, %146 : vector<128x128xf32>
    %148 = vector.extract_strided_slice %134 {offsets = [2, 0, 0], sizes = [8, 16, 384], strides = [1, 1, 1]} : vector<10x16x384xf32> to vector<8x16x384xf32>
    %149 = vector.shape_cast %148 : vector<8x16x384xf32> to vector<128x384xf32>
    %c2_103 = arith.constant 2 : index
    %c0_104 = arith.constant 0 : index
    %c0_105 = arith.constant 0 : index
    %150 = vector.load %arg6[%c2_103, %c0_104, %c0_105] : memref<3x384x128xf32, #tpu.memory_space<vmem>>, vector<1x384x128xf32>
    %151 = vector.shape_cast %150 : vector<1x384x128xf32> to vector<384x128xf32>
    %cst_106 = arith.constant dense<0.000000e+00> : vector<128x128xf32>
    %152 = tpu.matmul %149, %151, %cst_106 {dimension_numbers = #tpu.dot_dimension_numbers<[1], [0], [0], [1], [0, 0, 1, 1], [], []>} : vector<128x384xf32>, vector<384x128xf32>, vector<128x128xf32> -> vector<128x128xf32>
    %153 = arith.addf %147, %152 : vector<128x128xf32>
    %154 = tpu.assume_multiple %0, 8 : i32
    %c0_107 = arith.constant 0 : index
    %155 = arith.index_cast %154 : i32 to index
    %c0_108 = arith.constant 0 : index
    %c0_109 = arith.constant 0 : index
    %156 = vector.load %arg2[%c0_107, %155, %c0_108, %c0_109] : memref<1x16x16x128xf32, #tpu.memory_space<vmem>>, vector<1x8x16x128xf32>
    %157 = vector.shape_cast %156 : vector<1x8x16x128xf32> to vector<8x16x128xf32>
    %c0_110 = arith.constant 0 : index
    %c0_111 = arith.constant 0 : index
    %158 = vector.load %arg7[%c0_110, %c0_111] : memref<1x128xf32, #tpu.memory_space<vmem>>, vector<1x128xf32>
    %159 = vector.broadcast %158 : vector<1x128xf32> to vector<128x128xf32>
    %160 = arith.mulf %153, %159 : vector<128x128xf32>
    %c0_112 = arith.constant 0 : index
    %c0_113 = arith.constant 0 : index
    %161 = vector.load %arg8[%c0_112, %c0_113] : memref<1x128xf32, #tpu.memory_space<vmem>>, vector<1x128xf32>
    %162 = vector.broadcast %161 : vector<1x128xf32> to vector<128x128xf32>
    %163 = arith.addf %160, %162 : vector<128x128xf32>
    %164 = vector.shape_cast %157 : vector<8x16x128xf32> to vector<128x128xf32>
    %165 = arith.addf %163, %164 : vector<128x128xf32>
    %cst_114 = arith.constant 0.000000e+00 : f32
    %166 = vector.broadcast %cst_114 : f32 to vector<128x128xf32>
    %167 = arith.maximumf %165, %166 : vector<128x128xf32>
    %168 = vector.shape_cast %167 : vector<128x128xf32> to vector<1x8x16x128xf32>
    %c0_115 = arith.constant 0 : index
    %c0_116 = arith.constant 0 : index
    %c0_117 = arith.constant 0 : index
    %c0_118 = arith.constant 0 : index
    %169 = vector.load %arg9[%c0_115, %c0_116, %c0_117, %c0_118] : memref<1x8x16x128xf32, #tpu.memory_space<vmem>>, vector<1x8x16x128xf32>
    tpu.vector_store %arg9[%c0_115, %c0_116, %c0_117, %c0_118], %168 {strides = array<i32>} : memref<1x8x16x128xf32, #tpu.memory_space<vmem>>, vector<1x8x16x128xf32>,
    return
  }
  func.func @transform_0(%arg0: i32, %arg1: i32) -> (i32, i32, i32, i32) {
    %c0_i32 = arith.constant 0 : i32
    %c0_i32_0 = arith.constant 0 : i32
    %c0_i32_1 = arith.constant 0 : i32
    %c0_i32_2 = arith.constant 0 : i32
    return %arg0, %c0_i32, %c0_i32_0, %c0_i32_1 : i32, i32, i32, i32
  }
  func.func @transform_1(%arg0: i32, %arg1: i32) -> (i32, i32, i32) {
    %c0_i32 = arith.constant 0 : i32
    %c0_i32_0 = arith.constant 0 : i32
    %c0_i32_1 = arith.constant 0 : i32
    %c0_i32_2 = arith.constant 0 : i32
    return %c0_i32, %c0_i32_0, %c0_i32_1 : i32, i32, i32
  }
  func.func @transform_2(%arg0: i32, %arg1: i32) -> (i32, i32) {
    %c0_i32 = arith.constant 0 : i32
    %c0_i32_0 = arith.constant 0 : i32
    %c0_i32_1 = arith.constant 0 : i32
    return %c0_i32, %c0_i32_0 : i32, i32
  }
  func.func @transform_3(%arg0: i32, %arg1: i32) -> (i32, i32) {
    %c0_i32 = arith.constant 0 : i32
    %c0_i32_0 = arith.constant 0 : i32
    %c0_i32_1 = arith.constant 0 : i32
    return %c0_i32, %c0_i32_0 : i32, i32
  }
  func.func @transform_4(%arg0: i32, %arg1: i32) -> (i32, i32, i32) {
    %c0_i32 = arith.constant 0 : i32
    %c0_i32_0 = arith.constant 0 : i32
    %c0_i32_1 = arith.constant 0 : i32
    %c0_i32_2 = arith.constant 0 : i32
    return %c0_i32, %c0_i32_0, %c0_i32_1 : i32, i32, i32
  }
  func.func @transform_5(%arg0: i32, %arg1: i32) -> (i32, i32) {
    %c0_i32 = arith.constant 0 : i32
    %c0_i32_0 = arith.constant 0 : i32
    %c0_i32_1 = arith.constant 0 : i32
    return %c0_i32, %c0_i32_0 : i32, i32
  }
  func.func @transform_6(%arg0: i32, %arg1: i32) -> (i32, i32) {
    %c0_i32 = arith.constant 0 : i32
    %c0_i32_0 = arith.constant 0 : i32
    %c0_i32_1 = arith.constant 0 : i32
    return %c0_i32, %c0_i32_0 : i32, i32
  }
  func.func @transform_7(%arg0: i32, %arg1: i32) -> (i32, i32, i32, i32) {
    %c0_i32 = arith.constant 0 : i32
    %c0_i32_0 = arith.constant 0 : i32
    %c0_i32_1 = arith.constant 0 : i32
    return %arg0, %arg1, %c0_i32, %c0_i32_0 : i32, i32, i32, i32
  }
}

</mosaic_0001>

<llo_original>
// kernel: tpu_custom_call.1
$region0: #{tpu_custom_call.1}
  #allocation0 [shape = 'u32[]', space=smem, size = 0x4, offset = 0x4, fixed_abs, tag = 'smem constant byte address 0x4 - core index']
  #allocation1 [shape = 'u32[144,128]{1,0:T(1,128)}', space=vmem, size = 0x12000, scoped, tag = 'internal scratch']
  #allocation2 [shape = 'f32[12,18,128]{2,1,0:T(8,128)}', space=vmem, size = 0x24000, scoped, tag = 'scratch operand']
  #allocation3 [shape = 'f32[10,18,128]{2,1,0:T(8,128)}', space=vmem, size = 0x1e000, scoped, tag = 'scratch operand']
  %s0 = inlined_call_operand.hbm [shape: f32[2,16,16,128], index: 0, kind: input, shape index: {}]
  %s1 = inlined_call_operand.hbm [shape: f32[3,384,128], index: 1, kind: input, shape index: {}]
  %s2 = inlined_call_operand.vmem [shape: f32[1,128], index: 2, kind: input, shape index: {}]
  %s3 = inlined_call_operand.vmem [shape: f32[1,128], index: 3, kind: input, shape index: {}]
  %s4 = inlined_call_operand.hbm [shape: f32[3,384,128], index: 4, kind: input, shape index: {}]
  %s5 = inlined_call_operand.vmem [shape: f32[1,128], index: 5, kind: input, shape index: {}]
  %s6 = inlined_call_operand.vmem [shape: f32[1,128], index: 6, kind: input, shape index: {}]
  %s7 = inlined_call_operand.hbm [shape: f32[2,16,16,128], index: 7, kind: output, shape index: {}]
  %s8 = sld [smem:[#allocation0]]
  $region121: #{tpu_custom_call.1} parent=0
    _
  %s10 = ssub.s32 1, %s8
  %s11 = scalar_select 0, %s10, %s8
  $region1: #{tpu_custom_call.1} parent=0
    #allocation4 [shape = 'u8[262144]{0}', space=vmem, size = 0x40000, scoped, tag = 'input window, operand 0']
    #allocation5 [shape = 's32[2]{0}', space=sflag, size = 0x8, scoped, tag = 'scoped memory for tpu_custom_call.1']
    #allocation6 [shape = 's32[2]{0}', space=sflag, size = 0x8, scoped, tag = 'scoped memory for tpu_custom_call.1']
    #allocation7 [shape = 'u8[589824]{0}', space=vmem, size = 0x90000, scoped, tag = 'input window, operand 1, single buffered']
    #allocation8 [shape = 's32[1]{0}', space=sflag, size = 0x4, scoped, tag = 'scoped memory for tpu_custom_call.1']
    #allocation9 [shape = 'u8[589824]{0}', space=vmem, size = 0x90000, scoped, tag = 'input window, operand 4, single buffered']
    #allocation10 [shape = 'u8[131072]{0}', space=vmem, size = 0x20000, scoped, tag = 'output window, operand 0']
    %12 = vsyncpa [#allocation5], 0
    %s13 = scalar_lea.sflag [#allocation5], 1
    %14 = vsyncpa %s13, 0
    %15 = vsyncpa [#allocation8], 0
    %16 = vsyncpa [#allocation6], 0
    %s17 = scalar_lea.sflag [#allocation6], 1
    %18 = vsyncpa %s17, 0
    loop: start=0, step=1, limit=6
    $region2: #{tpu_custom_call.1} parent=1 // loop_pre_header
      _
    $region3: #{tpu_custom_call.1} parent=1 // loop_header
      %s20 = sphi 0, %s24
      %p21 = scmp.ge.s32.totalorder %s20, 6
      %s27 = sphi 0, %s39
      %s28 = sphi 0, %s35
      %s29 = sphi 0, %s27
      %s30 = sphi 0, %s28
      %s31 = sphi 0, %s29
      %s32 = sphi 0, %s30
      %s42 = sphi 0, %s44
      %s45 = sphi 0, %s42
      %s46 = sphi 0, %s45
      %s62 = sphi 0, %s46
      %s66 = sphi 0, %s66
      %s68 = sphi 0, %s66
      %s69 = sphi 0, %s68
      %s83 = sphi 0, %s69
      %s87 = sphi 0, %s87
      %s89 = sphi 0, %s87
      %s90 = sphi 0, %s89
      %s104 = sphi 0, %s90
      %s108 = sphi 0, %s108
      %s110 = sphi 0, %s108
      %s111 = sphi 0, %s110
      %s125 = sphi 0, %s111
      %s129 = sphi 0, %s129
      %s131 = sphi 0, %s129
      %s132 = sphi 0, %s131
      %s146 = sphi 0, %s132
      %s150 = sphi 0, %s150
      %s152 = sphi 0, %s150
      %s153 = sphi 0, %s152
      %s167 = sphi 0, %s153
      %s171 = sphi 0, %s171
      %s173 = sphi 0, %s171
      %s174 = sphi 0, %s173
      %s188 = sphi 0, %s174
      %s196 = sphi 0, %s198
      %s199 = sphi 0, %s196
      %s200 = sphi 0, %s199
      %s216 = sphi 0, %s200
    $region4: #{tpu_custom_call.1} parent=1 // loop_header_branch
      %23 = sbr.rel (%p21) target = $region8
    $region5: #{tpu_custom_call.1} parent=1 // loop_body
      %s25 = ssub.s32 %s20, 1
      %s26 = ssub.s32 %s20, 2
      %s33 = sadd.s32 1, %s28
      %p34 = scmp.ge.s32.totalorder %s33, 2
      %s35 = scalar_select %p34, 0, %s33
      %s36 = sadd.s32 1, %s27
      %s37 = scalar_select %p34, %s36, %s27
      %p38 = scmp.ge.s32.totalorder %s37, 2
      %s39 = scalar_select %p38, 0, %s37
      %s40 = ssub.s32 %s27, %s39
      %p41 = scmp.eq.s32.totalorder %s40, 0
      %s43 = sadd.s32 %s42, 1
      %s44 = scalar_select %p41, %s42, %s43
      %p47 = pneg %p41
      %p48 = scmp.eq.s32.totalorder %s20, 3
      %p49 = por %p47, %p48
      %p50 = scmp.ne.s32.totalorder %s42, %s45
      %p51 = scmp.eq.s32.totalorder %s20, 0
      %p52 = por %p50, %p51
      %p53 = scmp.ne.s32.totalorder %s42, %s45
      %p54 = scmp.eq.s32.totalorder %s25, 3
      %p55 = por %p53, %p54
      %p56 = scmp.ne.s32.totalorder %s45, %s46
      %p57 = scmp.eq.s32.totalorder %s25, 0
      %p58 = por %p56, %p57
      %p59 = scmp.ne.s32.totalorder %s45, %s46
      %p60 = scmp.eq.s32.totalorder %s26, 3
      %p61 = por %p59, %p60
      %p63 = scmp.ne.s32.totalorder %s46, %s62
      %p64 = scmp.eq.s32.totalorder %s26, 0
      %p65 = por %p63, %p64
      %s67 = sadd.s32 %s66, 1
      %p70 = scmp.eq.s32.totalorder %s20, 3
      %p71 = scmp.ne.s32.totalorder %s66, %s68
      %p72 = scmp.eq.s32.totalorder %s20, 0
      %p73 = por %p71, %p72
      %p74 = scmp.ne.s32.totalorder %s66, %s68
      %p75 = scmp.eq.s32.totalorder %s25, 3
      %p76 = por %p74, %p75
      %p77 = scmp.ne.s32.totalorder %s68, %s69
      %p78 = scmp.eq.s32.totalorder %s25, 0
      %p79 = por %p77, %p78
      %p80 = scmp.ne.s32.totalorder %s68, %s69
      %p81 = scmp.eq.s32.totalorder %s26, 3
      %p82 = por %p80, %p81
      %p84 = scmp.ne.s32.totalorder %s69, %s83
      %p85 = scmp.eq.s32.totalorder %s26, 0
      %p86 = por %p84, %p85
      %s88 = sadd.s32 %s87, 1
      %p91 = scmp.eq.s32.totalorder %s20, 3
      %p92 = scmp.ne.s32.totalorder %s87, %s89
      %p93 = scmp.eq.s32.totalorder %s20, 0
      %p94 = por %p92, %p93
      %p95 = scmp.ne.s32.totalorder %s87, %s89
      %p96 = scmp.eq.s32.totalorder %s25, 3
      %p97 = por %p95, %p96
      %p98 = scmp.ne.s32.totalorder %s89, %s90
      %p99 = scmp.eq.s32.totalorder %s25, 0
      %p100 = por %p98, %p99
      %p101 = scmp.ne.s32.totalorder %s89, %s90
      %p102 = scmp.eq.s32.totalorder %s26, 3
      %p103 = por %p101, %p102
      %p105 = scmp.ne.s32.totalorder %s90, %s104
      %p106 = scmp.eq.s32.totalorder %s26, 0
      %p107 = por %p105, %p106
      %s109 = sadd.s32 %s108, 1
      %p112 = scmp.eq.s32.totalorder %s20, 3
      %p113 = scmp.ne.s32.totalorder %s108, %s110
      %p114 = scmp.eq.s32.totalorder %s20, 0
      %p115 = por %p113, %p114
      %p116 = scmp.ne.s32.totalorder %s108, %s110
      %p117 = scmp.eq.s32.totalorder %s25, 3
      %p118 = por %p116, %p117
      %p119 = scmp.ne.s32.totalorder %s110, %s111
      %p120 = scmp.eq.s32.totalorder %s25, 0
      %p121 = por %p119, %p120
      %p122 = scmp.ne.s32.totalorder %s110, %s111
      %p123 = scmp.eq.s32.totalorder %s26, 3
      %p124 = por %p122, %p123
      %p126 = scmp.ne.s32.totalorder %s111, %s125
      %p127 = scmp.eq.s32.totalorder %s26, 0
      %p128 = por %p126, %p127
      %s130 = sadd.s32 %s129, 1
      %p133 = scmp.eq.s32.totalorder %s20, 3
      %p134 = scmp.ne.s32.totalorder %s129, %s131
      %p135 = scmp.eq.s32.totalorder %s20, 0
      %p136 = por %p134, %p135
      %p137 = scmp.ne.s32.totalorder %s129, %s131
      %p138 = scmp.eq.s32.totalorder %s25, 3
      %p139 = por %p137, %p138
      %p140 = scmp.ne.s32.totalorder %s131, %s132
      %p141 = scmp.eq.s32.totalorder %s25, 0
      %p142 = por %p140, %p141
      %p143 = scmp.ne.s32.totalorder %s131, %s132
      %p144 = scmp.eq.s32.totalorder %s26, 3
      %p145 = por %p143, %p144
      %p147 = scmp.ne.s32.totalorder %s132, %s146
      %p148 = scmp.eq.s32.totalorder %s26, 0
      %p149 = por %p147, %p148
      %s151 = sadd.s32 %s150, 1
      %p154 = scmp.eq.s32.totalorder %s20, 3
      %p155 = scmp.ne.s32.totalorder %s150, %s152
      %p156 = scmp.eq.s32.totalorder %s20, 0
      %p157 = por %p155, %p156
      %p158 = scmp.ne.s32.totalorder %s150, %s152
      %p159 = scmp.eq.s32.totalorder %s25, 3
      %p160 = por %p158, %p159
      %p161 = scmp.ne.s32.totalorder %s152, %s153
      %p162 = scmp.eq.s32.totalorder %s25, 0
      %p163 = por %p161, %p162
      %p164 = scmp.ne.s32.totalorder %s152, %s153
      %p165 = scmp.eq.s32.totalorder %s26, 3
      %p166 = por %p164, %p165
      %p168 = scmp.ne.s32.totalorder %s153, %s167
      %p169 = scmp.eq.s32.totalorder %s26, 0
      %p170 = por %p168, %p169
      %s172 = sadd.s32 %s171, 1
      %p175 = scmp.eq.s32.totalorder %s20, 3
      %p176 = scmp.ne.s32.totalorder %s171, %s173
      %p177 = scmp.eq.s32.totalorder %s20, 0
      %p178 = por %p176, %p177
      %p179 = scmp.ne.s32.totalorder %s171, %s173
      %p180 = scmp.eq.s32.totalorder %s25, 3
      %p181 = por %p179, %p180
      %p182 = scmp.ne.s32.totalorder %s173, %s174
      %p183 = scmp.eq.s32.totalorder %s25, 0
      %p184 = por %p182, %p183
      %p185 = scmp.ne.s32.totalorder %s173, %s174
      %p186 = scmp.eq.s32.totalorder %s26, 3
      %p187 = por %p185, %p186
      %p189 = scmp.ne.s32.totalorder %s174, %s188
      %p190 = scmp.eq.s32.totalorder %s26, 0
      %p191 = por %p189, %p190
      %s192 = ssub.s32 %s27, %s39
      %s193 = ssub.s32 %s28, %s35
      %s194 = sor.u32 %s192, %s193
      %p195 = scmp.eq.s32.totalorder %s194, 0
      %s197 = sadd.s32 %s196, 1
      %s198 = scalar_select %p195, %s196, %s197
      %p201 = pneg %p195
      %p202 = scmp.eq.s32.totalorder %s20, 3
      %p203 = por %p201, %p202
      %p204 = scmp.ne.s32.totalorder %s196, %s199
      %p205 = scmp.eq.s32.totalorder %s20, 0
      %p206 = por %p204, %p205
      %p207 = scmp.ne.s32.totalorder %s196, %s199
      %p208 = scmp.eq.s32.totalorder %s25, 3
      %p209 = por %p207, %p208
      %p210 = scmp.ne.s32.totalorder %s199, %s200
      %p211 = scmp.eq.s32.totalorder %s25, 0
      %p212 = por %p210, %p211
      %p213 = scmp.ne.s32.totalorder %s199, %s200
      %p214 = scmp.eq.s32.totalorder %s26, 3
      %p215 = por %p213, %p214
      %p217 = scmp.ne.s32.totalorder %s200, %s216
      %p218 = scmp.eq.s32.totalorder %s26, 0
      %p219 = por %p217, %p218
      %p220 = scmp.le.s32.totalorder 1, %s20
      %p221 = scmp.lt.s32.totalorder %s20, 5
      %p222 = pnand %p220, %p221
      %p223 = pneg %p222
      // Predicated region
      $region9: #{tpu_custom_call.1} parent=5 // pred_check
        _
      $region10: #{tpu_custom_call.1} parent=5 // pred_check_branch
        %225 = sbr.rel (%p222) target = $region12
      $region11: #{tpu_custom_call.1} parent=5 // pred_region
        %s226 = ssub.s32 %s20, 1
        // Predicated region
        $region13: #{tpu_custom_call.1} parent=11 // pred_check
          %p227 = pneg %p79
        $region14: #{tpu_custom_call.1} parent=11 // pred_check_branch
          %229 = sbr.rel (%p227) target = $region16
        $region15: #{tpu_custom_call.1} parent=11 // pred_region
          %s231 = ssub.s32 18432, 18432
          %232 = vsyncadd [#allocation8], %s231
          %s233 = sshll.u32 [#allocation7], 4
          %s234 = int_to_ptr.vmem [resolvable:$true] %s233
          %239 = dma.hbm_to_vmem [thread:$0]  %s1, 18432, %s234, [#allocation8], 128, 128, 8
        $region16: #{tpu_custom_call.1} parent=11 // pred_fallthru
          _
        // Predicated region
        $region17: #{tpu_custom_call.1} parent=11 // pred_check
          %p240 = pneg %p100
        $region18: #{tpu_custom_call.1} parent=11 // pred_check_branch
          %242 = sbr.rel (%p240) target = $region20
        $region19: #{tpu_custom_call.1} parent=11 // pred_region
          _
        $region20: #{tpu_custom_call.1} parent=11 // pred_fallthru
          _
        // Predicated region
        $region21: #{tpu_custom_call.1} parent=11 // pred_check
          %p243 = pneg %p121
        $region22: #{tpu_custom_call.1} parent=11 // pred_check_branch
          %245 = sbr.rel (%p243) target = $region24
        $region23: #{tpu_custom_call.1} parent=11 // pred_region
          _
        $region24: #{tpu_custom_call.1} parent=11 // pred_fallthru
          _
        // Predicated region
        $region25: #{tpu_custom_call.1} parent=11 // pred_check
          %p246 = pneg %p142
        $region26: #{tpu_custom_call.1} parent=11 // pred_check_branch
          %248 = sbr.rel (%p246) target = $region28
        $region27: #{tpu_custom_call.1} parent=11 // pred_region
          %s250 = ssub.s32 18432, 18432
          %251 = vsyncadd [#allocation8], %s250
          %s252 = sshll.u32 [#allocation9], 4
          %s253 = int_to_ptr.vmem [resolvable:$true] %s252
          %258 = dma.hbm_to_vmem [thread:$0]  %s4, 18432, %s253, [#allocation8], 128, 128, 8
        $region28: #{tpu_custom_call.1} parent=11 // pred_fallthru
          _
        // Predicated region
        $region29: #{tpu_custom_call.1} parent=11 // pred_check
          %p259 = pneg %p163
        $region30: #{tpu_custom_call.1} parent=11 // pred_check_branch
          %261 = sbr.rel (%p259) target = $region32
        $region31: #{tpu_custom_call.1} parent=11 // pred_region
          _
        $region32: #{tpu_custom_call.1} parent=11 // pred_fallthru
          _
        // Predicated region
        $region33: #{tpu_custom_call.1} parent=11 // pred_check
          %p262 = pneg %p184
        $region34: #{tpu_custom_call.1} parent=11 // pred_check_branch
          %264 = sbr.rel (%p262) target = $region36
        $region35: #{tpu_custom_call.1} parent=11 // pred_region
          _
        $region36: #{tpu_custom_call.1} parent=11 // pred_fallthru
          _
      $region12: #{tpu_custom_call.1} parent=5 // pred_fallthru
        _
      %p265 = scmp.lt.s32.totalorder %s20, 4
      // Predicated region
      $region37: #{tpu_custom_call.1} parent=5 // pred_check
        %p266 = pneg %p265
      $region38: #{tpu_custom_call.1} parent=5 // pred_check_branch
        %268 = sbr.rel (%p266) target = $region40
      $region39: #{tpu_custom_call.1} parent=5 // pred_region
        // Predicated region
        $region41: #{tpu_custom_call.1} parent=39 // pred_check
          %p269 = pneg %p52
        $region42: #{tpu_custom_call.1} parent=39 // pred_check_branch
          %271 = sbr.rel (%p269) target = $region44
        $region43: #{tpu_custom_call.1} parent=39 // pred_region
          %s272 = sand.u32 %s42, 1
          %s273 = scalar_lea.sflag [#allocation5], %s272
          %s274 = sand.u32 %s42, 1
          %s275 = smul.addr %s274, 256
          %s276 = scalar_lea.vmem [#allocation4], %s275
          %s278 = ssub.s32 4096, 4096
          %279 = vsyncadd %s273, %s278
          %s280 = smul.addr %s27, 32
          %s281 = smul.addr %s280, 128
          %s282 = scalar_lea.hbm %s0, %s281
          %s283 = sshll.u32 %s276, 4
          %s284 = int_to_ptr.vmem [resolvable:$true] %s283
          %289 = dma.hbm_to_vmem [thread:$0]  %s282, 4096, %s284, %s273, 128, 128, 8
        $region44: #{tpu_custom_call.1} parent=39 // pred_fallthru
          _
      $region40: #{tpu_custom_call.1} parent=5 // pred_fallthru
        _
      %p290 = scmp.le.s32.totalorder 1, %s20
      %p291 = scmp.lt.s32.totalorder %s20, 5
      %p292 = pnand %p290, %p291
      %p293 = pneg %p292
      // Predicated region
      $region45: #{tpu_custom_call.1} parent=5 // pred_check
        _
      $region46: #{tpu_custom_call.1} parent=5 // pred_check_branch
        %295 = sbr.rel (%p292) target = $region48
      $region47: #{tpu_custom_call.1} parent=5 // pred_region
        %s296 = ssub.s32 %s20, 1
        %s297 = sand.u32 %s45, 1
        %s298 = scalar_lea.sflag [#allocation5], %s297
        %s299 = sand.u32 %s45, 1
        %s300 = smul.addr %s299, 256
        %s301 = scalar_lea.vmem [#allocation4], %s300
        // Predicated region
        $region49: #{tpu_custom_call.1} parent=47 // pred_check
          %p302 = pneg %p58
        $region50: #{tpu_custom_call.1} parent=47 // pred_check_branch
          %304 = sbr.rel (%p302) target = $region52
        $region51: #{tpu_custom_call.1} parent=47 // pred_region
          %305 = dma.done %s298, 4096
        $region52: #{tpu_custom_call.1} parent=47 // pred_fallthru
          _
        // Predicated region
        $region53: #{tpu_custom_call.1} parent=47 // pred_check
          %p306 = pneg %p79
        $region54: #{tpu_custom_call.1} parent=47 // pred_check_branch
          %308 = sbr.rel (%p306) target = $region56
        $region55: #{tpu_custom_call.1} parent=47 // pred_region
          %309 = dma.done [#allocation8], 18432
        $region56: #{tpu_custom_call.1} parent=47 // pred_fallthru
          _
        // Predicated region
        $region57: #{tpu_custom_call.1} parent=47 // pred_check
          %p310 = pneg %p142
        $region58: #{tpu_custom_call.1} parent=47 // pred_check_branch
          %312 = sbr.rel (%p310) target = $region60
        $region59: #{tpu_custom_call.1} parent=47 // pred_region
          %313 = dma.done [#allocation8], 18432
        $region60: #{tpu_custom_call.1} parent=47 // pred_fallthru
          _
        %s314 = sand.u32 %s45, 1
        %s315 = scalar_lea.sflag [#allocation5], %s314
        %s316 = sand.u32 %s45, 1
        %s317 = smul.addr %s316, 256
        %s318 = scalar_lea.vmem [#allocation4], %s317
        %p319 = pneg %p58
        %p320 = pneg %p55
        %p321 = pneg %p79
        %p322 = pneg %p76
        %p323 = pneg %p100
        %p324 = pneg %p97
        %p325 = pneg %p121
        %p326 = pneg %p118
        %p327 = pneg %p142
        %p328 = pneg %p139
        %p329 = pneg %p163
        %p330 = pneg %p160
        %p331 = pneg %p184
        %p332 = pneg %p181
        %p333 = pneg %p212
        %p334 = pneg %p209
        %s335 = sand.u32 %s199, 1
        %s336 = scalar_lea.sflag [#allocation6], %s335
        %s337 = sand.u32 %s199, 1
        %s338 = smul.addr %s337, 128
        %s339 = scalar_lea.vmem [#allocation10], %s338
        %s340 = smul.u32 8, %s30
        %s341 = smul.u32 %s30, 8
        %342 = vst [vmem:[#allocation2] sm:$0xff] 0.0
        %343 = vst [vmem:[#allocation2 + $0x8] sm:$0xff] 0.0
        %344 = vst [vmem:[#allocation2 + $0x10] sm:$0x3] 0.0
        %345 = vst [vmem:[#allocation2 + $0x18] sm:$0xff] 0.0
        %346 = vst [vmem:[#allocation2 + $0x20] sm:$0xff] 0.0
        %347 = vst [vmem:[#allocation2 + $0x28] sm:$0x3] 0.0
        %348 = vst [vmem:[#allocation2 + $0x30] sm:$0xff] 0.0
        %349 = vst [vmem:[#allocation2 + $0x38] sm:$0xff] 0.0
        %350 = vst [vmem:[#allocation2 + $0x40] sm:$0x3] 0.0
        %351 = vst [vmem:[#allocation2 + $0x48] sm:$0xff] 0.0
        %352 = vst [vmem:[#allocation2 + $0x50] sm:$0xff] 0.0
        %353 = vst [vmem:[#allocation2 + $0x58] sm:$0x3] 0.0
        %354 = vst [vmem:[#allocation2 + $0x60] sm:$0xff] 0.0
        %355 = vst [vmem:[#allocation2 + $0x68] sm:$0xff] 0.0
        %356 = vst [vmem:[#allocation2 + $0x70] sm:$0x3] 0.0
        %357 = vst [vmem:[#allocation2 + $0x78] sm:$0xff] 0.0
        %358 = vst [vmem:[#allocation2 + $0x80] sm:$0xff] 0.0
        %359 = vst [vmem:[#allocation2 + $0x88] sm:$0x3] 0.0
        %360 = vst [vmem:[#allocation2 + $0x90] sm:$0xff] 0.0
        %361 = vst [vmem:[#allocation2 + $0x98] sm:$0xff] 0.0
        %362 = vst [vmem:[#allocation2 + $0xa0] sm:$0x3] 0.0
        %363 = vst [vmem:[#allocation2 + $0xa8] sm:$0xff] 0.0
        %364 = vst [vmem:[#allocation2 + $0xb0] sm:$0xff] 0.0
        %365 = vst [vmem:[#allocation2 + $0xb8] sm:$0x3] 0.0
        %366 = vst [vmem:[#allocation2 + $0xc0] sm:$0xff] 0.0
        %367 = vst [vmem:[#allocation2 + $0xc8] sm:$0xff] 0.0
        %368 = vst [vmem:[#allocation2 + $0xd0] sm:$0x3] 0.0
        %369 = vst [vmem:[#allocation2 + $0xd8] sm:$0xff] 0.0
        %370 = vst [vmem:[#allocation2 + $0xe0] sm:$0xff] 0.0
        %371 = vst [vmem:[#allocation2 + $0xe8] sm:$0x3] 0.0
        %372 = vst [vmem:[#allocation2 + $0xf0] sm:$0xff] 0.0
        %373 = vst [vmem:[#allocation2 + $0xf8] sm:$0xff] 0.0
        %374 = vst [vmem:[#allocation2 + $0x100] sm:$0x3] 0.0
        %375 = vst [vmem:[#allocation2 + $0x108] sm:$0xff] 0.0
        %376 = vst [vmem:[#allocation2 + $0x110] sm:$0xff] 0.0
        %377 = vst [vmem:[#allocation2 + $0x118] sm:$0x3] 0.0
        %s378 = ssub.s32 %s341, 2
        %p379 = scmp.ge.s32.totalorder %s378, 0
        %p380 = scmp.lt.s32.totalorder %s378, 16
        %p381 = pnand %p379, %p380
        %p382 = pneg %p381
        // Predicated region
        $region61: #{tpu_custom_call.1} parent=47 // pred_check
          _
        $region62: #{tpu_custom_call.1} parent=47 // pred_check_branch
          %384 = sbr.rel (%p381) target = $region64
        $region63: #{tpu_custom_call.1} parent=47 // pred_region
          %s385 = smul.u32 %s378, 16
          %s386 = scalar_lea.vmem %s301, %s385 [#allocation4]
          %v387 = vld [vmem:[%s386] sm:$0xff]
          %v388 = vld [vmem:[%s386 + $0x8] sm:$0xff]
          %389 = vst [vmem:[#allocation2 + $0x1] sm:$0xff] %v387
          %390 = vst [vmem:[#allocation2 + $0x9] sm:$0xff] %v388
        $region64: #{tpu_custom_call.1} parent=47 // pred_fallthru
          _
        %s391 = sadd.s32 %s341, 4294967295
        %p392 = scmp.ge.s32.totalorder %s391, 0
        %p393 = scmp.lt.s32.totalorder %s391, 16
        %p394 = pnand %p392, %p393
        %p395 = pneg %p394
        // Predicated region
        $region65: #{tpu_custom_call.1} parent=47 // pred_check
          _
        $region66: #{tpu_custom_call.1} parent=47 // pred_check_branch
          %397 = sbr.rel (%p394) target = $region68
        $region67: #{tpu_custom_call.1} parent=47 // pred_region
          %s398 = smul.u32 %s391, 16
          %s399 = scalar_lea.vmem %s301, %s398 [#allocation4]
          %v400 = vld [vmem:[%s399] sm:$0xff]
          %v401 = vld [vmem:[%s399 + $0x8] sm:$0xff]
          %s402 = scalar_lea.vmem [#allocation2], 24
          %403 = vst [vmem:[%s402 + $0x1] sm:$0xff] %v400
          %404 = vst [vmem:[%s402 + $0x9] sm:$0xff] %v401
        $region68: #{tpu_custom_call.1} parent=47 // pred_fallthru
          _
        %p405 = scmp.ge.s32.totalorder %s341, 0
        %p406 = scmp.lt.s32.totalorder %s341, 16
        %p407 = pnand %p405, %p406
        %p408 = pneg %p407
        // Predicated region
        $region69: #{tpu_custom_call.1} parent=47 // pred_check
          _
        $region70: #{tpu_custom_call.1} parent=47 // pred_check_branch
          %410 = sbr.rel (%p407) target = $region72
        $region71: #{tpu_custom_call.1} parent=47 // pred_region
          %s411 = smul.u32 %s341, 16
          %s412 = scalar_lea.vmem %s301, %s411 [#allocation4]
          %v413 = vld [vmem:[%s412] sm:$0xff]
          %v414 = vld [vmem:[%s412 + $0x8] sm:$0xff]
          %s415 = scalar_lea.vmem [#allocation2], 48
          %416 = vst [vmem:[%s415 + $0x1] sm:$0xff] %v413
          %417 = vst [vmem:[%s415 + $0x9] sm:$0xff] %v414
        $region72: #{tpu_custom_call.1} parent=47 // pred_fallthru
          _
        %s418 = sadd.s32 %s341, 1
        %p419 = scmp.ge.s32.totalorder %s418, 0
        %p420 = scmp.lt.s32.totalorder %s418, 16
        %p421 = pnand %p419, %p420
        %p422 = pneg %p421
        // Predicated region
        $region73: #{tpu_custom_call.1} parent=47 // pred_check
          _
        $region74: #{tpu_custom_call.1} parent=47 // pred_check_branch
          %424 = sbr.rel (%p421) target = $region76
        $region75: #{tpu_custom_call.1} parent=47 // pred_region
          %s425 = smul.u32 %s418, 16
          %s426 = scalar_lea.vmem %s301, %s425 [#allocation4]
          %v427 = vld [vmem:[%s426] sm:$0xff]
          %v428 = vld [vmem:[%s426 + $0x8] sm:$0xff]
          %s429 = scalar_lea.vmem [#allocation2], 72
          %430 = vst [vmem:[%s429 + $0x1] sm:$0xff] %v427
          %431 = vst [vmem:[%s429 + $0x9] sm:$0xff] %v428
        $region76: #{tpu_custom_call.1} parent=47 // pred_fallthru
          _
        %s432 = sadd.s32 %s341, 2
        %p433 = scmp.ge.s32.totalorder %s432, 0
        %p434 = scmp.lt.s32.totalorder %s432, 16
        %p435 = pnand %p433, %p434
        %p436 = pneg %p435
        // Predicated region
        $region77: #{tpu_custom_call.1} parent=47 // pred_check
          _
        $region78: #{tpu_custom_call.1} parent=47 // pred_check_branch
          %438 = sbr.rel (%p435) target = $region80
        $region79: #{tpu_custom_call.1} parent=47 // pred_region
          %s439 = smul.u32 %s432, 16
          %s440 = scalar_lea.vmem %s301, %s439 [#allocation4]
          %v441 = vld [vmem:[%s440] sm:$0xff]
          %v442 = vld [vmem:[%s440 + $0x8] sm:$0xff]
          %s443 = scalar_lea.vmem [#allocation2], 96
          %444 = vst [vmem:[%s443 + $0x1] sm:$0xff] %v441
          %445 = vst [vmem:[%s443 + $0x9] sm:$0xff] %v442
        $region80: #{tpu_custom_call.1} parent=47 // pred_fallthru
          _
        %s446 = sadd.s32 %s341, 3
        %p447 = scmp.ge.s32.totalorder %s446, 0
        %p448 = scmp.lt.s32.totalorder %s446, 16
        %p449 = pnand %p447, %p448
        %p450 = pneg %p449
        // Predicated region
        $region81: #{tpu_custom_call.1} parent=47 // pred_check
          _
        $region82: #{tpu_custom_call.1} parent=47 // pred_check_branch
          %452 = sbr.rel (%p449) target = $region84
        $region83: #{tpu_custom_call.1} parent=47 // pred_region
          %s453 = smul.u32 %s446, 16
          %s454 = scalar_lea.vmem %s301, %s453 [#allocation4]
          %v455 = vld [vmem:[%s454] sm:$0xff]
          %v456 = vld [vmem:[%s454 + $0x8] sm:$0xff]
          %s457 = scalar_lea.vmem [#allocation2], 120
          %458 = vst [vmem:[%s457 + $0x1] sm:$0xff] %v455
          %459 = vst [vmem:[%s457 + $0x9] sm:$0xff] %v456
        $region84: #{tpu_custom_call.1} parent=47 // pred_fallthru
          _
        %s460 = sadd.s32 %s341, 4
        %p461 = scmp.ge.s32.totalorder %s460, 0
        %p462 = scmp.lt.s32.totalorder %s460, 16
        %p463 = pnand %p461, %p462
        %p464 = pneg %p463
        // Predicated region
        $region85: #{tpu_custom_call.1} parent=47 // pred_check
          _
        $region86: #{tpu_custom_call.1} parent=47 // pred_check_branch
          %466 = sbr.rel (%p463) target = $region88
        $region87: #{tpu_custom_call.1} parent=47 // pred_region
          %s467 = smul.u32 %s460, 16
          %s468 = scalar_lea.vmem %s301, %s467 [#allocation4]
          %v469 = vld [vmem:[%s468] sm:$0xff]
          %v470 = vld [vmem:[%s468 + $0x8] sm:$0xff]
          %s471 = scalar_lea.vmem [#allocation2], 144
          %472 = vst [vmem:[%s471 + $0x1] sm:$0xff] %v469
          %473 = vst [vmem:[%s471 + $0x9] sm:$0xff] %v470
        $region88: #{tpu_custom_call.1} parent=47 // pred_fallthru
          _
        %s474 = sadd.s32 %s341, 5
        %p475 = scmp.ge.s32.totalorder %s474, 0
        %p476 = scmp.lt.s32.totalorder %s474, 16
        %p477 = pnand %p475, %p476
        %p478 = pneg %p477
        // Predicated region
        $region89: #{tpu_custom_call.1} parent=47 // pred_check
          _
        $region90: #{tpu_custom_call.1} parent=47 // pred_check_branch
          %480 = sbr.rel (%p477) target = $region92
        $region91: #{tpu_custom_call.1} parent=47 // pred_region
          %s481 = smul.u32 %s474, 16
          %s482 = scalar_lea.vmem %s301, %s481 [#allocation4]
          %v483 = vld [vmem:[%s482] sm:$0xff]
          %v484 = vld [vmem:[%s482 + $0x8] sm:$0xff]
          %s485 = scalar_lea.vmem [#allocation2], 168
          %486 = vst [vmem:[%s485 + $0x1] sm:$0xff] %v483
          %487 = vst [vmem:[%s485 + $0x9] sm:$0xff] %v484
        $region92: #{tpu_custom_call.1} parent=47 // pred_fallthru
          _
        %s488 = sadd.s32 %s341, 6
        %p489 = scmp.ge.s32.totalorder %s488, 0
        %p490 = scmp.lt.s32.totalorder %s488, 16
        %p491 = pnand %p489, %p490
        %p492 = pneg %p491
        // Predicated region
        $region93: #{tpu_custom_call.1} parent=47 // pred_check
          _
        $region94: #{tpu_custom_call.1} parent=47 // pred_check_branch
          %494 = sbr.rel (%p491) target = $region96
        $region95: #{tpu_custom_call.1} parent=47 // pred_region
          %s495 = smul.u32 %s488, 16
          %s496 = scalar_lea.vmem %s301, %s495 [#allocation4]
          %v497 = vld [vmem:[%s496] sm:$0xff]
          %v498 = vld [vmem:[%s496 + $0x8] sm:$0xff]
          %s499 = scalar_lea.vmem [#allocation2], 192
          %500 = vst [vmem:[%s499 + $0x1] sm:$0xff] %v497
          %501 = vst [vmem:[%s499 + $0x9] sm:$0xff] %v498
        $region96: #{tpu_custom_call.1} parent=47 // pred_fallthru
          _
        %s502 = sadd.s32 %s341, 7
        %p503 = scmp.ge.s32.totalorder %s502, 0
        %p504 = scmp.lt.s32.totalorder %s502, 16
        %p505 = pnand %p503, %p504
        %p506 = pneg %p505
        // Predicated region
        $region97: #{tpu_custom_call.1} parent=47 // pred_check
          _
        $region98: #{tpu_custom_call.1} parent=47 // pred_check_branch
          %508 = sbr.rel (%p505) target = $region100
        $region99: #{tpu_custom_call.1} parent=47 // pred_region
          %s509 = smul.u32 %s502, 16
          %s510 = scalar_lea.vmem %s301, %s509 [#allocation4]
          %v511 = vld [vmem:[%s510] sm:$0xff]
          %v512 = vld [vmem:[%s510 + $0x8] sm:$0xff]
          %s513 = scalar_lea.vmem [#allocation2], 216
          %514 = vst [vmem:[%s513 + $0x1] sm:$0xff] %v511
          %515 = vst [vmem:[%s513 + $0x9] sm:$0xff] %v512
        $region100: #{tpu_custom_call.1} parent=47 // pred_fallthru
          _
        %s516 = sadd.s32 %s341, 8
        %p517 = scmp.ge.s32.totalorder %s516, 0
        %p518 = scmp.lt.s32.totalorder %s516, 16
        %p519 = pnand %p517, %p518
        %p520 = pneg %p519
        // Predicated region
        $region101: #{tpu_custom_call.1} parent=47 // pred_check
          _
        $region102: #{tpu_custom_call.1} parent=47 // pred_check_branch
          %522 = sbr.rel (%p519) target = $region104
        $region103: #{tpu_custom_call.1} parent=47 // pred_region
          %s523 = smul.u32 %s516, 16
          %s524 = scalar_lea.vmem %s301, %s523 [#allocation4]
          %v525 = vld [vmem:[%s524] sm:$0xff]
          %v526 = vld [vmem:[%s524 + $0x8] sm:$0xff]
          %s527 = scalar_lea.vmem [#allocation2], 240
          %528 = vst [vmem:[%s527 + $0x1] sm:$0xff] %v525
          %529 = vst [vmem:[%s527 + $0x9] sm:$0xff] %v526
        $region104: #{tpu_custom_call.1} parent=47 // pred_fallthru
          _
        %s530 = sadd.s32 %s341, 9
        %p531 = scmp.ge.s32.totalorder %s530, 0
        %p532 = scmp.lt.s32.totalorder %s530, 16
        %p533 = pnand %p531, %p532
        %p534 = pneg %p533
        // Predicated region
        $region105: #{tpu_custom_call.1} parent=47 // pred_check
          _
        $region106: #{tpu_custom_call.1} parent=47 // pred_check_branch
          %536 = sbr.rel (%p533) target = $region108
        $region107: #{tpu_custom_call.1} parent=47 // pred_region
          %s537 = smul.u32 %s530, 16
          %s538 = scalar_lea.vmem %s301, %s537 [#allocation4]
          %v539 = vld [vmem:[%s538] sm:$0xff]
          %v540 = vld [vmem:[%s538 + $0x8] sm:$0xff]
          %s541 = scalar_lea.vmem [#allocation2], 264
          %542 = vst [vmem:[%s541 + $0x1] sm:$0xff] %v539
          %543 = vst [vmem:[%s541 + $0x9] sm:$0xff] %v540
        $region108: #{tpu_custom_call.1} parent=47 // pred_fallthru
          _
        %v544 = vld [vmem:[#allocation2] sm:$0xff]
        %v545 = vld [vmem:[#allocation2 + $0x8] sm:$0xff]
        %v546 = vld [vmem:[#allocation2 + $0x18] sm:$0xff]
        %v547 = vld [vmem:[#allocation2 + $0x20] sm:$0xff]
        %v548 = vld [vmem:[#allocation2 + $0x30] sm:$0xff]
        %v549 = vld [vmem:[#allocation2 + $0x38] sm:$0xff]
        %v550 = vld [vmem:[#allocation2 + $0x48] sm:$0xff]
        %v551 = vld [vmem:[#allocation2 + $0x50] sm:$0xff]
        %v552 = vld [vmem:[#allocation2 + $0x60] sm:$0xff]
        %v553 = vld [vmem:[#allocation2 + $0x68] sm:$0xff]
        %v554 = vld [vmem:[#allocation2 + $0x78] sm:$0xff]
        %v555 = vld [vmem:[#allocation2 + $0x80] sm:$0xff]
        %v556 = vld [vmem:[#allocation2 + $0x90] sm:$0xff]
        %v557 = vld [vmem:[#allocation2 + $0x98] sm:$0xff]
        %v558 = vld [vmem:[#allocation2 + $0xa8] sm:$0xff]
        %v559 = vld [vmem:[#allocation2 + $0xb0] sm:$0xff]
        %v560 = vld [vmem:[#allocation2 + $0xc0] sm:$0xff]
        %v561 = vld [vmem:[#allocation2 + $0xc8] sm:$0xff]
        %v562 = vld [vmem:[#allocation2 + $0xd8] sm:$0xff]
        %v563 = vld [vmem:[#allocation2 + $0xe0] sm:$0xff]
        %v564 = vld [vmem:[#allocation2 + $0xf0] sm:$0xff]
        %v565 = vld [vmem:[#allocation2 + $0xf8] sm:$0xff]
        %v566 = vld [vmem:[#allocation2 + $0x108] sm:$0xff]
        %v567 = vld [vmem:[#allocation2 + $0x110] sm:$0xff]
        %v568 = vld [vmem:[#allocation2 + $0x1] sm:$0xff]
        %v569 = vld [vmem:[#allocation2 + $0x9] sm:$0xff]
        %v570 = vld [vmem:[#allocation2 + $0x19] sm:$0xff]
        %v571 = vld [vmem:[#allocation2 + $0x21] sm:$0xff]
        %v572 = vld [vmem:[#allocation2 + $0x31] sm:$0xff]
        %v573 = vld [vmem:[#allocation2 + $0x39] sm:$0xff]
        %v574 = vld [vmem:[#allocation2 + $0x49] sm:$0xff]
        %v575 = vld [vmem:[#allocation2 + $0x51] sm:$0xff]
        %v576 = vld [vmem:[#allocation2 + $0x61] sm:$0xff]
        %v577 = vld [vmem:[#allocation2 + $0x69] sm:$0xff]
        %v578 = vld [vmem:[#allocation2 + $0x79] sm:$0xff]
        %v579 = vld [vmem:[#allocation2 + $0x81] sm:$0xff]
        %v580 = vld [vmem:[#allocation2 + $0x91] sm:$0xff]
        %v581 = vld [vmem:[#allocation2 + $0x99] sm:$0xff]
        %v582 = vld [vmem:[#allocation2 + $0xa9] sm:$0xff]
        %v583 = vld [vmem:[#allocation2 + $0xb1] sm:$0xff]
        %v584 = vld [vmem:[#allocation2 + $0xc1] sm:$0xff]
        %v585 = vld [vmem:[#allocation2 + $0xc9] sm:$0xff]
        %v586 = vld [vmem:[#allocation2 + $0xd9] sm:$0xff]
        %v587 = vld [vmem:[#allocation2 + $0xe1] sm:$0xff]
        %v588 = vld [vmem:[#allocation2 + $0xf1] sm:$0xff]
        %v589 = vld [vmem:[#allocation2 + $0xf9] sm:$0xff]
        %v590 = vld [vmem:[#allocation2 + $0x109] sm:$0xff]
        %v591 = vld [vmem:[#allocation2 + $0x111] sm:$0xff]
        %v592 = vld [vmem:[#allocation2 + $0x2] sm:$0xff]
        %v593 = vld [vmem:[#allocation2 + $0xa] sm:$0xff]
        %v594 = vld [vmem:[#allocation2 + $0x1a] sm:$0xff]
        %v595 = vld [vmem:[#allocation2 + $0x22] sm:$0xff]
        %v596 = vld [vmem:[#allocation2 + $0x32] sm:$0xff]
        %v597 = vld [vmem:[#allocation2 + $0x3a] sm:$0xff]
        %v598 = vld [vmem:[#allocation2 + $0x4a] sm:$0xff]
        %v599 = vld [vmem:[#allocation2 + $0x52] sm:$0xff]
        %v600 = vld [vmem:[#allocation2 + $0x62] sm:$0xff]
        %v601 = vld [vmem:[#allocation2 + $0x6a] sm:$0xff]
        %v602 = vld [vmem:[#allocation2 + $0x7a] sm:$0xff]
        %v603 = vld [vmem:[#allocation2 + $0x82] sm:$0xff]
        %v604 = vld [vmem:[#allocation2 + $0x92] sm:$0xff]
        %v605 = vld [vmem:[#allocation2 + $0x9a] sm:$0xff]
        %v606 = vld [vmem:[#allocation2 + $0xaa] sm:$0xff]
        %v607 = vld [vmem:[#allocation2 + $0xb2] sm:$0xff]
        %v608 = vld [vmem:[#allocation2 + $0xc2] sm:$0xff]
        %v609 = vld [vmem:[#allocation2 + $0xca] sm:$0xff]
        %v610 = vld [vmem:[#allocation2 + $0xda] sm:$0xff]
        %v611 = vld [vmem:[#allocation2 + $0xe2] sm:$0xff]
        %v612 = vld [vmem:[#allocation2 + $0xf2] sm:$0xff]
        %v613 = vld [vmem:[#allocation2 + $0xfa] sm:$0xff]
        %v614 = vld [vmem:[#allocation2 + $0x10a] sm:$0xff]
        %v615 = vld [vmem:[#allocation2 + $0x112] sm:$0xff]
        %v616 = vld [vmem:[#allocation7] sm:$0xff]
        %v617 = vld [vmem:[#allocation7 + $0x8] sm:$0xff]
        %v618 = vld [vmem:[#allocation7 + $0x10] sm:$0xff]
        %v619 = vld [vmem:[#allocation7 + $0x18] sm:$0xff]
        %v620 = vld [vmem:[#allocation7 + $0x20] sm:$0xff]
        %v621 = vld [vmem:[#allocation7 + $0x28] sm:$0xff]
        %v622 = vld [vmem:[#allocation7 + $0x30] sm:$0xff]
        %v623 = vld [vmem:[#allocation7 + $0x38] sm:$0xff]
        %v624 = vld [vmem:[#allocation7 + $0x40] sm:$0xff]
        %v625 = vld [vmem:[#allocation7 + $0x48] sm:$0xff]
        %v626 = vld [vmem:[#allocation7 + $0x50] sm:$0xff]
        %v627 = vld [vmem:[#allocation7 + $0x58] sm:$0xff]
        %v628 = vld [vmem:[#allocation7 + $0x60] sm:$0xff]
        %v629 = vld [vmem:[#allocation7 + $0x68] sm:$0xff]
        %v630 = vld [vmem:[#allocation7 + $0x70] sm:$0xff]
        %v631 = vld [vmem:[#allocation7 + $0x78] sm:$0xff]
        %v632 = vld [vmem:[#allocation7 + $0x80] sm:$0xff]
        %v633 = vld [vmem:[#allocation7 + $0x88] sm:$0xff]
        %v634 = vld [vmem:[#allocation7 + $0x90] sm:$0xff]
        %v635 = vld [vmem:[#allocation7 + $0x98] sm:$0xff]
        %v636 = vld [vmem:[#allocation7 + $0xa0] sm:$0xff]
        %v637 = vld [vmem:[#allocation7 + $0xa8] sm:$0xff]
        %v638 = vld [vmem:[#allocation7 + $0xb0] sm:$0xff]
        %v639 = vld [vmem:[#allocation7 + $0xb8] sm:$0xff]
        %v640 = vld [vmem:[#allocation7 + $0xc0] sm:$0xff]
        %v641 = vld [vmem:[#allocation7 + $0xc8] sm:$0xff]
        %v642 = vld [vmem:[#allocation7 + $0xd0] sm:$0xff]
        %v643 = vld [vmem:[#allocation7 + $0xd8] sm:$0xff]
        %v644 = vld [vmem:[#allocation7 + $0xe0] sm:$0xff]
        %v645 = vld [vmem:[#allocation7 + $0xe8] sm:$0xff]
        %v646 = vld [vmem:[#allocation7 + $0xf0] sm:$0xff]
        %v647 = vld [vmem:[#allocation7 + $0xf8] sm:$0xff]
        %v648 = vld [vmem:[#allocation7 + $0x100] sm:$0xff]
        %v649 = vld [vmem:[#allocation7 + $0x108] sm:$0xff]
        %v650 = vld [vmem:[#allocation7 + $0x110] sm:$0xff]
        %v651 = vld [vmem:[#allocation7 + $0x118] sm:$0xff]
        %v652 = vld [vmem:[#allocation7 + $0x120] sm:$0xff]
        %v653 = vld [vmem:[#allocation7 + $0x128] sm:$0xff]
        %v654 = vld [vmem:[#allocation7 + $0x130] sm:$0xff]
        %v655 = vld [vmem:[#allocation7 + $0x138] sm:$0xff]
        %v656 = vld [vmem:[#allocation7 + $0x140] sm:$0xff]
        %v657 = vld [vmem:[#allocation7 + $0x148] sm:$0xff]
        %v658 = vld [vmem:[#allocation7 + $0x150] sm:$0xff]
        %v659 = vld [vmem:[#allocation7 + $0x158] sm:$0xff]
        %v660 = vld [vmem:[#allocation7 + $0x160] sm:$0xff]
        %v661 = vld [vmem:[#allocation7 + $0x168] sm:$0xff]
        %v662 = vld [vmem:[#allocation7 + $0x170] sm:$0xff]
        %v663 = vld [vmem:[#allocation7 + $0x178] sm:$0xff]
        %s664 = scalar_lea.vmem [#allocation7], 384
        %v665 = vld [vmem:[%s664] sm:$0xff]
        %v666 = vld [vmem:[%s664 + $0x8] sm:$0xff]
        %v667 = vld [vmem:[%s664 + $0x10] sm:$0xff]
        %v668 = vld [vmem:[%s664 + $0x18] sm:$0xff]
        %v669 = vld [vmem:[%s664 + $0x20] sm:$0xff]
        %v670 = vld [vmem:[%s664 + $0x28] sm:$0xff]
        %v671 = vld [vmem:[%s664 + $0x30] sm:$0xff]
        %v672 = vld [vmem:[%s664 + $0x38] sm:$0xff]
        %v673 = vld [vmem:[%s664 + $0x40] sm:$0xff]
        %v674 = vld [vmem:[%s664 + $0x48] sm:$0xff]
        %v675 = vld [vmem:[%s664 + $0x50] sm:$0xff]
        %v676 = vld [vmem:[%s664 + $0x58] sm:$0xff]
        %v677 = vld [vmem:[%s664 + $0x60] sm:$0xff]
        %v678 = vld [vmem:[%s664 + $0x68] sm:$0xff]
        %v679 = vld [vmem:[%s664 + $0x70] sm:$0xff]
        %v680 = vld [vmem:[%s664 + $0x78] sm:$0xff]
        %v681 = vld [vmem:[%s664 + $0x80] sm:$0xff]
        %v682 = vld [vmem:[%s664 + $0x88] sm:$0xff]
        %v683 = vld [vmem:[%s664 + $0x90] sm:$0xff]
        %v684 = vld [vmem:[%s664 + $0x98] sm:$0xff]
        %v685 = vld [vmem:[%s664 + $0xa0] sm:$0xff]
        %v686 = vld [vmem:[%s664 + $0xa8] sm:$0xff]
        %v687 = vld [vmem:[%s664 + $0xb0] sm:$0xff]
        %v688 = vld [vmem:[%s664 + $0xb8] sm:$0xff]
        %v689 = vld [vmem:[%s664 + $0xc0] sm:$0xff]
        %v690 = vld [vmem:[%s664 + $0xc8] sm:$0xff]
        %v691 = vld [vmem:[%s664 + $0xd0] sm:$0xff]
        %v692 = vld [vmem:[%s664 + $0xd8] sm:$0xff]
        %v693 = vld [vmem:[%s664 + $0xe0] sm:$0xff]
        %v694 = vld [vmem:[%s664 + $0xe8] sm:$0xff]
        %v695 = vld [vmem:[%s664 + $0xf0] sm:$0xff]
        %v696 = vld [vmem:[%s664 + $0xf8] sm:$0xff]
        %v697 = vld [vmem:[%s664 + $0x100] sm:$0xff]
        %v698 = vld [vmem:[%s664 + $0x108] sm:$0xff]
        %v699 = vld [vmem:[%s664 + $0x110] sm:$0xff]
        %v700 = vld [vmem:[%s664 + $0x118] sm:$0xff]
        %v701 = vld [vmem:[%s664 + $0x120] sm:$0xff]
        %v702 = vld [vmem:[%s664 + $0x128] sm:$0xff]
        %v703 = vld [vmem:[%s664 + $0x130] sm:$0xff]
        %v704 = vld [vmem:[%s664 + $0x138] sm:$0xff]
        %v705 = vld [vmem:[%s664 + $0x140] sm:$0xff]
        %v706 = vld [vmem:[%s664 + $0x148] sm:$0xff]
        %v707 = vld [vmem:[%s664 + $0x150] sm:$0xff]
        %v708 = vld [vmem:[%s664 + $0x158] sm:$0xff]
        %v709 = vld [vmem:[%s664 + $0x160] sm:$0xff]
        %v710 = vld [vmem:[%s664 + $0x168] sm:$0xff]
        %v711 = vld [vmem:[%s664 + $0x170] sm:$0xff]
        %v712 = vld [vmem:[%s664 + $0x178] sm:$0xff]
        %713 = vmatprep.subr.mxu0 0.0
        %714 = vmatpush1.msra.mxu0 %v665
        %715 = vmatprep.subr.mxu0 0.0
        %716 = vmatpush1.msra.mxu0 %v666
        %717 = vmatprep.subr.mxu0 0.0
        %718 = vmatpush1.msra.mxu0 %v667
        %719 = vmatprep.subr.mxu0 0.0
        %720 = vmatpush1.msra.mxu0 %v668
        %721 = vmatprep.subr.mxu0 0.0
        %722 = vmatpush1.msra.mxu0 %v669
        %723 = vmatprep.subr.mxu0 0.0
        %724 = vmatpush1.msra.mxu0 %v670
        %725 = vmatprep.subr.mxu0 0.0
        %726 = vmatpush1.msra.mxu0 %v671
        %727 = vmatprep.subr.mxu0 0.0
        %728 = vmatpush1.msra.mxu0 %v672
        %729 = vmatprep.subr.mxu0 0.0
        %730 = vmatpush1.msra.mxu0 %v673
        %731 = vmatprep.subr.mxu0 0.0
        %732 = vmatpush1.msra.mxu0 %v674
        %733 = vmatprep.subr.mxu0 0.0
        %734 = vmatpush1.msra.mxu0 %v675
        %735 = vmatprep.subr.mxu0 0.0
        %736 = vmatpush1.msra.mxu0 %v676
        %737 = vmatprep.subr.mxu0 0.0
        %738 = vmatpush1.msra.mxu0 %v677
        %739 = vmatprep.subr.mxu0 0.0
        %740 = vmatpush1.msra.mxu0 %v678
        %741 = vmatprep.subr.mxu0 0.0
        %742 = vmatpush1.msra.mxu0 %v679
        %743 = vmatprep.subr.mxu0 0.0
        %744 = vmatpush1.msra.mxu0 %v680
        %745 = vmatprep.subr.mxu0 0.0
        %746 = vmatpush1.msra.mxu0 %v681
        %747 = vmatprep.subr.mxu0 0.0
        %748 = vmatpush1.msra.mxu0 %v682
        %749 = vmatprep.subr.mxu0 0.0
        %750 = vmatpush1.msra.mxu0 %v683
        %751 = vmatprep.subr.mxu0 0.0
        %752 = vmatpush1.msra.mxu0 %v684
        %753 = vmatprep.subr.mxu0 0.0
        %754 = vmatpush1.msra.mxu0 %v685
        %755 = vmatprep.subr.mxu0 0.0
        %756 = vmatpush1.msra.mxu0 %v686
        %757 = vmatprep.subr.mxu0 0.0
        %758 = vmatpush1.msra.mxu0 %v687
        %759 = vmatprep.subr.mxu0 0.0
        %760 = vmatpush1.msra.mxu0 %v688
        %761 = vmatprep.subr.mxu0 0.0
        %762 = vmatpush1.msra.mxu0 %v689
        %763 = vmatprep.subr.mxu0 0.0
        %764 = vmatpush1.msra.mxu0 %v690
        %765 = vmatprep.subr.mxu0 0.0
        %766 = vmatpush1.msra.mxu0 %v691
        %767 = vmatprep.subr.mxu0 0.0
        %768 = vmatpush1.msra.mxu0 %v692
        %769 = vmatprep.subr.mxu0 0.0
        %770 = vmatpush1.msra.mxu0 %v693
        %771 = vmatprep.subr.mxu0 0.0
        %772 = vmatpush1.msra.mxu0 %v694
        %773 = vmatprep.subr.mxu0 0.0
        %774 = vmatpush1.msra.mxu0 %v695
        %775 = vmatprep.subr.mxu0 0.0
        %776 = vmatpush1.msra.mxu0 %v696
        %777 = vmatprep.mubr.f32.mxu0 %v570
        %778 = vmatmul.mubr.f32.gmra.mrb[0].mxu0 %v546
        %v779 = vpop.f32.mrb[0].mxu0
        %v780 = vadd.f32 0.0, %v779
        %v781 = vpop.f32.mrb[0].mxu0
        %782 = vmatprep.mubr.f32.mxu0 %v571
        %783 = vmatmul.mubr.f32.gmra.mrb[0].mxu0 %v547
        %v784 = vpop.f32.mrb[0].mxu0
        %v785 = vadd.f32 0.0, %v784
        %v786 = vpop.f32.mrb[0].mxu0
        %787 = vmatprep.mubr.f32.mxu0 %v572
        %788 = vmatmul.mubr.f32.gmra.mrb[0].mxu0 %v548
        %v789 = vpop.f32.mrb[0].mxu0
        %v790 = vadd.f32 0.0, %v789
        %v791 = vpop.f32.mrb[0].mxu0
        %792 = vmatprep.mubr.f32.mxu0 %v573
        %793 = vmatmul.mubr.f32.gmra.mrb[0].mxu0 %v549
        %v794 = vpop.f32.mrb[0].mxu0
        %v795 = vadd.f32 0.0, %v794
        %v796 = vpop.f32.mrb[0].mxu0
        %797 = vmatprep.mubr.f32.mxu0 %v574
        %798 = vmatmul.mubr.f32.gmra.mrb[0].mxu0 %v550
        %v799 = vpop.f32.mrb[0].mxu0
        %v800 = vadd.f32 0.0, %v799
        %v801 = vpop.f32.mrb[0].mxu0
        %802 = vmatprep.mubr.f32.mxu0 %v575
        %803 = vmatmul.mubr.f32.gmra.mrb[0].mxu0 %v551
        %v804 = vpop.f32.mrb[0].mxu0
        %v805 = vadd.f32 0.0, %v804
        %v806 = vpop.f32.mrb[0].mxu0
        %807 = vmatprep.mubr.f32.mxu0 %v576
        %808 = vmatmul.mubr.f32.gmra.mrb[0].mxu0 %v552
        %v809 = vpop.f32.mrb[0].mxu0
        %v810 = vadd.f32 0.0, %v809
        %v811 = vpop.f32.mrb[0].mxu0
        %812 = vmatprep.mubr.f32.mxu0 %v577
        %813 = vmatmul.mubr.f32.gmra.mrb[0].mxu0 %v553
        %v814 = vpop.f32.mrb[0].mxu0
        %v815 = vadd.f32 0.0, %v814
        %v816 = vpop.f32.mrb[0].mxu0
        %817 = vmatprep.mubr.f32.mxu0 %v578
        %818 = vmatmul.mubr.f32.gmra.mrb[0].mxu0 %v554
        %v819 = vpop.f32.mrb[0].mxu0
        %v820 = vadd.f32 0.0, %v819
        %v821 = vpop.f32.mrb[0].mxu0
        %822 = vmatprep.mubr.f32.mxu0 %v579
        %823 = vmatmul.mubr.f32.gmra.mrb[0].mxu0 %v555
        %v824 = vpop.f32.mrb[0].mxu0
        %v825 = vadd.f32 0.0, %v824
        %v826 = vpop.f32.mrb[0].mxu0
        %827 = vmatprep.mubr.f32.mxu0 %v580
        %828 = vmatmul.mubr.f32.gmra.mrb[0].mxu0 %v556
        %v829 = vpop.f32.mrb[0].mxu0
        %v830 = vadd.f32 0.0, %v829
        %v831 = vpop.f32.mrb[0].mxu0
        %832 = vmatprep.mubr.f32.mxu0 %v581
        %833 = vmatmul.mubr.f32.gmra.mrb[0].mxu0 %v557
        %v834 = vpop.f32.mrb[0].mxu0
        %v835 = vadd.f32 0.0, %v834
        %v836 = vpop.f32.mrb[0].mxu0
        %837 = vmatprep.mubr.f32.mxu0 %v582
        %838 = vmatmul.mubr.f32.gmra.mrb[0].mxu0 %v558
        %v839 = vpop.f32.mrb[0].mxu0
        %v840 = vadd.f32 0.0, %v839
        %v841 = vpop.f32.mrb[0].mxu0
        %842 = vmatprep.mubr.f32.mxu0 %v583
        %843 = vmatmul.mubr.f32.gmra.mrb[0].mxu0 %v559
        %v844 = vpop.f32.mrb[0].mxu0
        %v845 = vadd.f32 0.0, %v844
        %v846 = vpop.f32.mrb[0].mxu0
        %847 = vmatprep.mubr.f32.mxu0 %v584
        %848 = vmatmul.mubr.f32.gmra.mrb[0].mxu0 %v560
        %v849 = vpop.f32.mrb[0].mxu0
        %v850 = vadd.f32 0.0, %v849
        %v851 = vpop.f32.mrb[0].mxu0
        %852 = vmatprep.mubr.f32.mxu0 %v585
        %853 = vmatmul.mubr.f32.gmra.mrb[0].mxu0 %v561
        %v854 = vpop.f32.mrb[0].mxu0
        %v855 = vadd.f32 0.0, %v854
        %v856 = vpop.f32.mrb[0].mxu0
        %857 = vmatprep.mubr.f32.mxu0 %v586
        %858 = vmatmul.mubr.f32.gmra.mrb[0].mxu0 %v562
        %v859 = vpop.f32.mrb[0].mxu0
        %v860 = vadd.f32 0.0, %v859
        %v861 = vpop.f32.mrb[0].mxu0
        %862 = vmatprep.mubr.f32.mxu0 %v587
        %863 = vmatmul.mubr.f32.gmra.mrb[0].mxu0 %v563
        %v864 = vpop.f32.mrb[0].mxu0
        %v865 = vadd.f32 0.0, %v864
        %v866 = vpop.f32.mrb[0].mxu0
        %867 = vmatprep.mubr.f32.mxu0 %v588
        %868 = vmatmul.mubr.f32.gmra.mrb[0].mxu0 %v564
        %v869 = vpop.f32.mrb[0].mxu0
        %v870 = vadd.f32 0.0, %v869
        %v871 = vpop.f32.mrb[0].mxu0
        %872 = vmatprep.mubr.f32.mxu0 %v589
        %873 = vmatmul.mubr.f32.gmra.mrb[0].mxu0 %v565
        %v874 = vpop.f32.mrb[0].mxu0
        %v875 = vadd.f32 0.0, %v874
        %v876 = vpop.f32.mrb[0].mxu0
        %877 = vdwg.mxu0
        %878 = vmatprep.subr.mxu0 0.0
        %879 = vmatpush1.msra.mxu0 %v697
        %880 = vmatprep.subr.mxu0 0.0
        %881 = vmatpush1.msra.mxu0 %v698
        %882 = vmatprep.subr.mxu0 0.0
        %883 = vmatpush1.msra.mxu0 %v699
        %884 = vmatprep.subr.mxu0 0.0
        %885 = vmatpush1.msra.mxu0 %v700
        %886 = vmatprep.subr.mxu0 0.0
        %887 = vmatpush1.msra.mxu0 %v701
        %888 = vmatprep.subr.mxu0 0.0
        %889 = vmatpush1.msra.mxu0 %v702
        %890 = vmatprep.subr.mxu0 0.0
        %891 = vmatpush1.msra.mxu0 %v703
        %892 = vmatprep.subr.mxu0 0.0
        %893 = vmatpush1.msra.mxu0 %v704
        %894 = vmatprep.subr.mxu0 0.0
        %895 = vmatpush1.msra.mxu0 %v705
        %896 = vmatprep.subr.mxu0 0.0
        %897 = vmatpush1.msra.mxu0 %v706
        %898 = vmatprep.subr.mxu0 0.0
        %899 = vmatpush1.msra.mxu0 %v707
        %900 = vmatprep.subr.mxu0 0.0
        %901 = vmatpush1.msra.mxu0 %v708
        %902 = vmatprep.subr.mxu0 0.0
        %903 = vmatpush1.msra.mxu0 %v709
        %904 = vmatprep.subr.mxu0 0.0
        %905 = vmatpush1.msra.mxu0 %v710
        %906 = vmatprep.subr.mxu0 0.0
        %907 = vmatpush1.msra.mxu0 %v711
        %908 = vmatprep.subr.mxu0 0.0
        %909 = vmatpush1.msra.mxu0 %v712
        %910 = vmatprep.subr.mxu0 0.0
        %911 = vmatpush1.msra.mxu0 0.0
        %912 = vmatprep.subr.mxu0 0.0
        %913 = vmatpush1.msra.mxu0 0.0
        %914 = vmatprep.subr.mxu0 0.0
        %915 = vmatpush1.msra.mxu0 0.0
        %916 = vmatprep.subr.mxu0 0.0
        %917 = vmatpush1.msra.mxu0 0.0
        %918 = vmatprep.subr.mxu0 0.0
        %919 = vmatpush1.msra.mxu0 0.0
        %920 = vmatprep.subr.mxu0 0.0
        %921 = vmatpush1.msra.mxu0 0.0
        %922 = vmatprep.subr.mxu0 0.0
        %923 = vmatpush1.msra.mxu0 0.0
        %924 = vmatprep.subr.mxu0 0.0
        %925 = vmatpush1.msra.mxu0 0.0
        %926 = vmatprep.subr.mxu0 0.0
        %927 = vmatpush1.msra.mxu0 0.0
        %928 = vmatprep.subr.mxu0 0.0
        %929 = vmatpush1.msra.mxu0 0.0
        %930 = vmatprep.subr.mxu0 0.0
        %931 = vmatpush1.msra.mxu0 0.0
        %932 = vmatprep.subr.mxu0 0.0
        %933 = vmatpush1.msra.mxu0 0.0
        %934 = vmatprep.subr.mxu0 0.0
        %935 = vmatpush1.msra.mxu0 0.0
        %936 = vmatprep.subr.mxu0 0.0
        %937 = vmatpush1.msra.mxu0 0.0
        %938 = vmatprep.subr.mxu0 0.0
        %939 = vmatpush1.msra.mxu0 0.0
        %940 = vmatprep.subr.mxu0 0.0
        %941 = vmatpush1.msra.mxu0 0.0
        %942 = vmatprep.mubr.f32.mxu0 0.0
        %943 = vmatmul.mubr.f32.gmra.mrb[0].mxu0 %v594
        %v944 = vpop.f32.mrb[0].mxu0
        %v945 = vadd.f32 %v780, %v944
        %v946 = vpop.f32.mrb[0].mxu0
        %947 = vmatprep.mubr.f32.mxu0 0.0
        %948 = vmatmul.mubr.f32.gmra.mrb[0].mxu0 %v595
        %v949 = vpop.f32.mrb[0].mxu0
        %v950 = vadd.f32 %v785, %v949
        %v951 = vpop.f32.mrb[0].mxu0
        %952 = vmatprep.mubr.f32.mxu0 0.0
        %953 = vmatmul.mubr.f32.gmra.mrb[0].mxu0 %v596
        %v954 = vpop.f32.mrb[0].mxu0
        %v955 = vadd.f32 %v790, %v954
        %v956 = vpop.f32.mrb[0].mxu0
        %957 = vmatprep.mubr.f32.mxu0 0.0
        %958 = vmatmul.mubr.f32.gmra.mrb[0].mxu0 %v597
        %v959 = vpop.f32.mrb[0].mxu0
        %v960 = vadd.f32 %v795, %v959
        %v961 = vpop.f32.mrb[0].mxu0
        %962 = vmatprep.mubr.f32.mxu0 0.0
        %963 = vmatmul.mubr.f32.gmra.mrb[0].mxu0 %v598
        %v964 = vpop.f32.mrb[0].mxu0
        %v965 = vadd.f32 %v800, %v964
        %v966 = vpop.f32.mrb[0].mxu0
        %967 = vmatprep.mubr.f32.mxu0 0.0
        %968 = vmatmul.mubr.f32.gmra.mrb[0].mxu0 %v599
        %v969 = vpop.f32.mrb[0].mxu0
        %v970 = vadd.f32 %v805, %v969
        %v971 = vpop.f32.mrb[0].mxu0
        %972 = vmatprep.mubr.f32.mxu0 0.0
        %973 = vmatmul.mubr.f32.gmra.mrb[0].mxu0 %v600
        %v974 = vpop.f32.mrb[0].mxu0
        %v975 = vadd.f32 %v810, %v974
        %v976 = vpop.f32.mrb[0].mxu0
        %977 = vmatprep.mubr.f32.mxu0 0.0
        %978 = vmatmul.mubr.f32.gmra.mrb[0].mxu0 %v601
        %v979 = vpop.f32.mrb[0].mxu0
        %v980 = vadd.f32 %v815, %v979
        %v981 = vpop.f32.mrb[0].mxu0
        %982 = vmatprep.mubr.f32.mxu0 0.0
        %983 = vmatmul.mubr.f32.gmra.mrb[0].mxu0 %v602
        %v984 = vpop.f32.mrb[0].mxu0
        %v985 = vadd.f32 %v820, %v984
        %v986 = vpop.f32.mrb[0].mxu0
        %987 = vmatprep.mubr.f32.mxu0 0.0
        %988 = vmatmul.mubr.f32.gmra.mrb[0].mxu0 %v603
        %v989 = vpop.f32.mrb[0].mxu0
        %v990 = vadd.f32 %v825, %v989
        %v991 = vpop.f32.mrb[0].mxu0
        %992 = vmatprep.mubr.f32.mxu0 0.0
        %993 = vmatmul.mubr.f32.gmra.mrb[0].mxu0 %v604
        %v994 = vpop.f32.mrb[0].mxu0
        %v995 = vadd.f32 %v830, %v994
        %v996 = vpop.f32.mrb[0].mxu0
        %997 = vmatprep.mubr.f32.mxu0 0.0
        %998 = vmatmul.mubr.f32.gmra.mrb[0].mxu0 %v605
        %v999 = vpop.f32.mrb[0].mxu0
        %v1000 = vadd.f32 %v835, %v999
        %v1001 = vpop.f32.mrb[0].mxu0
        %1002 = vmatprep.mubr.f32.mxu0 0.0
        %1003 = vmatmul.mubr.f32.gmra.mrb[0].mxu0 %v606
        %v1004 = vpop.f32.mrb[0].mxu0
        %v1005 = vadd.f32 %v840, %v1004
        %v1006 = vpop.f32.mrb[0].mxu0
        %1007 = vmatprep.mubr.f32.mxu0 0.0
        %1008 = vmatmul.mubr.f32.gmra.mrb[0].mxu0 %v607
        %v1009 = vpop.f32.mrb[0].mxu0
        %v1010 = vadd.f32 %v845, %v1009
        %v1011 = vpop.f32.mrb[0].mxu0
        %1012 = vmatprep.mubr.f32.mxu0 0.0
        %1013 = vmatmul.mubr.f32.gmra.mrb[0].mxu0 %v608
        %v1014 = vpop.f32.mrb[0].mxu0
        %v1015 = vadd.f32 %v850, %v1014
        %v1016 = vpop.f32.mrb[0].mxu0
        %1017 = vmatprep.mubr.f32.mxu0 0.0
        %1018 = vmatmul.mubr.f32.gmra.mrb[0].mxu0 %v609
        %v1019 = vpop.f32.mrb[0].mxu0
        %v1020 = vadd.f32 %v855, %v1019
        %v1021 = vpop.f32.mrb[0].mxu0
        %1022 = vmatprep.mubr.f32.mxu0 0.0
        %1023 = vmatmul.mubr.f32.gmra.mrb[0].mxu0 %v610
        %v1024 = vpop.f32.mrb[0].mxu0
        %v1025 = vadd.f32 %v860, %v1024
        %v1026 = vpop.f32.mrb[0].mxu0
        %1027 = vmatprep.mubr.f32.mxu0 0.0
        %1028 = vmatmul.mubr.f32.gmra.mrb[0].mxu0 %v611
        %v1029 = vpop.f32.mrb[0].mxu0
        %v1030 = vadd.f32 %v865, %v1029
        %v1031 = vpop.f32.mrb[0].mxu0
        %1032 = vmatprep.mubr.f32.mxu0 0.0
        %1033 = vmatmul.mubr.f32.gmra.mrb[0].mxu0 %v612
        %v1034 = vpop.f32.mrb[0].mxu0
        %v1035 = vadd.f32 %v870, %v1034
        %v1036 = vpop.f32.mrb[0].mxu0
        %1037 = vmatprep.mubr.f32.mxu0 0.0
        %1038 = vmatmul.mubr.f32.gmra.mrb[0].mxu0 %v613
        %v1039 = vpop.f32.mrb[0].mxu0
        %v1040 = vadd.f32 %v875, %v1039
        %v1041 = vpop.f32.mrb[0].mxu0
        %1042 = vdwg.mxu0
        %1043 = vmatprep.subr.mxu0 0.0
        %1044 = vmatpush1.msra.mxu0 %v616
        %1045 = vmatprep.subr.mxu0 0.0
        %1046 = vmatpush1.msra.mxu0 %v617
        %1047 = vmatprep.subr.mxu0 0.0
        %1048 = vmatpush1.msra.mxu0 %v618
        %1049 = vmatprep.subr.mxu0 0.0
        %1050 = vmatpush1.msra.mxu0 %v619
        %1051 = vmatprep.subr.mxu0 0.0
        %1052 = vmatpush1.msra.mxu0 %v620
        %1053 = vmatprep.subr.mxu0 0.0
        %1054 = vmatpush1.msra.mxu0 %v621
        %1055 = vmatprep.subr.mxu0 0.0
        %1056 = vmatpush1.msra.mxu0 %v622
        %1057 = vmatprep.subr.mxu0 0.0
        %1058 = vmatpush1.msra.mxu0 %v623
        %1059 = vmatprep.subr.mxu0 0.0
        %1060 = vmatpush1.msra.mxu0 %v624
        %1061 = vmatprep.subr.mxu0 0.0
        %1062 = vmatpush1.msra.mxu0 %v625
        %1063 = vmatprep.subr.mxu0 0.0
        %1064 = vmatpush1.msra.mxu0 %v626
        %1065 = vmatprep.subr.mxu0 0.0
        %1066 = vmatpush1.msra.mxu0 %v627
        %1067 = vmatprep.subr.mxu0 0.0
        %1068 = vmatpush1.msra.mxu0 %v628
        %1069 = vmatprep.subr.mxu0 0.0
        %1070 = vmatpush1.msra.mxu0 %v629
        %1071 = vmatprep.subr.mxu0 0.0
        %1072 = vmatpush1.msra.mxu0 %v630
        %1073 = vmatprep.subr.mxu0 0.0
        %1074 = vmatpush1.msra.mxu0 %v631
        %1075 = vmatprep.subr.mxu0 0.0
        %1076 = vmatpush1.msra.mxu0 %v632
        %1077 = vmatprep.subr.mxu0 0.0
        %1078 = vmatpush1.msra.mxu0 %v633
        %1079 = vmatprep.subr.mxu0 0.0
        %1080 = vmatpush1.msra.mxu0 %v634
        %1081 = vmatprep.subr.mxu0 0.0
        %1082 = vmatpush1.msra.mxu0 %v635
        %1083 = vmatprep.subr.mxu0 0.0
        %1084 = vmatpush1.msra.mxu0 %v636
        %1085 = vmatprep.subr.mxu0 0.0
        %1086 = vmatpush1.msra.mxu0 %v637
        %1087 = vmatprep.subr.mxu0 0.0
        %1088 = vmatpush1.msra.mxu0 %v638
        %1089 = vmatprep.subr.mxu0 0.0
        %1090 = vmatpush1.msra.mxu0 %v639
        %1091 = vmatprep.subr.mxu0 0.0
        %1092 = vmatpush1.msra.mxu0 %v640
        %1093 = vmatprep.subr.mxu0 0.0
        %1094 = vmatpush1.msra.mxu0 %v641
        %1095 = vmatprep.subr.mxu0 0.0
        %1096 = vmatpush1.msra.mxu0 %v642
        %1097 = vmatprep.subr.mxu0 0.0
        %1098 = vmatpush1.msra.mxu0 %v643
        %1099 = vmatprep.subr.mxu0 0.0
        %1100 = vmatpush1.msra.mxu0 %v644
        %1101 = vmatprep.subr.mxu0 0.0
        %1102 = vmatpush1.msra.mxu0 %v645
        %1103 = vmatprep.subr.mxu0 0.0
        %1104 = vmatpush1.msra.mxu0 %v646
        %1105 = vmatprep.subr.mxu0 0.0
        %1106 = vmatpush1.msra.mxu0 %v647
        %1107 = vmatprep.mubr.f32.mxu0 %v568
        %1108 = vmatmul.mubr.f32.gmra.mrb[0].mxu0 %v544
        %v1109 = vpop.f32.mrb[0].mxu0
        %v1110 = vadd.f32 %v945, %v1109
        %v1111 = vpop.f32.mrb[0].mxu0
        %1112 = vmatprep.mubr.f32.mxu0 %v569
        %1113 = vmatmul.mubr.f32.gmra.mrb[0].mxu0 %v545
        %v1114 = vpop.f32.mrb[0].mxu0
        %v1115 = vadd.f32 %v950, %v1114
        %v1116 = vpop.f32.mrb[0].mxu0
        %1117 = vmatprep.mubr.f32.mxu0 %v570
        %1118 = vmatmul.mubr.f32.gmra.mrb[0].mxu0 %v546
        %v1119 = vpop.f32.mrb[0].mxu0
        %v1120 = vadd.f32 %v955, %v1119
        %v1121 = vpop.f32.mrb[0].mxu0
        %1122 = vmatprep.mubr.f32.mxu0 %v571
        %1123 = vmatmul.mubr.f32.gmra.mrb[0].mxu0 %v547
        %v1124 = vpop.f32.mrb[0].mxu0
        %v1125 = vadd.f32 %v960, %v1124
        %v1126 = vpop.f32.mrb[0].mxu0
        %1127 = vmatprep.mubr.f32.mxu0 %v572
        %1128 = vmatmul.mubr.f32.gmra.mrb[0].mxu0 %v548
        %v1129 = vpop.f32.mrb[0].mxu0
        %v1130 = vadd.f32 %v965, %v1129
        %v1131 = vpop.f32.mrb[0].mxu0
        %1132 = vmatprep.mubr.f32.mxu0 %v573
        %1133 = vmatmul.mubr.f32.gmra.mrb[0].mxu0 %v549
        %v1134 = vpop.f32.mrb[0].mxu0
        %v1135 = vadd.f32 %v970, %v1134
        %v1136 = vpop.f32.mrb[0].mxu0
        %1137 = vmatprep.mubr.f32.mxu0 %v574
        %1138 = vmatmul.mubr.f32.gmra.mrb[0].mxu0 %v550
        %v1139 = vpop.f32.mrb[0].mxu0
        %v1140 = vadd.f32 %v975, %v1139
        %v1141 = vpop.f32.mrb[0].mxu0
        %1142 = vmatprep.mubr.f32.mxu0 %v575
        %1143 = vmatmul.mubr.f32.gmra.mrb[0].mxu0 %v551
        %v1144 = vpop.f32.mrb[0].mxu0
        %v1145 = vadd.f32 %v980, %v1144
        %v1146 = vpop.f32.mrb[0].mxu0
        %1147 = vmatprep.mubr.f32.mxu0 %v576
        %1148 = vmatmul.mubr.f32.gmra.mrb[0].mxu0 %v552
        %v1149 = vpop.f32.mrb[0].mxu0
        %v1150 = vadd.f32 %v985, %v1149
        %v1151 = vpop.f32.mrb[0].mxu0
        %1152 = vmatprep.mubr.f32.mxu0 %v577
        %1153 = vmatmul.mubr.f32.gmra.mrb[0].mxu0 %v553
        %v1154 = vpop.f32.mrb[0].mxu0
        %v1155 = vadd.f32 %v990, %v1154
        %v1156 = vpop.f32.mrb[0].mxu0
        %1157 = vmatprep.mubr.f32.mxu0 %v578
        %1158 = vmatmul.mubr.f32.gmra.mrb[0].mxu0 %v554
        %v1159 = vpop.f32.mrb[0].mxu0
        %v1160 = vadd.f32 %v995, %v1159
        %v1161 = vpop.f32.mrb[0].mxu0
        %1162 = vmatprep.mubr.f32.mxu0 %v579
        %1163 = vmatmul.mubr.f32.gmra.mrb[0].mxu0 %v555
        %v1164 = vpop.f32.mrb[0].mxu0
        %v1165 = vadd.f32 %v1000, %v1164
        %v1166 = vpop.f32.mrb[0].mxu0
        %1167 = vmatprep.mubr.f32.mxu0 %v580
        %1168 = vmatmul.mubr.f32.gmra.mrb[0].mxu0 %v556
        %v1169 = vpop.f32.mrb[0].mxu0
        %v1170 = vadd.f32 %v1005, %v1169
        %v1171 = vpop.f32.mrb[0].mxu0
        %1172 = vmatprep.mubr.f32.mxu0 %v581
        %1173 = vmatmul.mubr.f32.gmra.mrb[0].mxu0 %v557
        %v1174 = vpop.f32.mrb[0].mxu0
        %v1175 = vadd.f32 %v1010, %v1174
        %v1176 = vpop.f32.mrb[0].mxu0
        %1177 = vmatprep.mubr.f32.mxu0 %v582
        %1178 = vmatmul.mubr.f32.gmra.mrb[0].mxu0 %v558
        %v1179 = vpop.f32.mrb[0].mxu0
        %v1180 = vadd.f32 %v1015, %v1179
        %v1181 = vpop.f32.mrb[0].mxu0
        %1182 = vmatprep.mubr.f32.mxu0 %v583
        %1183 = vmatmul.mubr.f32.gmra.mrb[0].mxu0 %v559
        %v1184 = vpop.f32.mrb[0].mxu0
        %v1185 = vadd.f32 %v1020, %v1184
        %v1186 = vpop.f32.mrb[0].mxu0
        %1187 = vmatprep.mubr.f32.mxu0 %v584
        %1188 = vmatmul.mubr.f32.gmra.mrb[0].mxu0 %v560
        %v1189 = vpop.f32.mrb[0].mxu0
        %v1190 = vadd.f32 %v1025, %v1189
        %v1191 = vpop.f32.mrb[0].mxu0
        %1192 = vmatprep.mubr.f32.mxu0 %v585
        %1193 = vmatmul.mubr.f32.gmra.mrb[0].mxu0 %v561
        %v1194 = vpop.f32.mrb[0].mxu0
        %v1195 = vadd.f32 %v1030, %v1194
        %v1196 = vpop.f32.mrb[0].mxu0
        %1197 = vmatprep.mubr.f32.mxu0 %v586
        %1198 = vmatmul.mubr.f32.gmra.mrb[0].mxu0 %v562
        %v1199 = vpop.f32.mrb[0].mxu0
        %v1200 = vadd.f32 %v1035, %v1199
        %v1201 = vpop.f32.mrb[0].mxu0
        %1202 = vmatprep.mubr.f32.mxu0 %v587
        %1203 = vmatmul.mubr.f32.gmra.mrb[0].mxu0 %v563
        %v1204 = vpop.f32.mrb[0].mxu0
        %v1205 = vadd.f32 %v1040, %v1204
        %v1206 = vpop.f32.mrb[0].mxu0
        %1207 = vdwg.mxu0
        %1208 = vmatprep.subr.mxu0 0.0
        %1209 = vmatpush1.msra.mxu0 %v648
        %1210 = vmatprep.subr.mxu0 0.0
        %1211 = vmatpush1.msra.mxu0 %v649
        %1212 = vmatprep.subr.mxu0 0.0
        %1213 = vmatpush1.msra.mxu0 %v650
        %1214 = vmatprep.subr.mxu0 0.0
        %1215 = vmatpush1.msra.mxu0 %v651
        %1216 = vmatprep.subr.mxu0 0.0
        %1217 = vmatpush1.msra.mxu0 %v652
        %1218 = vmatprep.subr.mxu0 0.0
        %1219 = vmatpush1.msra.mxu0 %v653
        %1220 = vmatprep.subr.mxu0 0.0
        %1221 = vmatpush1.msra.mxu0 %v654
        %1222 = vmatprep.subr.mxu0 0.0
        %1223 = vmatpush1.msra.mxu0 %v655
        %1224 = vmatprep.subr.mxu0 0.0
        %1225 = vmatpush1.msra.mxu0 %v656
        %1226 = vmatprep.subr.mxu0 0.0
        %1227 = vmatpush1.msra.mxu0 %v657
        %1228 = vmatprep.subr.mxu0 0.0
        %1229 = vmatpush1.msra.mxu0 %v658
        %1230 = vmatprep.subr.mxu0 0.0
        %1231 = vmatpush1.msra.mxu0 %v659
        %1232 = vmatprep.subr.mxu0 0.0
        %1233 = vmatpush1.msra.mxu0 %v660
        %1234 = vmatprep.subr.mxu0 0.0
        %1235 = vmatpush1.msra.mxu0 %v661
        %1236 = vmatprep.subr.mxu0 0.0
        %1237 = vmatpush1.msra.mxu0 %v662
        %1238 = vmatprep.subr.mxu0 0.0
        %1239 = vmatpush1.msra.mxu0 %v663
        %1240 = vmatprep.subr.mxu0 0.0
        %1241 = vmatpush1.msra.mxu0 0.0
        %1242 = vmatprep.subr.mxu0 0.0
        %1243 = vmatpush1.msra.mxu0 0.0
        %1244 = vmatprep.subr.mxu0 0.0
        %1245 = vmatpush1.msra.mxu0 0.0
        %1246 = vmatprep.subr.mxu0 0.0
        %1247 = vmatpush1.msra.mxu0 0.0
        %1248 = vmatprep.subr.mxu0 0.0
        %1249 = vmatpush1.msra.mxu0 0.0
        %1250 = vmatprep.subr.mxu0 0.0
        %1251 = vmatpush1.msra.mxu0 0.0
        %1252 = vmatprep.subr.mxu0 0.0
        %1253 = vmatpush1.msra.mxu0 0.0
        %1254 = vmatprep.subr.mxu0 0.0
        %1255 = vmatpush1.msra.mxu0 0.0
        %1256 = vmatprep.subr.mxu0 0.0
        %1257 = vmatpush1.msra.mxu0 0.0
        %1258 = vmatprep.subr.mxu0 0.0
        %1259 = vmatpush1.msra.mxu0 0.0
        %1260 = vmatprep.subr.mxu0 0.0
        %1261 = vmatpush1.msra.mxu0 0.0
        %1262 = vmatprep.subr.mxu0 0.0
        %1263 = vmatpush1.msra.mxu0 0.0
        %1264 = vmatprep.subr.mxu0 0.0
        %1265 = vmatpush1.msra.mxu0 0.0
        %1266 = vmatprep.subr.mxu0 0.0
        %1267 = vmatpush1.msra.mxu0 0.0
        %1268 = vmatprep.subr.mxu0 0.0
        %1269 = vmatpush1.msra.mxu0 0.0
        %1270 = vmatprep.subr.mxu0 0.0
        %1271 = vmatpush1.msra.mxu0 0.0
        %1272 = vmatprep.mubr.f32.mxu0 0.0
        %1273 = vmatmul.mubr.f32.gmra.mrb[0].mxu0 %v592
        %v1274 = vpop.f32.mrb[0].mxu0
        %v1275 = vadd.f32 %v1110, %v1274
        %v1276 = vpop.f32.mrb[0].mxu0
        %1277 = vmatprep.mubr.f32.mxu0 0.0
        %1278 = vmatmul.mubr.f32.gmra.mrb[0].mxu0 %v593
        %v1279 = vpop.f32.mrb[0].mxu0
        %v1280 = vadd.f32 %v1115, %v1279
        %v1281 = vpop.f32.mrb[0].mxu0
        %1282 = vmatprep.mubr.f32.mxu0 0.0
        %1283 = vmatmul.mubr.f32.gmra.mrb[0].mxu0 %v594
        %v1284 = vpop.f32.mrb[0].mxu0
        %v1285 = vadd.f32 %v1120, %v1284
        %v1286 = vpop.f32.mrb[0].mxu0
        %1287 = vmatprep.mubr.f32.mxu0 0.0
        %1288 = vmatmul.mubr.f32.gmra.mrb[0].mxu0 %v595
        %v1289 = vpop.f32.mrb[0].mxu0
        %v1290 = vadd.f32 %v1125, %v1289
        %v1291 = vpop.f32.mrb[0].mxu0
        %1292 = vmatprep.mubr.f32.mxu0 0.0
        %1293 = vmatmul.mubr.f32.gmra.mrb[0].mxu0 %v596
        %v1294 = vpop.f32.mrb[0].mxu0
        %v1295 = vadd.f32 %v1130, %v1294
        %v1296 = vpop.f32.mrb[0].mxu0
        %1297 = vmatprep.mubr.f32.mxu0 0.0
        %1298 = vmatmul.mubr.f32.gmra.mrb[0].mxu0 %v597
        %v1299 = vpop.f32.mrb[0].mxu0
        %v1300 = vadd.f32 %v1135, %v1299
        %v1301 = vpop.f32.mrb[0].mxu0
        %1302 = vmatprep.mubr.f32.mxu0 0.0
        %1303 = vmatmul.mubr.f32.gmra.mrb[0].mxu0 %v598
        %v1304 = vpop.f32.mrb[0].mxu0
        %v1305 = vadd.f32 %v1140, %v1304
        %v1306 = vpop.f32.mrb[0].mxu0
        %1307 = vmatprep.mubr.f32.mxu0 0.0
        %1308 = vmatmul.mubr.f32.gmra.mrb[0].mxu0 %v599
        %v1309 = vpop.f32.mrb[0].mxu0
        %v1310 = vadd.f32 %v1145, %v1309
        %v1311 = vpop.f32.mrb[0].mxu0
        %1312 = vmatprep.mubr.f32.mxu0 0.0
        %1313 = vmatmul.mubr.f32.gmra.mrb[0].mxu0 %v600
        %v1314 = vpop.f32.mrb[0].mxu0
        %v1315 = vadd.f32 %v1150, %v1314
        %v1316 = vpop.f32.mrb[0].mxu0
        %1317 = vmatprep.mubr.f32.mxu0 0.0
        %1318 = vmatmul.mubr.f32.gmra.mrb[0].mxu0 %v601
        %v1319 = vpop.f32.mrb[0].mxu0
        %v1320 = vadd.f32 %v1155, %v1319
        %v1321 = vpop.f32.mrb[0].mxu0
        %1322 = vmatprep.mubr.f32.mxu0 0.0
        %1323 = vmatmul.mubr.f32.gmra.mrb[0].mxu0 %v602
        %v1324 = vpop.f32.mrb[0].mxu0
        %v1325 = vadd.f32 %v1160, %v1324
        %v1326 = vpop.f32.mrb[0].mxu0
        %1327 = vmatprep.mubr.f32.mxu0 0.0
        %1328 = vmatmul.mubr.f32.gmra.mrb[0].mxu0 %v603
        %v1329 = vpop.f32.mrb[0].mxu0
        %v1330 = vadd.f32 %v1165, %v1329
        %v1331 = vpop.f32.mrb[0].mxu0
        %1332 = vmatprep.mubr.f32.mxu0 0.0
        %1333 = vmatmul.mubr.f32.gmra.mrb[0].mxu0 %v604
        %v1334 = vpop.f32.mrb[0].mxu0
        %v1335 = vadd.f32 %v1170, %v1334
        %v1336 = vpop.f32.mrb[0].mxu0
        %1337 = vmatprep.mubr.f32.mxu0 0.0
        %1338 = vmatmul.mubr.f32.gmra.mrb[0].mxu0 %v605
        %v1339 = vpop.f32.mrb[0].mxu0
        %v1340 = vadd.f32 %v1175, %v1339
        %v1341 = vpop.f32.mrb[0].mxu0
        %1342 = vmatprep.mubr.f32.mxu0 0.0
        %1343 = vmatmul.mubr.f32.gmra.mrb[0].mxu0 %v606
        %v1344 = vpop.f32.mrb[0].mxu0
        %v1345 = vadd.f32 %v1180, %v1344
        %v1346 = vpop.f32.mrb[0].mxu0
        %1347 = vmatprep.mubr.f32.mxu0 0.0
        %1348 = vmatmul.mubr.f32.gmra.mrb[0].mxu0 %v607
        %v1349 = vpop.f32.mrb[0].mxu0
        %v1350 = vadd.f32 %v1185, %v1349
        %v1351 = vpop.f32.mrb[0].mxu0
        %1352 = vmatprep.mubr.f32.mxu0 0.0
        %1353 = vmatmul.mubr.f32.gmra.mrb[0].mxu0 %v608
        %v1354 = vpop.f32.mrb[0].mxu0
        %v1355 = vadd.f32 %v1190, %v1354
        %v1356 = vpop.f32.mrb[0].mxu0
        %1357 = vmatprep.mubr.f32.mxu0 0.0
        %1358 = vmatmul.mubr.f32.gmra.mrb[0].mxu0 %v609
        %v1359 = vpop.f32.mrb[0].mxu0
        %v1360 = vadd.f32 %v1195, %v1359
        %v1361 = vpop.f32.mrb[0].mxu0
        %1362 = vmatprep.mubr.f32.mxu0 0.0
        %1363 = vmatmul.mubr.f32.gmra.mrb[0].mxu0 %v610
        %v1364 = vpop.f32.mrb[0].mxu0
        %v1365 = vadd.f32 %v1200, %v1364
        %v1366 = vpop.f32.mrb[0].mxu0
        %1367 = vmatprep.mubr.f32.mxu0 0.0
        %1368 = vmatmul.mubr.f32.gmra.mrb[0].mxu0 %v611
        %v1369 = vpop.f32.mrb[0].mxu0
        %v1370 = vadd.f32 %v1205, %v1369
        %v1371 = vpop.f32.mrb[0].mxu0
        %1372 = vdwg.mxu0
        %s1373 = scalar_lea.vmem [#allocation7], 768
        %v1374 = vld [vmem:[%s1373] sm:$0xff]
        %v1375 = vld [vmem:[%s1373 + $0x8] sm:$0xff]
        %v1376 = vld [vmem:[%s1373 + $0x10] sm:$0xff]
        %v1377 = vld [vmem:[%s1373 + $0x18] sm:$0xff]
        %v1378 = vld [vmem:[%s1373 + $0x20] sm:$0xff]
        %v1379 = vld [vmem:[%s1373 + $0x28] sm:$0xff]
        %v1380 = vld [vmem:[%s1373 + $0x30] sm:$0xff]
        %v1381 = vld [vmem:[%s1373 + $0x38] sm:$0xff]
        %v1382 = vld [vmem:[%s1373 + $0x40] sm:$0xff]
        %v1383 = vld [vmem:[%s1373 + $0x48] sm:$0xff]
        %v1384 = vld [vmem:[%s1373 + $0x50] sm:$0xff]
        %v1385 = vld [vmem:[%s1373 + $0x58] sm:$0xff]
        %v1386 = vld [vmem:[%s1373 + $0x60] sm:$0xff]
        %v1387 = vld [vmem:[%s1373 + $0x68] sm:$0xff]
        %v1388 = vld [vmem:[%s1373 + $0x70] sm:$0xff]
        %v1389 = vld [vmem:[%s1373 + $0x78] sm:$0xff]
        %v1390 = vld [vmem:[%s1373 + $0x80] sm:$0xff]
        %v1391 = vld [vmem:[%s1373 + $0x88] sm:$0xff]
        %v1392 = vld [vmem:[%s1373 + $0x90] sm:$0xff]
        %v1393 = vld [vmem:[%s1373 + $0x98] sm:$0xff]
        %v1394 = vld [vmem:[%s1373 + $0xa0] sm:$0xff]
        %v1395 = vld [vmem:[%s1373 + $0xa8] sm:$0xff]
        %v1396 = vld [vmem:[%s1373 + $0xb0] sm:$0xff]
        %v1397 = vld [vmem:[%s1373 + $0xb8] sm:$0xff]
        %v1398 = vld [vmem:[%s1373 + $0xc0] sm:$0xff]
        %v1399 = vld [vmem:[%s1373 + $0xc8] sm:$0xff]
        %v1400 = vld [vmem:[%s1373 + $0xd0] sm:$0xff]
        %v1401 = vld [vmem:[%s1373 + $0xd8] sm:$0xff]
        %v1402 = vld [vmem:[%s1373 + $0xe0] sm:$0xff]
        %v1403 = vld [vmem:[%s1373 + $0xe8] sm:$0xff]
        %v1404 = vld [vmem:[%s1373 + $0xf0] sm:$0xff]
        %v1405 = vld [vmem:[%s1373 + $0xf8] sm:$0xff]
        %v1406 = vld [vmem:[%s1373 + $0x100] sm:$0xff]
        %v1407 = vld [vmem:[%s1373 + $0x108] sm:$0xff]
        %v1408 = vld [vmem:[%s1373 + $0x110] sm:$0xff]
        %v1409 = vld [vmem:[%s1373 + $0x118] sm:$0xff]
        %v1410 = vld [vmem:[%s1373 + $0x120] sm:$0xff]
        %v1411 = vld [vmem:[%s1373 + $0x128] sm:$0xff]
        %v1412 = vld [vmem:[%s1373 + $0x130] sm:$0xff]
        %v1413 = vld [vmem:[%s1373 + $0x138] sm:$0xff]
        %v1414 = vld [vmem:[%s1373 + $0x140] sm:$0xff]
        %v1415 = vld [vmem:[%s1373 + $0x148] sm:$0xff]
        %v1416 = vld [vmem:[%s1373 + $0x150] sm:$0xff]
        %v1417 = vld [vmem:[%s1373 + $0x158] sm:$0xff]
        %v1418 = vld [vmem:[%s1373 + $0x160] sm:$0xff]
        %v1419 = vld [vmem:[%s1373 + $0x168] sm:$0xff]
        %v1420 = vld [vmem:[%s1373 + $0x170] sm:$0xff]
        %v1421 = vld [vmem:[%s1373 + $0x178] sm:$0xff]
        %1422 = vmatprep.subr.mxu0 0.0
        %1423 = vmatpush1.msra.mxu0 %v1374
        %1424 = vmatprep.subr.mxu0 0.0
        %1425 = vmatpush1.msra.mxu0 %v1375
        %1426 = vmatprep.subr.mxu0 0.0
        %1427 = vmatpush1.msra.mxu0 %v1376
        %1428 = vmatprep.subr.mxu0 0.0
        %1429 = vmatpush1.msra.mxu0 %v1377
        %1430 = vmatprep.subr.mxu0 0.0
        %1431 = vmatpush1.msra.mxu0 %v1378
        %1432 = vmatprep.subr.mxu0 0.0
        %1433 = vmatpush1.msra.mxu0 %v1379
        %1434 = vmatprep.subr.mxu0 0.0
        %1435 = vmatpush1.msra.mxu0 %v1380
        %1436 = vmatprep.subr.mxu0 0.0
        %1437 = vmatpush1.msra.mxu0 %v1381
        %1438 = vmatprep.subr.mxu0 0.0
        %1439 = vmatpush1.msra.mxu0 %v1382
        %1440 = vmatprep.subr.mxu0 0.0
        %1441 = vmatpush1.msra.mxu0 %v1383
        %1442 = vmatprep.subr.mxu0 0.0
        %1443 = vmatpush1.msra.mxu0 %v1384
        %1444 = vmatprep.subr.mxu0 0.0
        %1445 = vmatpush1.msra.mxu0 %v1385
        %1446 = vmatprep.subr.mxu0 0.0
        %1447 = vmatpush1.msra.mxu0 %v1386
        %1448 = vmatprep.subr.mxu0 0.0
        %1449 = vmatpush1.msra.mxu0 %v1387
        %1450 = vmatprep.subr.mxu0 0.0
        %1451 = vmatpush1.msra.mxu0 %v1388
        %1452 = vmatprep.subr.mxu0 0.0
        %1453 = vmatpush1.msra.mxu0 %v1389
        %1454 = vmatprep.subr.mxu0 0.0
        %1455 = vmatpush1.msra.mxu0 %v1390
        %1456 = vmatprep.subr.mxu0 0.0
        %1457 = vmatpush1.msra.mxu0 %v1391
        %1458 = vmatprep.subr.mxu0 0.0
        %1459 = vmatpush1.msra.mxu0 %v1392
        %1460 = vmatprep.subr.mxu0 0.0
        %1461 = vmatpush1.msra.mxu0 %v1393
        %1462 = vmatprep.subr.mxu0 0.0
        %1463 = vmatpush1.msra.mxu0 %v1394
        %1464 = vmatprep.subr.mxu0 0.0
        %1465 = vmatpush1.msra.mxu0 %v1395
        %1466 = vmatprep.subr.mxu0 0.0
        %1467 = vmatpush1.msra.mxu0 %v1396
        %1468 = vmatprep.subr.mxu0 0.0
        %1469 = vmatpush1.msra.mxu0 %v1397
        %1470 = vmatprep.subr.mxu0 0.0
        %1471 = vmatpush1.msra.mxu0 %v1398
        %1472 = vmatprep.subr.mxu0 0.0
        %1473 = vmatpush1.msra.mxu0 %v1399
        %1474 = vmatprep.subr.mxu0 0.0
        %1475 = vmatpush1.msra.mxu0 %v1400
        %1476 = vmatprep.subr.mxu0 0.0
        %1477 = vmatpush1.msra.mxu0 %v1401
        %1478 = vmatprep.subr.mxu0 0.0
        %1479 = vmatpush1.msra.mxu0 %v1402
        %1480 = vmatprep.subr.mxu0 0.0
        %1481 = vmatpush1.msra.mxu0 %v1403
        %1482 = vmatprep.subr.mxu0 0.0
        %1483 = vmatpush1.msra.mxu0 %v1404
        %1484 = vmatprep.subr.mxu0 0.0
        %1485 = vmatpush1.msra.mxu0 %v1405
        %1486 = vmatprep.mubr.f32.mxu0 %v572
        %1487 = vmatmul.mubr.f32.gmra.mrb[0].mxu0 %v548
        %v1488 = vpop.f32.mrb[0].mxu0
        %v1489 = vadd.f32 0.0, %v1488
        %v1490 = vpop.f32.mrb[0].mxu0
        %1491 = vmatprep.mubr.f32.mxu0 %v573
        %1492 = vmatmul.mubr.f32.gmra.mrb[0].mxu0 %v549
        %v1493 = vpop.f32.mrb[0].mxu0
        %v1494 = vadd.f32 0.0, %v1493
        %v1495 = vpop.f32.mrb[0].mxu0
        %1496 = vmatprep.mubr.f32.mxu0 %v574
        %1497 = vmatmul.mubr.f32.gmra.mrb[0].mxu0 %v550
        %v1498 = vpop.f32.mrb[0].mxu0
        %v1499 = vadd.f32 0.0, %v1498
        %v1500 = vpop.f32.mrb[0].mxu0
        %1501 = vmatprep.mubr.f32.mxu0 %v575
        %1502 = vmatmul.mubr.f32.gmra.mrb[0].mxu0 %v551
        %v1503 = vpop.f32.mrb[0].mxu0
        %v1504 = vadd.f32 0.0, %v1503
        %v1505 = vpop.f32.mrb[0].mxu0
        %1506 = vmatprep.mubr.f32.mxu0 %v576
        %1507 = vmatmul.mubr.f32.gmra.mrb[0].mxu0 %v552
        %v1508 = vpop.f32.mrb[0].mxu0
        %v1509 = vadd.f32 0.0, %v1508
        %v1510 = vpop.f32.mrb[0].mxu0
        %1511 = vmatprep.mubr.f32.mxu0 %v577
        %1512 = vmatmul.mubr.f32.gmra.mrb[0].mxu0 %v553
        %v1513 = vpop.f32.mrb[0].mxu0
        %v1514 = vadd.f32 0.0, %v1513
        %v1515 = vpop.f32.mrb[0].mxu0
        %1516 = vmatprep.mubr.f32.mxu0 %v578
        %1517 = vmatmul.mubr.f32.gmra.mrb[0].mxu0 %v554
        %v1518 = vpop.f32.mrb[0].mxu0
        %v1519 = vadd.f32 0.0, %v1518
        %v1520 = vpop.f32.mrb[0].mxu0
        %1521 = vmatprep.mubr.f32.mxu0 %v579
        %1522 = vmatmul.mubr.f32.gmra.mrb[0].mxu0 %v555
        %v1523 = vpop.f32.mrb[0].mxu0
        %v1524 = vadd.f32 0.0, %v1523
        %v1525 = vpop.f32.mrb[0].mxu0
        %1526 = vmatprep.mubr.f32.mxu0 %v580
        %1527 = vmatmul.mubr.f32.gmra.mrb[0].mxu0 %v556
        %v1528 = vpop.f32.mrb[0].mxu0
        %v1529 = vadd.f32 0.0, %v1528
        %v1530 = vpop.f32.mrb[0].mxu0
        %1531 = vmatprep.mubr.f32.mxu0 %v581
        %1532 = vmatmul.mubr.f32.gmra.mrb[0].mxu0 %v557
        %v1533 = vpop.f32.mrb[0].mxu0
        %v1534 = vadd.f32 0.0, %v1533
        %v1535 = vpop.f32.mrb[0].mxu0
        %1536 = vmatprep.mubr.f32.mxu0 %v582
        %1537 = vmatmul.mubr.f32.gmra.mrb[0].mxu0 %v558
        %v1538 = vpop.f32.mrb[0].mxu0
        %v1539 = vadd.f32 0.0, %v1538
        %v1540 = vpop.f32.mrb[0].mxu0
        %1541 = vmatprep.mubr.f32.mxu0 %v583
        %1542 = vmatmul.mubr.f32.gmra.mrb[0].mxu0 %v559
        %v1543 = vpop.f32.mrb[0].mxu0
        %v1544 = vadd.f32 0.0, %v1543
        %v1545 = vpop.f32.mrb[0].mxu0
        %1546 = vmatprep.mubr.f32.mxu0 %v584
        %1547 = vmatmul.mubr.f32.gmra.mrb[0].mxu0 %v560
        %v1548 = vpop.f32.mrb[0].mxu0
        %v1549 = vadd.f32 0.0, %v1548
        %v1550 = vpop.f32.mrb[0].mxu0
        %1551 = vmatprep.mubr.f32.mxu0 %v585
        %1552 = vmatmul.mubr.f32.gmra.mrb[0].mxu0 %v561
        %v1553 = vpop.f32.mrb[0].mxu0
        %v1554 = vadd.f32 0.0, %v1553
        %v1555 = vpop.f32.mrb[0].mxu0
        %1556 = vmatprep.mubr.f32.mxu0 %v586
        %1557 = vmatmul.mubr.f32.gmra.mrb[0].mxu0 %v562
        %v1558 = vpop.f32.mrb[0].mxu0
        %v1559 = vadd.f32 0.0, %v1558
        %v1560 = vpop.f32.mrb[0].mxu0
        %1561 = vmatprep.mubr.f32.mxu0 %v587
        %1562 = vmatmul.mubr.f32.gmra.mrb[0].mxu0 %v563
        %v1563 = vpop.f32.mrb[0].mxu0
        %v1564 = vadd.f32 0.0, %v1563
        %v1565 = vpop.f32.mrb[0].mxu0
        %1566 = vmatprep.mubr.f32.mxu0 %v588
        %1567 = vmatmul.mubr.f32.gmra.mrb[0].mxu0 %v564
        %v1568 = vpop.f32.mrb[0].mxu0
        %v1569 = vadd.f32 0.0, %v1568
        %v1570 = vpop.f32.mrb[0].mxu0
        %1571 = vmatprep.mubr.f32.mxu0 %v589
        %1572 = vmatmul.mubr.f32.gmra.mrb[0].mxu0 %v565
        %v1573 = vpop.f32.mrb[0].mxu0
        %v1574 = vadd.f32 0.0, %v1573
        %v1575 = vpop.f32.mrb[0].mxu0
        %1576 = vmatprep.mubr.f32.mxu0 %v590
        %1577 = vmatmul.mubr.f32.gmra.mrb[0].mxu0 %v566
        %v1578 = vpop.f32.mrb[0].mxu0
        %v1579 = vadd.f32 0.0, %v1578
        %v1580 = vpop.f32.mrb[0].mxu0
        %1581 = vmatprep.mubr.f32.mxu0 %v591
        %1582 = vmatmul.mubr.f32.gmra.mrb[0].mxu0 %v567
        %v1583 = vpop.f32.mrb[0].mxu0
        %v1584 = vadd.f32 0.0, %v1583
        %v1585 = vpop.f32.mrb[0].mxu0
        %1586 = vdwg.mxu0
        %1587 = vmatprep.subr.mxu0 0.0
        %1588 = vmatpush1.msra.mxu0 %v1406
        %1589 = vmatprep.subr.mxu0 0.0
        %1590 = vmatpush1.msra.mxu0 %v1407
        %1591 = vmatprep.subr.mxu0 0.0
        %1592 = vmatpush1.msra.mxu0 %v1408
        %1593 = vmatprep.subr.mxu0 0.0
        %1594 = vmatpush1.msra.mxu0 %v1409
        %1595 = vmatprep.subr.mxu0 0.0
        %1596 = vmatpush1.msra.mxu0 %v1410
        %1597 = vmatprep.subr.mxu0 0.0
        %1598 = vmatpush1.msra.mxu0 %v1411
        %1599 = vmatprep.subr.mxu0 0.0
        %1600 = vmatpush1.msra.mxu0 %v1412
        %1601 = vmatprep.subr.mxu0 0.0
        %1602 = vmatpush1.msra.mxu0 %v1413
        %1603 = vmatprep.subr.mxu0 0.0
        %1604 = vmatpush1.msra.mxu0 %v1414
        %1605 = vmatprep.subr.mxu0 0.0
        %1606 = vmatpush1.msra.mxu0 %v1415
        %1607 = vmatprep.subr.mxu0 0.0
        %1608 = vmatpush1.msra.mxu0 %v1416
        %1609 = vmatprep.subr.mxu0 0.0
        %1610 = vmatpush1.msra.mxu0 %v1417
        %1611 = vmatprep.subr.mxu0 0.0
        %1612 = vmatpush1.msra.mxu0 %v1418
        %1613 = vmatprep.subr.mxu0 0.0
        %1614 = vmatpush1.msra.mxu0 %v1419
        %1615 = vmatprep.subr.mxu0 0.0
        %1616 = vmatpush1.msra.mxu0 %v1420
        %1617 = vmatprep.subr.mxu0 0.0
        %1618 = vmatpush1.msra.mxu0 %v1421
        %1619 = vmatprep.subr.mxu0 0.0
        %1620 = vmatpush1.msra.mxu0 0.0
        %1621 = vmatprep.subr.mxu0 0.0
        %1622 = vmatpush1.msra.mxu0 0.0
        %1623 = vmatprep.subr.mxu0 0.0
        %1624 = vmatpush1.msra.mxu0 0.0
        %1625 = vmatprep.subr.mxu0 0.0
        %1626 = vmatpush1.msra.mxu0 0.0
        %1627 = vmatprep.subr.mxu0 0.0
        %1628 = vmatpush1.msra.mxu0 0.0
        %1629 = vmatprep.subr.mxu0 0.0
        %1630 = vmatpush1.msra.mxu0 0.0
        %1631 = vmatprep.subr.mxu0 0.0
        %1632 = vmatpush1.msra.mxu0 0.0
        %1633 = vmatprep.subr.mxu0 0.0
        %1634 = vmatpush1.msra.mxu0 0.0
        %1635 = vmatprep.subr.mxu0 0.0
        %1636 = vmatpush1.msra.mxu0 0.0
        %1637 = vmatprep.subr.mxu0 0.0
        %1638 = vmatpush1.msra.mxu0 0.0
        %1639 = vmatprep.subr.mxu0 0.0
        %1640 = vmatpush1.msra.mxu0 0.0
        %1641 = vmatprep.subr.mxu0 0.0
        %1642 = vmatpush1.msra.mxu0 0.0
        %1643 = vmatprep.subr.mxu0 0.0
        %1644 = vmatpush1.msra.mxu0 0.0
        %1645 = vmatprep.subr.mxu0 0.0
        %1646 = vmatpush1.msra.mxu0 0.0
        %1647 = vmatprep.subr.mxu0 0.0
        %1648 = vmatpush1.msra.mxu0 0.0
        %1649 = vmatprep.subr.mxu0 0.0
        %1650 = vmatpush1.msra.mxu0 0.0
        %1651 = vmatprep.mubr.f32.mxu0 0.0
        %1652 = vmatmul.mubr.f32.gmra.mrb[0].mxu0 %v596
        %v1653 = vpop.f32.mrb[0].mxu0
        %v1654 = vadd.f32 %v1489, %v1653
        %v1655 = vpop.f32.mrb[0].mxu0
        %1656 = vmatprep.mubr.f32.mxu0 0.0
        %1657 = vmatmul.mubr.f32.gmra.mrb[0].mxu0 %v597
        %v1658 = vpop.f32.mrb[0].mxu0
        %v1659 = vadd.f32 %v1494, %v1658
        %v1660 = vpop.f32.mrb[0].mxu0
        %1661 = vmatprep.mubr.f32.mxu0 0.0
        %1662 = vmatmul.mubr.f32.gmra.mrb[0].mxu0 %v598
        %v1663 = vpop.f32.mrb[0].mxu0
        %v1664 = vadd.f32 %v1499, %v1663
        %v1665 = vpop.f32.mrb[0].mxu0
        %1666 = vmatprep.mubr.f32.mxu0 0.0
        %1667 = vmatmul.mubr.f32.gmra.mrb[0].mxu0 %v599
        %v1668 = vpop.f32.mrb[0].mxu0
        %v1669 = vadd.f32 %v1504, %v1668
        %v1670 = vpop.f32.mrb[0].mxu0
        %1671 = vmatprep.mubr.f32.mxu0 0.0
        %1672 = vmatmul.mubr.f32.gmra.mrb[0].mxu0 %v600
        %v1673 = vpop.f32.mrb[0].mxu0
        %v1674 = vadd.f32 %v1509, %v1673
        %v1675 = vpop.f32.mrb[0].mxu0
        %1676 = vmatprep.mubr.f32.mxu0 0.0
        %1677 = vmatmul.mubr.f32.gmra.mrb[0].mxu0 %v601
        %v1678 = vpop.f32.mrb[0].mxu0
        %v1679 = vadd.f32 %v1514, %v1678
        %v1680 = vpop.f32.mrb[0].mxu0
        %1681 = vmatprep.mubr.f32.mxu0 0.0
        %1682 = vmatmul.mubr.f32.gmra.mrb[0].mxu0 %v602
        %v1683 = vpop.f32.mrb[0].mxu0
        %v1684 = vadd.f32 %v1519, %v1683
        %v1685 = vpop.f32.mrb[0].mxu0
        %1686 = vmatprep.mubr.f32.mxu0 0.0
        %1687 = vmatmul.mubr.f32.gmra.mrb[0].mxu0 %v603
        %v1688 = vpop.f32.mrb[0].mxu0
        %v1689 = vadd.f32 %v1524, %v1688
        %v1690 = vpop.f32.mrb[0].mxu0
        %1691 = vmatprep.mubr.f32.mxu0 0.0
        %1692 = vmatmul.mubr.f32.gmra.mrb[0].mxu0 %v604
        %v1693 = vpop.f32.mrb[0].mxu0
        %v1694 = vadd.f32 %v1529, %v1693
        %v1695 = vpop.f32.mrb[0].mxu0
        %1696 = vmatprep.mubr.f32.mxu0 0.0
        %1697 = vmatmul.mubr.f32.gmra.mrb[0].mxu0 %v605
        %v1698 = vpop.f32.mrb[0].mxu0
        %v1699 = vadd.f32 %v1534, %v1698
        %v1700 = vpop.f32.mrb[0].mxu0
        %1701 = vmatprep.mubr.f32.mxu0 0.0
        %1702 = vmatmul.mubr.f32.gmra.mrb[0].mxu0 %v606
        %v1703 = vpop.f32.mrb[0].mxu0
        %v1704 = vadd.f32 %v1539, %v1703
        %v1705 = vpop.f32.mrb[0].mxu0
        %1706 = vmatprep.mubr.f32.mxu0 0.0
        %1707 = vmatmul.mubr.f32.gmra.mrb[0].mxu0 %v607
        %v1708 = vpop.f32.mrb[0].mxu0
        %v1709 = vadd.f32 %v1544, %v1708
        %v1710 = vpop.f32.mrb[0].mxu0
        %1711 = vmatprep.mubr.f32.mxu0 0.0
        %1712 = vmatmul.mubr.f32.gmra.mrb[0].mxu0 %v608
        %v1713 = vpop.f32.mrb[0].mxu0
        %v1714 = vadd.f32 %v1549, %v1713
        %v1715 = vpop.f32.mrb[0].mxu0
        %1716 = vmatprep.mubr.f32.mxu0 0.0
        %1717 = vmatmul.mubr.f32.gmra.mrb[0].mxu0 %v609
        %v1718 = vpop.f32.mrb[0].mxu0
        %v1719 = vadd.f32 %v1554, %v1718
        %v1720 = vpop.f32.mrb[0].mxu0
        %1721 = vmatprep.mubr.f32.mxu0 0.0
        %1722 = vmatmul.mubr.f32.gmra.mrb[0].mxu0 %v610
        %v1723 = vpop.f32.mrb[0].mxu0
        %v1724 = vadd.f32 %v1559, %v1723
        %v1725 = vpop.f32.mrb[0].mxu0
        %1726 = vmatprep.mubr.f32.mxu0 0.0
        %1727 = vmatmul.mubr.f32.gmra.mrb[0].mxu0 %v611
        %v1728 = vpop.f32.mrb[0].mxu0
        %v1729 = vadd.f32 %v1564, %v1728
        %v1730 = vpop.f32.mrb[0].mxu0
        %1731 = vmatprep.mubr.f32.mxu0 0.0
        %1732 = vmatmul.mubr.f32.gmra.mrb[0].mxu0 %v612
        %v1733 = vpop.f32.mrb[0].mxu0
        %v1734 = vadd.f32 %v1569, %v1733
        %v1735 = vpop.f32.mrb[0].mxu0
        %1736 = vmatprep.mubr.f32.mxu0 0.0
        %1737 = vmatmul.mubr.f32.gmra.mrb[0].mxu0 %v613
        %v1738 = vpop.f32.mrb[0].mxu0
        %v1739 = vadd.f32 %v1574, %v1738
        %v1740 = vpop.f32.mrb[0].mxu0
        %1741 = vmatprep.mubr.f32.mxu0 0.0
        %1742 = vmatmul.mubr.f32.gmra.mrb[0].mxu0 %v614
        %v1743 = vpop.f32.mrb[0].mxu0
        %v1744 = vadd.f32 %v1579, %v1743
        %v1745 = vpop.f32.mrb[0].mxu0
        %1746 = vmatprep.mubr.f32.mxu0 0.0
        %1747 = vmatmul.mubr.f32.gmra.mrb[0].mxu0 %v615
        %v1748 = vpop.f32.mrb[0].mxu0
        %v1749 = vadd.f32 %v1584, %v1748
        %v1750 = vpop.f32.mrb[0].mxu0
        %1751 = vdwg.mxu0
        %v1752 = vadd.f32 %v1275, %v1654
        %v1753 = vadd.f32 %v1280, %v1659
        %v1754 = vadd.f32 %v1285, %v1664
        %v1755 = vadd.f32 %v1290, %v1669
        %v1756 = vadd.f32 %v1295, %v1674
        %v1757 = vadd.f32 %v1300, %v1679
        %v1758 = vadd.f32 %v1305, %v1684
        %v1759 = vadd.f32 %v1310, %v1689
        %v1760 = vadd.f32 %v1315, %v1694
        %v1761 = vadd.f32 %v1320, %v1699
        %v1762 = vadd.f32 %v1325, %v1704
        %v1763 = vadd.f32 %v1330, %v1709
        %v1764 = vadd.f32 %v1335, %v1714
        %v1765 = vadd.f32 %v1340, %v1719
        %v1766 = vadd.f32 %v1345, %v1724
        %v1767 = vadd.f32 %v1350, %v1729
        %v1768 = vadd.f32 %v1355, %v1734
        %v1769 = vadd.f32 %v1360, %v1739
        %v1770 = vadd.f32 %v1365, %v1744
        %v1771 = vadd.f32 %v1370, %v1749
        %v1772 = vld [vmem:[%s2] sm:$0x1]
        %v1774 = vlaneseq
        %v1775 = vshrl.u32 %v1774, 7
        %v1776 = vsub.s32 0, %v1775
        %v1777 = vrot.slane %v1772, %v1776
        %v1779 = vmul.f32 %v1752, %v1777
        %v1780 = vmul.f32 %v1753, %v1777
        %v1781 = vmul.f32 %v1754, %v1777
        %v1782 = vmul.f32 %v1755, %v1777
        %v1783 = vmul.f32 %v1756, %v1777
        %v1784 = vmul.f32 %v1757, %v1777
        %v1785 = vmul.f32 %v1758, %v1777
        %v1786 = vmul.f32 %v1759, %v1777
        %v1787 = vmul.f32 %v1760, %v1777
        %v1788 = vmul.f32 %v1761, %v1777
        %v1789 = vmul.f32 %v1762, %v1777
        %v1790 = vmul.f32 %v1763, %v1777
        %v1791 = vmul.f32 %v1764, %v1777
        %v1792 = vmul.f32 %v1765, %v1777
        %v1793 = vmul.f32 %v1766, %v1777
        %v1794 = vmul.f32 %v1767, %v1777
        %v1795 = vmul.f32 %v1768, %v1777
        %v1796 = vmul.f32 %v1769, %v1777
        %v1797 = vmul.f32 %v1770, %v1777
        %v1798 = vmul.f32 %v1771, %v1777
        %v1799 = vld [vmem:[%s3] sm:$0x1]
        %v1801 = vlaneseq
        %v1802 = vshrl.u32 %v1801, 7
        %v1803 = vsub.s32 0, %v1802
        %v1804 = vrot.slane %v1799, %v1803
        %v1806 = vadd.f32 %v1779, %v1804
        %v1807 = vadd.f32 %v1780, %v1804
        %v1808 = vadd.f32 %v1781, %v1804
        %v1809 = vadd.f32 %v1782, %v1804
        %v1810 = vadd.f32 %v1783, %v1804
        %v1811 = vadd.f32 %v1784, %v1804
        %v1812 = vadd.f32 %v1785, %v1804
        %v1813 = vadd.f32 %v1786, %v1804
        %v1814 = vadd.f32 %v1787, %v1804
        %v1815 = vadd.f32 %v1788, %v1804
        %v1816 = vadd.f32 %v1789, %v1804
        %v1817 = vadd.f32 %v1790, %v1804
        %v1818 = vadd.f32 %v1791, %v1804
        %v1819 = vadd.f32 %v1792, %v1804
        %v1820 = vadd.f32 %v1793, %v1804
        %v1821 = vadd.f32 %v1794, %v1804
        %v1822 = vadd.f32 %v1795, %v1804
        %v1823 = vadd.f32 %v1796, %v1804
        %v1824 = vadd.f32 %v1797, %v1804
        %v1825 = vadd.f32 %v1798, %v1804
        %s1826 = ssub.s32 %s341, 1
        %v1827 = vstv %s1826
        %v1828 = vadd.s32 %v1827, 1
        %v1829 = vadd.s32 %v1827, 2
        %v1830 = vadd.s32 %v1827, 3
        %v1831 = vadd.s32 %v1827, 4
        %v1832 = vadd.s32 %v1827, 5
        %v1833 = vadd.s32 %v1827, 6
        %v1834 = vadd.s32 %v1827, 7
        %v1835 = vadd.s32 %v1827, 8
        %v1836 = vadd.s32 %v1827, 9
        %vm1837 = vcmp.ge.s32.totalorder %v1827, 0
        %vm1838 = vcmp.ge.s32.totalorder %v1828, 0
        %vm1839 = vcmp.ge.s32.totalorder %v1829, 0
        %vm1840 = vcmp.ge.s32.totalorder %v1830, 0
        %vm1841 = vcmp.ge.s32.totalorder %v1831, 0
        %vm1842 = vcmp.ge.s32.totalorder %v1832, 0
        %vm1843 = vcmp.ge.s32.totalorder %v1833, 0
        %vm1844 = vcmp.ge.s32.totalorder %v1834, 0
        %vm1845 = vcmp.ge.s32.totalorder %v1835, 0
        %vm1846 = vcmp.ge.s32.totalorder %v1836, 0
        %vm1847 = vcmp.lt.s32.totalorder %v1827, 16
        %vm1848 = vcmp.lt.s32.totalorder %v1828, 16
        %vm1849 = vcmp.lt.s32.totalorder %v1829, 16
        %vm1850 = vcmp.lt.s32.totalorder %v1830, 16
        %vm1851 = vcmp.lt.s32.totalorder %v1831, 16
        %vm1852 = vcmp.lt.s32.totalorder %v1832, 16
        %vm1853 = vcmp.lt.s32.totalorder %v1833, 16
        %vm1854 = vcmp.lt.s32.totalorder %v1834, 16
        %vm1855 = vcmp.lt.s32.totalorder %v1835, 16
        %vm1856 = vcmp.lt.s32.totalorder %v1836, 16
        %vm1857 = vmand %vm1837, %vm1847
        %vm1858 = vmand %vm1838, %vm1848
        %vm1859 = vmand %vm1839, %vm1849
        %vm1860 = vmand %vm1840, %vm1850
        %vm1861 = vmand %vm1841, %vm1851
        %vm1862 = vmand %vm1842, %vm1852
        %vm1863 = vmand %vm1843, %vm1853
        %vm1864 = vmand %vm1844, %vm1854
        %vm1865 = vmand %vm1845, %vm1855
        %vm1866 = vmand %vm1846, %vm1856
        %v1867 = vsel %vm1857, %v1806, 0.0
        %v1868 = vsel %vm1857, %v1807, 0.0
        %v1869 = vsel %vm1858, %v1808, 0.0
        %v1870 = vsel %vm1858, %v1809, 0.0
        %v1871 = vsel %vm1859, %v1810, 0.0
        %v1872 = vsel %vm1859, %v1811, 0.0
        %v1873 = vsel %vm1860, %v1812, 0.0
        %v1874 = vsel %vm1860, %v1813, 0.0
        %v1875 = vsel %vm1861, %v1814, 0.0
        %v1876 = vsel %vm1861, %v1815, 0.0
        %v1877 = vsel %vm1862, %v1816, 0.0
        %v1878 = vsel %vm1862, %v1817, 0.0
        %v1879 = vsel %vm1863, %v1818, 0.0
        %v1880 = vsel %vm1863, %v1819, 0.0
        %v1881 = vsel %vm1864, %v1820, 0.0
        %v1882 = vsel %vm1864, %v1821, 0.0
        %v1883 = vsel %vm1865, %v1822, 0.0
        %v1884 = vsel %vm1865, %v1823, 0.0
        %v1885 = vsel %vm1866, %v1824, 0.0
        %v1886 = vsel %vm1866, %v1825, 0.0
        %1887 = vst [vmem:[#allocation3] sm:$0xff] 0.0
        %1888 = vst [vmem:[#allocation3 + $0x8] sm:$0xff] 0.0
        %1889 = vst [vmem:[#allocation3 + $0x10] sm:$0x3] 0.0
        %1890 = vst [vmem:[#allocation3 + $0x18] sm:$0xff] 0.0
        %1891 = vst [vmem:[#allocation3 + $0x20] sm:$0xff] 0.0
        %1892 = vst [vmem:[#allocation3 + $0x28] sm:$0x3] 0.0
        %1893 = vst [vmem:[#allocation3 + $0x30] sm:$0xff] 0.0
        %1894 = vst [vmem:[#allocation3 + $0x38] sm:$0xff] 0.0
        %1895 = vst [vmem:[#allocation3 + $0x40] sm:$0x3] 0.0
        %1896 = vst [vmem:[#allocation3 + $0x48] sm:$0xff] 0.0
        %1897 = vst [vmem:[#allocation3 + $0x50] sm:$0xff] 0.0
        %1898 = vst [vmem:[#allocation3 + $0x58] sm:$0x3] 0.0
        %1899 = vst [vmem:[#allocation3 + $0x60] sm:$0xff] 0.0
        %1900 = vst [vmem:[#allocation3 + $0x68] sm:$0xff] 0.0
        %1901 = vst [vmem:[#allocation3 + $0x70] sm:$0x3] 0.0
        %1902 = vst [vmem:[#allocation3 + $0x78] sm:$0xff] 0.0
        %1903 = vst [vmem:[#allocation3 + $0x80] sm:$0xff] 0.0
        %1904 = vst [vmem:[#allocation3 + $0x88] sm:$0x3] 0.0
        %1905 = vst [vmem:[#allocation3 + $0x90] sm:$0xff] 0.0
        %1906 = vst [vmem:[#allocation3 + $0x98] sm:$0xff] 0.0
        %1907 = vst [vmem:[#allocation3 + $0xa0] sm:$0x3] 0.0
        %1908 = vst [vmem:[#allocation3 + $0xa8] sm:$0xff] 0.0
        %1909 = vst [vmem:[#allocation3 + $0xb0] sm:$0xff] 0.0
        %1910 = vst [vmem:[#allocation3 + $0xb8] sm:$0x3] 0.0
        %1911 = vst [vmem:[#allocation3 + $0xc0] sm:$0xff] 0.0
        %1912 = vst [vmem:[#allocation3 + $0xc8] sm:$0xff] 0.0
        %1913 = vst [vmem:[#allocation3 + $0xd0] sm:$0x3] 0.0
        %1914 = vst [vmem:[#allocation3 + $0xd8] sm:$0xff] 0.0
        %1915 = vst [vmem:[#allocation3 + $0xe0] sm:$0xff] 0.0
        %1916 = vst [vmem:[#allocation3 + $0xe8] sm:$0x3] 0.0
        %1917 = vst [vmem:[#allocation3 + $0x1] sm:$0xff] %v1867
        %1918 = vst [vmem:[#allocation3 + $0x9] sm:$0xff] %v1868
        %1919 = vst [vmem:[#allocation3 + $0x19] sm:$0xff] %v1869
        %1920 = vst [vmem:[#allocation3 + $0x21] sm:$0xff] %v1870
        %1921 = vst [vmem:[#allocation3 + $0x31] sm:$0xff] %v1871
        %1922 = vst [vmem:[#allocation3 + $0x39] sm:$0xff] %v1872
        %1923 = vst [vmem:[#allocation3 + $0x49] sm:$0xff] %v1873
        %1924 = vst [vmem:[#allocation3 + $0x51] sm:$0xff] %v1874
        %1925 = vst [vmem:[#allocation3 + $0x61] sm:$0xff] %v1875
        %1926 = vst [vmem:[#allocation3 + $0x69] sm:$0xff] %v1876
        %1927 = vst [vmem:[#allocation3 + $0x79] sm:$0xff] %v1877
        %1928 = vst [vmem:[#allocation3 + $0x81] sm:$0xff] %v1878
        %1929 = vst [vmem:[#allocation3 + $0x91] sm:$0xff] %v1879
        %1930 = vst [vmem:[#allocation3 + $0x99] sm:$0xff] %v1880
        %1931 = vst [vmem:[#allocation3 + $0xa9] sm:$0xff] %v1881
        %1932 = vst [vmem:[#allocation3 + $0xb1] sm:$0xff] %v1882
        %1933 = vst [vmem:[#allocation3 + $0xc1] sm:$0xff] %v1883
        %1934 = vst [vmem:[#allocation3 + $0xc9] sm:$0xff] %v1884
        %1935 = vst [vmem:[#allocation3 + $0xd9] sm:$0xff] %v1885
        %1936 = vst [vmem:[#allocation3 + $0xe1] sm:$0xff] %v1886
        %v1937 = vld [vmem:[#allocation3] sm:$0xff]
        %v1938 = vld [vmem:[#allocation3 + $0x8] sm:$0xff]
        %v1939 = vld [vmem:[#allocation3 + $0x18] sm:$0xff]
        %v1940 = vld [vmem:[#allocation3 + $0x20] sm:$0xff]
        %v1941 = vld [vmem:[#allocation3 + $0x30] sm:$0xff]
        %v1942 = vld [vmem:[#allocation3 + $0x38] sm:$0xff]
        %v1943 = vld [vmem:[#allocation3 + $0x48] sm:$0xff]
        %v1944 = vld [vmem:[#allocation3 + $0x50] sm:$0xff]
        %v1945 = vld [vmem:[#allocation3 + $0x60] sm:$0xff]
        %v1946 = vld [vmem:[#allocation3 + $0x68] sm:$0xff]
        %v1947 = vld [vmem:[#allocation3 + $0x78] sm:$0xff]
        %v1948 = vld [vmem:[#allocation3 + $0x80] sm:$0xff]
        %v1949 = vld [vmem:[#allocation3 + $0x90] sm:$0xff]
        %v1950 = vld [vmem:[#allocation3 + $0x98] sm:$0xff]
        %v1951 = vld [vmem:[#allocation3 + $0xa8] sm:$0xff]
        %v1952 = vld [vmem:[#allocation3 + $0xb0] sm:$0xff]
        %v1953 = vld [vmem:[#allocation3 + $0xc0] sm:$0xff]
        %v1954 = vld [vmem:[#allocation3 + $0xc8] sm:$0xff]
        %v1955 = vld [vmem:[#allocation3 + $0xd8] sm:$0xff]
        %v1956 = vld [vmem:[#allocation3 + $0xe0] sm:$0xff]
        %v1957 = vld [vmem:[#allocation3 + $0x1] sm:$0xff]
        %v1958 = vld [vmem:[#allocation3 + $0x9] sm:$0xff]
        %v1959 = vld [vmem:[#allocation3 + $0x19] sm:$0xff]
        %v1960 = vld [vmem:[#allocation3 + $0x21] sm:$0xff]
        %v1961 = vld [vmem:[#allocation3 + $0x31] sm:$0xff]
        %v1962 = vld [vmem:[#allocation3 + $0x39] sm:$0xff]
        %v1963 = vld [vmem:[#allocation3 + $0x49] sm:$0xff]
        %v1964 = vld [vmem:[#allocation3 + $0x51] sm:$0xff]
        %v1965 = vld [vmem:[#allocation3 + $0x61] sm:$0xff]
        %v1966 = vld [vmem:[#allocation3 + $0x69] sm:$0xff]
        %v1967 = vld [vmem:[#allocation3 + $0x79] sm:$0xff]
        %v1968 = vld [vmem:[#allocation3 + $0x81] sm:$0xff]
        %v1969 = vld [vmem:[#allocation3 + $0x91] sm:$0xff]
        %v1970 = vld [vmem:[#allocation3 + $0x99] sm:$0xff]
        %v1971 = vld [vmem:[#allocation3 + $0xa9] sm:$0xff]
        %v1972 = vld [vmem:[#allocation3 + $0xb1] sm:$0xff]
        %v1973 = vld [vmem:[#allocation3 + $0xc1] sm:$0xff]
        %v1974 = vld [vmem:[#allocation3 + $0xc9] sm:$0xff]
        %v1975 = vld [vmem:[#allocation3 + $0xd9] sm:$0xff]
        %v1976 = vld [vmem:[#allocation3 + $0xe1] sm:$0xff]
        %v1977 = vld [vmem:[#allocation3 + $0x2] sm:$0xff]
        %v1978 = vld [vmem:[#allocation3 + $0xa] sm:$0xff]
        %v1979 = vld [vmem:[#allocation3 + $0x1a] sm:$0xff]
        %v1980 = vld [vmem:[#allocation3 + $0x22] sm:$0xff]
        %v1981 = vld [vmem:[#allocation3 + $0x32] sm:$0xff]
        %v1982 = vld [vmem:[#allocation3 + $0x3a] sm:$0xff]
        %v1983 = vld [vmem:[#allocation3 + $0x4a] sm:$0xff]
        %v1984 = vld [vmem:[#allocation3 + $0x52] sm:$0xff]
        %v1985 = vld [vmem:[#allocation3 + $0x62] sm:$0xff]
        %v1986 = vld [vmem:[#allocation3 + $0x6a] sm:$0xff]
        %v1987 = vld [vmem:[#allocation3 + $0x7a] sm:$0xff]
        %v1988 = vld [vmem:[#allocation3 + $0x82] sm:$0xff]
        %v1989 = vld [vmem:[#allocation3 + $0x92] sm:$0xff]
        %v1990 = vld [vmem:[#allocation3 + $0x9a] sm:$0xff]
        %v1991 = vld [vmem:[#allocation3 + $0xaa] sm:$0xff]
        %v1992 = vld [vmem:[#allocation3 + $0xb2] sm:$0xff]
        %v1993 = vld [vmem:[#allocation3 + $0xc2] sm:$0xff]
        %v1994 = vld [vmem:[#allocation3 + $0xca] sm:$0xff]
        %v1995 = vld [vmem:[#allocation3 + $0xda] sm:$0xff]
        %v1996 = vld [vmem:[#allocation3 + $0xe2] sm:$0xff]
        %v1997 = vld [vmem:[#allocation9] sm:$0xff]
        %v1998 = vld [vmem:[#allocation9 + $0x8] sm:$0xff]
        %v1999 = vld [vmem:[#allocation9 + $0x10] sm:$0xff]
        %v2000 = vld [vmem:[#allocation9 + $0x18] sm:$0xff]
        %v2001 = vld [vmem:[#allocation9 + $0x20] sm:$0xff]
        %v2002 = vld [vmem:[#allocation9 + $0x28] sm:$0xff]
        %v2003 = vld [vmem:[#allocation9 + $0x30] sm:$0xff]
        %v2004 = vld [vmem:[#allocation9 + $0x38] sm:$0xff]
        %v2005 = vld [vmem:[#allocation9 + $0x40] sm:$0xff]
        %v2006 = vld [vmem:[#allocation9 + $0x48] sm:$0xff]
        %v2007 = vld [vmem:[#allocation9 + $0x50] sm:$0xff]
        %v2008 = vld [vmem:[#allocation9 + $0x58] sm:$0xff]
        %v2009 = vld [vmem:[#allocation9 + $0x60] sm:$0xff]
        %v2010 = vld [vmem:[#allocation9 + $0x68] sm:$0xff]
        %v2011 = vld [vmem:[#allocation9 + $0x70] sm:$0xff]
        %v2012 = vld [vmem:[#allocation9 + $0x78] sm:$0xff]
        %v2013 = vld [vmem:[#allocation9 + $0x80] sm:$0xff]
        %v2014 = vld [vmem:[#allocation9 + $0x88] sm:$0xff]
        %v2015 = vld [vmem:[#allocation9 + $0x90] sm:$0xff]
        %v2016 = vld [vmem:[#allocation9 + $0x98] sm:$0xff]
        %v2017 = vld [vmem:[#allocation9 + $0xa0] sm:$0xff]
        %v2018 = vld [vmem:[#allocation9 + $0xa8] sm:$0xff]
        %v2019 = vld [vmem:[#allocation9 + $0xb0] sm:$0xff]
        %v2020 = vld [vmem:[#allocation9 + $0xb8] sm:$0xff]
        %v2021 = vld [vmem:[#allocation9 + $0xc0] sm:$0xff]
        %v2022 = vld [vmem:[#allocation9 + $0xc8] sm:$0xff]
        %v2023 = vld [vmem:[#allocation9 + $0xd0] sm:$0xff]
        %v2024 = vld [vmem:[#allocation9 + $0xd8] sm:$0xff]
        %v2025 = vld [vmem:[#allocation9 + $0xe0] sm:$0xff]
        %v2026 = vld [vmem:[#allocation9 + $0xe8] sm:$0xff]
        %v2027 = vld [vmem:[#allocation9 + $0xf0] sm:$0xff]
        %v2028 = vld [vmem:[#allocation9 + $0xf8] sm:$0xff]
        %v2029 = vld [vmem:[#allocation9 + $0x100] sm:$0xff]
        %v2030 = vld [vmem:[#allocation9 + $0x108] sm:$0xff]
        %v2031 = vld [vmem:[#allocation9 + $0x110] sm:$0xff]
        %v2032 = vld [vmem:[#allocation9 + $0x118] sm:$0xff]
        %v2033 = vld [vmem:[#allocation9 + $0x120] sm:$0xff]
        %v2034 = vld [vmem:[#allocation9 + $0x128] sm:$0xff]
        %v2035 = vld [vmem:[#allocation9 + $0x130] sm:$0xff]
        %v2036 = vld [vmem:[#allocation9 + $0x138] sm:$0xff]
        %v2037 = vld [vmem:[#allocation9 + $0x140] sm:$0xff]
        %v2038 = vld [vmem:[#allocation9 + $0x148] sm:$0xff]
        %v2039 = vld [vmem:[#allocation9 + $0x150] sm:$0xff]
        %v2040 = vld [vmem:[#allocation9 + $0x158] sm:$0xff]
        %v2041 = vld [vmem:[#allocation9 + $0x160] sm:$0xff]
        %v2042 = vld [vmem:[#allocation9 + $0x168] sm:$0xff]
        %v2043 = vld [vmem:[#allocation9 + $0x170] sm:$0xff]
        %v2044 = vld [vmem:[#allocation9 + $0x178] sm:$0xff]
        %s2045 = scalar_lea.vmem [#allocation9], 384
        %v2046 = vld [vmem:[%s2045] sm:$0xff]
        %v2047 = vld [vmem:[%s2045 + $0x8] sm:$0xff]
        %v2048 = vld [vmem:[%s2045 + $0x10] sm:$0xff]
        %v2049 = vld [vmem:[%s2045 + $0x18] sm:$0xff]
        %v2050 = vld [vmem:[%s2045 + $0x20] sm:$0xff]
        %v2051 = vld [vmem:[%s2045 + $0x28] sm:$0xff]
        %v2052 = vld [vmem:[%s2045 + $0x30] sm:$0xff]
        %v2053 = vld [vmem:[%s2045 + $0x38] sm:$0xff]
        %v2054 = vld [vmem:[%s2045 + $0x40] sm:$0xff]
        %v2055 = vld [vmem:[%s2045 + $0x48] sm:$0xff]
        %v2056 = vld [vmem:[%s2045 + $0x50] sm:$0xff]
        %v2057 = vld [vmem:[%s2045 + $0x58] sm:$0xff]
        %v2058 = vld [vmem:[%s2045 + $0x60] sm:$0xff]
        %v2059 = vld [vmem:[%s2045 + $0x68] sm:$0xff]
        %v2060 = vld [vmem:[%s2045 + $0x70] sm:$0xff]
        %v2061 = vld [vmem:[%s2045 + $0x78] sm:$0xff]
        %v2062 = vld [vmem:[%s2045 + $0x80] sm:$0xff]
        %v2063 = vld [vmem:[%s2045 + $0x88] sm:$0xff]
        %v2064 = vld [vmem:[%s2045 + $0x90] sm:$0xff]
        %v2065 = vld [vmem:[%s2045 + $0x98] sm:$0xff]
        %v2066 = vld [vmem:[%s2045 + $0xa0] sm:$0xff]
        %v2067 = vld [vmem:[%s2045 + $0xa8] sm:$0xff]
        %v2068 = vld [vmem:[%s2045 + $0xb0] sm:$0xff]
        %v2069 = vld [vmem:[%s2045 + $0xb8] sm:$0xff]
        %v2070 = vld [vmem:[%s2045 + $0xc0] sm:$0xff]
        %v2071 = vld [vmem:[%s2045 + $0xc8] sm:$0xff]
        %v2072 = vld [vmem:[%s2045 + $0xd0] sm:$0xff]
        %v2073 = vld [vmem:[%s2045 + $0xd8] sm:$0xff]
        %v2074 = vld [vmem:[%s2045 + $0xe0] sm:$0xff]
        %v2075 = vld [vmem:[%s2045 + $0xe8] sm:$0xff]
        %v2076 = vld [vmem:[%s2045 + $0xf0] sm:$0xff]
        %v2077 = vld [vmem:[%s2045 + $0xf8] sm:$0xff]
        %v2078 = vld [vmem:[%s2045 + $0x100] sm:$0xff]
        %v2079 = vld [vmem:[%s2045 + $0x108] sm:$0xff]
        %v2080 = vld [vmem:[%s2045 + $0x110] sm:$0xff]
        %v2081 = vld [vmem:[%s2045 + $0x118] sm:$0xff]
        %v2082 = vld [vmem:[%s2045 + $0x120] sm:$0xff]
        %v2083 = vld [vmem:[%s2045 + $0x128] sm:$0xff]
        %v2084 = vld [vmem:[%s2045 + $0x130] sm:$0xff]
        %v2085 = vld [vmem:[%s2045 + $0x138] sm:$0xff]
        %v2086 = vld [vmem:[%s2045 + $0x140] sm:$0xff]
        %v2087 = vld [vmem:[%s2045 + $0x148] sm:$0xff]
        %v2088 = vld [vmem:[%s2045 + $0x150] sm:$0xff]
        %v2089 = vld [vmem:[%s2045 + $0x158] sm:$0xff]
        %v2090 = vld [vmem:[%s2045 + $0x160] sm:$0xff]
        %v2091 = vld [vmem:[%s2045 + $0x168] sm:$0xff]
        %v2092 = vld [vmem:[%s2045 + $0x170] sm:$0xff]
        %v2093 = vld [vmem:[%s2045 + $0x178] sm:$0xff]
        %2094 = vmatprep.subr.mxu0 0.0
        %2095 = vmatpush1.msra.mxu0 %v2046
        %2096 = vmatprep.subr.mxu0 0.0
        %2097 = vmatpush1.msra.mxu0 %v2047
        %2098 = vmatprep.subr.mxu0 0.0
        %2099 = vmatpush1.msra.mxu0 %v2048
        %2100 = vmatprep.subr.mxu0 0.0
        %2101 = vmatpush1.msra.mxu0 %v2049
        %2102 = vmatprep.subr.mxu0 0.0
        %2103 = vmatpush1.msra.mxu0 %v2050
        %2104 = vmatprep.subr.mxu0 0.0
        %2105 = vmatpush1.msra.mxu0 %v2051
        %2106 = vmatprep.subr.mxu0 0.0
        %2107 = vmatpush1.msra.mxu0 %v2052
        %2108 = vmatprep.subr.mxu0 0.0
        %2109 = vmatpush1.msra.mxu0 %v2053
        %2110 = vmatprep.subr.mxu0 0.0
        %2111 = vmatpush1.msra.mxu0 %v2054
        %2112 = vmatprep.subr.mxu0 0.0
        %2113 = vmatpush1.msra.mxu0 %v2055
        %2114 = vmatprep.subr.mxu0 0.0
        %2115 = vmatpush1.msra.mxu0 %v2056
        %2116 = vmatprep.subr.mxu0 0.0
        %2117 = vmatpush1.msra.mxu0 %v2057
        %2118 = vmatprep.subr.mxu0 0.0
        %2119 = vmatpush1.msra.mxu0 %v2058
        %2120 = vmatprep.subr.mxu0 0.0
        %2121 = vmatpush1.msra.mxu0 %v2059
        %2122 = vmatprep.subr.mxu0 0.0
        %2123 = vmatpush1.msra.mxu0 %v2060
        %2124 = vmatprep.subr.mxu0 0.0
        %2125 = vmatpush1.msra.mxu0 %v2061
        %2126 = vmatprep.subr.mxu0 0.0
        %2127 = vmatpush1.msra.mxu0 %v2062
        %2128 = vmatprep.subr.mxu0 0.0
        %2129 = vmatpush1.msra.mxu0 %v2063
        %2130 = vmatprep.subr.mxu0 0.0
        %2131 = vmatpush1.msra.mxu0 %v2064
        %2132 = vmatprep.subr.mxu0 0.0
        %2133 = vmatpush1.msra.mxu0 %v2065
        %2134 = vmatprep.subr.mxu0 0.0
        %2135 = vmatpush1.msra.mxu0 %v2066
        %2136 = vmatprep.subr.mxu0 0.0
        %2137 = vmatpush1.msra.mxu0 %v2067
        %2138 = vmatprep.subr.mxu0 0.0
        %2139 = vmatpush1.msra.mxu0 %v2068
        %2140 = vmatprep.subr.mxu0 0.0
        %2141 = vmatpush1.msra.mxu0 %v2069
        %2142 = vmatprep.subr.mxu0 0.0
        %2143 = vmatpush1.msra.mxu0 %v2070
        %2144 = vmatprep.subr.mxu0 0.0
        %2145 = vmatpush1.msra.mxu0 %v2071
        %2146 = vmatprep.subr.mxu0 0.0
        %2147 = vmatpush1.msra.mxu0 %v2072
        %2148 = vmatprep.subr.mxu0 0.0
        %2149 = vmatpush1.msra.mxu0 %v2073
        %2150 = vmatprep.subr.mxu0 0.0
        %2151 = vmatpush1.msra.mxu0 %v2074
        %2152 = vmatprep.subr.mxu0 0.0
        %2153 = vmatpush1.msra.mxu0 %v2075
        %2154 = vmatprep.subr.mxu0 0.0
        %2155 = vmatpush1.msra.mxu0 %v2076
        %2156 = vmatprep.subr.mxu0 0.0
        %2157 = vmatpush1.msra.mxu0 %v2077
        %2158 = vmatprep.mubr.f32.mxu0 %v1959
        %2159 = vmatmul.mubr.f32.gmra.mrb[0].mxu0 %v1939
        %v2160 = vpop.f32.mrb[0].mxu0
        %v2161 = vadd.f32 0.0, %v2160
        %v2162 = vpop.f32.mrb[0].mxu0
        %2163 = vmatprep.mubr.f32.mxu0 %v1960
        %2164 = vmatmul.mubr.f32.gmra.mrb[0].mxu0 %v1940
        %v2165 = vpop.f32.mrb[0].mxu0
        %v2166 = vadd.f32 0.0, %v2165
        %v2167 = vpop.f32.mrb[0].mxu0
        %2168 = vmatprep.mubr.f32.mxu0 %v1961
        %2169 = vmatmul.mubr.f32.gmra.mrb[0].mxu0 %v1941
        %v2170 = vpop.f32.mrb[0].mxu0
        %v2171 = vadd.f32 0.0, %v2170
        %v2172 = vpop.f32.mrb[0].mxu0
        %2173 = vmatprep.mubr.f32.mxu0 %v1962
        %2174 = vmatmul.mubr.f32.gmra.mrb[0].mxu0 %v1942
        %v2175 = vpop.f32.mrb[0].mxu0
        %v2176 = vadd.f32 0.0, %v2175
        %v2177 = vpop.f32.mrb[0].mxu0
        %2178 = vmatprep.mubr.f32.mxu0 %v1963
        %2179 = vmatmul.mubr.f32.gmra.mrb[0].mxu0 %v1943
        %v2180 = vpop.f32.mrb[0].mxu0
        %v2181 = vadd.f32 0.0, %v2180
        %v2182 = vpop.f32.mrb[0].mxu0
        %2183 = vmatprep.mubr.f32.mxu0 %v1964
        %2184 = vmatmul.mubr.f32.gmra.mrb[0].mxu0 %v1944
        %v2185 = vpop.f32.mrb[0].mxu0
        %v2186 = vadd.f32 0.0, %v2185
        %v2187 = vpop.f32.mrb[0].mxu0
        %2188 = vmatprep.mubr.f32.mxu0 %v1965
        %2189 = vmatmul.mubr.f32.gmra.mrb[0].mxu0 %v1945
        %v2190 = vpop.f32.mrb[0].mxu0
        %v2191 = vadd.f32 0.0, %v2190
        %v2192 = vpop.f32.mrb[0].mxu0
        %2193 = vmatprep.mubr.f32.mxu0 %v1966
        %2194 = vmatmul.mubr.f32.gmra.mrb[0].mxu0 %v1946
        %v2195 = vpop.f32.mrb[0].mxu0
        %v2196 = vadd.f32 0.0, %v2195
        %v2197 = vpop.f32.mrb[0].mxu0
        %2198 = vmatprep.mubr.f32.mxu0 %v1967
        %2199 = vmatmul.mubr.f32.gmra.mrb[0].mxu0 %v1947
        %v2200 = vpop.f32.mrb[0].mxu0
        %v2201 = vadd.f32 0.0, %v2200
        %v2202 = vpop.f32.mrb[0].mxu0
        %2203 = vmatprep.mubr.f32.mxu0 %v1968
        %2204 = vmatmul.mubr.f32.gmra.mrb[0].mxu0 %v1948
        %v2205 = vpop.f32.mrb[0].mxu0
        %v2206 = vadd.f32 0.0, %v2205
        %v2207 = vpop.f32.mrb[0].mxu0
        %2208 = vmatprep.mubr.f32.mxu0 %v1969
        %2209 = vmatmul.mubr.f32.gmra.mrb[0].mxu0 %v1949
        %v2210 = vpop.f32.mrb[0].mxu0
        %v2211 = vadd.f32 0.0, %v2210
        %v2212 = vpop.f32.mrb[0].mxu0
        %2213 = vmatprep.mubr.f32.mxu0 %v1970
        %2214 = vmatmul.mubr.f32.gmra.mrb[0].mxu0 %v1950
        %v2215 = vpop.f32.mrb[0].mxu0
        %v2216 = vadd.f32 0.0, %v2215
        %v2217 = vpop.f32.mrb[0].mxu0
        %2218 = vmatprep.mubr.f32.mxu0 %v1971
        %2219 = vmatmul.mubr.f32.gmra.mrb[0].mxu0 %v1951
        %v2220 = vpop.f32.mrb[0].mxu0
        %v2221 = vadd.f32 0.0, %v2220
        %v2222 = vpop.f32.mrb[0].mxu0
        %2223 = vmatprep.mubr.f32.mxu0 %v1972
        %2224 = vmatmul.mubr.f32.gmra.mrb[0].mxu0 %v1952
        %v2225 = vpop.f32.mrb[0].mxu0
        %v2226 = vadd.f32 0.0, %v2225
        %v2227 = vpop.f32.mrb[0].mxu0
        %2228 = vmatprep.mubr.f32.mxu0 %v1973
        %2229 = vmatmul.mubr.f32.gmra.mrb[0].mxu0 %v1953
        %v2230 = vpop.f32.mrb[0].mxu0
        %v2231 = vadd.f32 0.0, %v2230
        %v2232 = vpop.f32.mrb[0].mxu0
        %2233 = vmatprep.mubr.f32.mxu0 %v1974
        %2234 = vmatmul.mubr.f32.gmra.mrb[0].mxu0 %v1954
        %v2235 = vpop.f32.mrb[0].mxu0
        %v2236 = vadd.f32 0.0, %v2235
        %v2237 = vpop.f32.mrb[0].mxu0
        %2238 = vdwg.mxu0
        %2239 = vmatprep.subr.mxu0 0.0
        %2240 = vmatpush1.msra.mxu0 %v2078
        %2241 = vmatprep.subr.mxu0 0.0
        %2242 = vmatpush1.msra.mxu0 %v2079
        %2243 = vmatprep.subr.mxu0 0.0
        %2244 = vmatpush1.msra.mxu0 %v2080
        %2245 = vmatprep.subr.mxu0 0.0
        %2246 = vmatpush1.msra.mxu0 %v2081
        %2247 = vmatprep.subr.mxu0 0.0
        %2248 = vmatpush1.msra.mxu0 %v2082
        %2249 = vmatprep.subr.mxu0 0.0
        %2250 = vmatpush1.msra.mxu0 %v2083
        %2251 = vmatprep.subr.mxu0 0.0
        %2252 = vmatpush1.msra.mxu0 %v2084
        %2253 = vmatprep.subr.mxu0 0.0
        %2254 = vmatpush1.msra.mxu0 %v2085
        %2255 = vmatprep.subr.mxu0 0.0
        %2256 = vmatpush1.msra.mxu0 %v2086
        %2257 = vmatprep.subr.mxu0 0.0
        %2258 = vmatpush1.msra.mxu0 %v2087
        %2259 = vmatprep.subr.mxu0 0.0
        %2260 = vmatpush1.msra.mxu0 %v2088
        %2261 = vmatprep.subr.mxu0 0.0
        %2262 = vmatpush1.msra.mxu0 %v2089
        %2263 = vmatprep.subr.mxu0 0.0
        %2264 = vmatpush1.msra.mxu0 %v2090
        %2265 = vmatprep.subr.mxu0 0.0
        %2266 = vmatpush1.msra.mxu0 %v2091
        %2267 = vmatprep.subr.mxu0 0.0
        %2268 = vmatpush1.msra.mxu0 %v2092
        %2269 = vmatprep.subr.mxu0 0.0
        %2270 = vmatpush1.msra.mxu0 %v2093
        %2271 = vmatprep.subr.mxu0 0.0
        %2272 = vmatpush1.msra.mxu0 0.0
        %2273 = vmatprep.subr.mxu0 0.0
        %2274 = vmatpush1.msra.mxu0 0.0
        %2275 = vmatprep.subr.mxu0 0.0
        %2276 = vmatpush1.msra.mxu0 0.0
        %2277 = vmatprep.subr.mxu0 0.0
        %2278 = vmatpush1.msra.mxu0 0.0
        %2279 = vmatprep.subr.mxu0 0.0
        %2280 = vmatpush1.msra.mxu0 0.0
        %2281 = vmatprep.subr.mxu0 0.0
        %2282 = vmatpush1.msra.mxu0 0.0
        %2283 = vmatprep.subr.mxu0 0.0
        %2284 = vmatpush1.msra.mxu0 0.0
        %2285 = vmatprep.subr.mxu0 0.0
        %2286 = vmatpush1.msra.mxu0 0.0
        %2287 = vmatprep.subr.mxu0 0.0
        %2288 = vmatpush1.msra.mxu0 0.0
        %2289 = vmatprep.subr.mxu0 0.0
        %2290 = vmatpush1.msra.mxu0 0.0
        %2291 = vmatprep.subr.mxu0 0.0
        %2292 = vmatpush1.msra.mxu0 0.0
        %2293 = vmatprep.subr.mxu0 0.0
        %2294 = vmatpush1.msra.mxu0 0.0
        %2295 = vmatprep.subr.mxu0 0.0
        %2296 = vmatpush1.msra.mxu0 0.0
        %2297 = vmatprep.subr.mxu0 0.0
        %2298 = vmatpush1.msra.mxu0 0.0
        %2299 = vmatprep.subr.mxu0 0.0
        %2300 = vmatpush1.msra.mxu0 0.0
        %2301 = vmatprep.subr.mxu0 0.0
        %2302 = vmatpush1.msra.mxu0 0.0
        %2303 = vmatprep.mubr.f32.mxu0 0.0
        %2304 = vmatmul.mubr.f32.gmra.mrb[0].mxu0 %v1979
        %v2305 = vpop.f32.mrb[0].mxu0
        %v2306 = vadd.f32 %v2161, %v2305
        %v2307 = vpop.f32.mrb[0].mxu0
        %2308 = vmatprep.mubr.f32.mxu0 0.0
        %2309 = vmatmul.mubr.f32.gmra.mrb[0].mxu0 %v1980
        %v2310 = vpop.f32.mrb[0].mxu0
        %v2311 = vadd.f32 %v2166, %v2310
        %v2312 = vpop.f32.mrb[0].mxu0
        %2313 = vmatprep.mubr.f32.mxu0 0.0
        %2314 = vmatmul.mubr.f32.gmra.mrb[0].mxu0 %v1981
        %v2315 = vpop.f32.mrb[0].mxu0
        %v2316 = vadd.f32 %v2171, %v2315
        %v2317 = vpop.f32.mrb[0].mxu0
        %2318 = vmatprep.mubr.f32.mxu0 0.0
        %2319 = vmatmul.mubr.f32.gmra.mrb[0].mxu0 %v1982
        %v2320 = vpop.f32.mrb[0].mxu0
        %v2321 = vadd.f32 %v2176, %v2320
        %v2322 = vpop.f32.mrb[0].mxu0
        %2323 = vmatprep.mubr.f32.mxu0 0.0
        %2324 = vmatmul.mubr.f32.gmra.mrb[0].mxu0 %v1983
        %v2325 = vpop.f32.mrb[0].mxu0
        %v2326 = vadd.f32 %v2181, %v2325
        %v2327 = vpop.f32.mrb[0].mxu0
        %2328 = vmatprep.mubr.f32.mxu0 0.0
        %2329 = vmatmul.mubr.f32.gmra.mrb[0].mxu0 %v1984
        %v2330 = vpop.f32.mrb[0].mxu0
        %v2331 = vadd.f32 %v2186, %v2330
        %v2332 = vpop.f32.mrb[0].mxu0
        %2333 = vmatprep.mubr.f32.mxu0 0.0
        %2334 = vmatmul.mubr.f32.gmra.mrb[0].mxu0 %v1985
        %v2335 = vpop.f32.mrb[0].mxu0
        %v2336 = vadd.f32 %v2191, %v2335
        %v2337 = vpop.f32.mrb[0].mxu0
        %2338 = vmatprep.mubr.f32.mxu0 0.0
        %2339 = vmatmul.mubr.f32.gmra.mrb[0].mxu0 %v1986
        %v2340 = vpop.f32.mrb[0].mxu0
        %v2341 = vadd.f32 %v2196, %v2340
        %v2342 = vpop.f32.mrb[0].mxu0
        %2343 = vmatprep.mubr.f32.mxu0 0.0
        %2344 = vmatmul.mubr.f32.gmra.mrb[0].mxu0 %v1987
        %v2345 = vpop.f32.mrb[0].mxu0
        %v2346 = vadd.f32 %v2201, %v2345
        %v2347 = vpop.f32.mrb[0].mxu0
        %2348 = vmatprep.mubr.f32.mxu0 0.0
        %2349 = vmatmul.mubr.f32.gmra.mrb[0].mxu0 %v1988
        %v2350 = vpop.f32.mrb[0].mxu0
        %v2351 = vadd.f32 %v2206, %v2350
        %v2352 = vpop.f32.mrb[0].mxu0
        %2353 = vmatprep.mubr.f32.mxu0 0.0
        %2354 = vmatmul.mubr.f32.gmra.mrb[0].mxu0 %v1989
        %v2355 = vpop.f32.mrb[0].mxu0
        %v2356 = vadd.f32 %v2211, %v2355
        %v2357 = vpop.f32.mrb[0].mxu0
        %2358 = vmatprep.mubr.f32.mxu0 0.0
        %2359 = vmatmul.mubr.f32.gmra.mrb[0].mxu0 %v1990
        %v2360 = vpop.f32.mrb[0].mxu0
        %v2361 = vadd.f32 %v2216, %v2360
        %v2362 = vpop.f32.mrb[0].mxu0
        %2363 = vmatprep.mubr.f32.mxu0 0.0
        %2364 = vmatmul.mubr.f32.gmra.mrb[0].mxu0 %v1991
        %v2365 = vpop.f32.mrb[0].mxu0
        %v2366 = vadd.f32 %v2221, %v2365
        %v2367 = vpop.f32.mrb[0].mxu0
        %2368 = vmatprep.mubr.f32.mxu0 0.0
        %2369 = vmatmul.mubr.f32.gmra.mrb[0].mxu0 %v1992
        %v2370 = vpop.f32.mrb[0].mxu0
        %v2371 = vadd.f32 %v2226, %v2370
        %v2372 = vpop.f32.mrb[0].mxu0
        %2373 = vmatprep.mubr.f32.mxu0 0.0
        %2374 = vmatmul.mubr.f32.gmra.mrb[0].mxu0 %v1993
        %v2375 = vpop.f32.mrb[0].mxu0
        %v2376 = vadd.f32 %v2231, %v2375
        %v2377 = vpop.f32.mrb[0].mxu0
        %2378 = vmatprep.mubr.f32.mxu0 0.0
        %2379 = vmatmul.mubr.f32.gmra.mrb[0].mxu0 %v1994
        %v2380 = vpop.f32.mrb[0].mxu0
        %v2381 = vadd.f32 %v2236, %v2380
        %v2382 = vpop.f32.mrb[0].mxu0
        %2383 = vdwg.mxu0
        %2384 = vmatprep.subr.mxu0 0.0
        %2385 = vmatpush1.msra.mxu0 %v1997
        %2386 = vmatprep.subr.mxu0 0.0
        %2387 = vmatpush1.msra.mxu0 %v1998
        %2388 = vmatprep.subr.mxu0 0.0
        %2389 = vmatpush1.msra.mxu0 %v1999
        %2390 = vmatprep.subr.mxu0 0.0
        %2391 = vmatpush1.msra.mxu0 %v2000
        %2392 = vmatprep.subr.mxu0 0.0
        %2393 = vmatpush1.msra.mxu0 %v2001
        %2394 = vmatprep.subr.mxu0 0.0
        %2395 = vmatpush1.msra.mxu0 %v2002
        %2396 = vmatprep.subr.mxu0 0.0
        %2397 = vmatpush1.msra.mxu0 %v2003
        %2398 = vmatprep.subr.mxu0 0.0
        %2399 = vmatpush1.msra.mxu0 %v2004
        %2400 = vmatprep.subr.mxu0 0.0
        %2401 = vmatpush1.msra.mxu0 %v2005
        %2402 = vmatprep.subr.mxu0 0.0
        %2403 = vmatpush1.msra.mxu0 %v2006
        %2404 = vmatprep.subr.mxu0 0.0
        %2405 = vmatpush1.msra.mxu0 %v2007
        %2406 = vmatprep.subr.mxu0 0.0
        %2407 = vmatpush1.msra.mxu0 %v2008
        %2408 = vmatprep.subr.mxu0 0.0
        %2409 = vmatpush1.msra.mxu0 %v2009
        %2410 = vmatprep.subr.mxu0 0.0
        %2411 = vmatpush1.msra.mxu0 %v2010
        %2412 = vmatprep.subr.mxu0 0.0
        %2413 = vmatpush1.msra.mxu0 %v2011
        %2414 = vmatprep.subr.mxu0 0.0
        %2415 = vmatpush1.msra.mxu0 %v2012
        %2416 = vmatprep.subr.mxu0 0.0
        %2417 = vmatpush1.msra.mxu0 %v2013
        %2418 = vmatprep.subr.mxu0 0.0
        %2419 = vmatpush1.msra.mxu0 %v2014
        %2420 = vmatprep.subr.mxu0 0.0
        %2421 = vmatpush1.msra.mxu0 %v2015
        %2422 = vmatprep.subr.mxu0 0.0
        %2423 = vmatpush1.msra.mxu0 %v2016
        %2424 = vmatprep.subr.mxu0 0.0
        %2425 = vmatpush1.msra.mxu0 %v2017
        %2426 = vmatprep.subr.mxu0 0.0
        %2427 = vmatpush1.msra.mxu0 %v2018
        %2428 = vmatprep.subr.mxu0 0.0
        %2429 = vmatpush1.msra.mxu0 %v2019
        %2430 = vmatprep.subr.mxu0 0.0
        %2431 = vmatpush1.msra.mxu0 %v2020
        %2432 = vmatprep.subr.mxu0 0.0
        %2433 = vmatpush1.msra.mxu0 %v2021
        %2434 = vmatprep.subr.mxu0 0.0
        %2435 = vmatpush1.msra.mxu0 %v2022
        %2436 = vmatprep.subr.mxu0 0.0
        %2437 = vmatpush1.msra.mxu0 %v2023
        %2438 = vmatprep.subr.mxu0 0.0
        %2439 = vmatpush1.msra.mxu0 %v2024
        %2440 = vmatprep.subr.mxu0 0.0
        %2441 = vmatpush1.msra.mxu0 %v2025
        %2442 = vmatprep.subr.mxu0 0.0
        %2443 = vmatpush1.msra.mxu0 %v2026
        %2444 = vmatprep.subr.mxu0 0.0
        %2445 = vmatpush1.msra.mxu0 %v2027
        %2446 = vmatprep.subr.mxu0 0.0
        %2447 = vmatpush1.msra.mxu0 %v2028
        %2448 = vmatprep.mubr.f32.mxu0 %v1957
        %2449 = vmatmul.mubr.f32.gmra.mrb[0].mxu0 %v1937
        %v2450 = vpop.f32.mrb[0].mxu0
        %v2451 = vadd.f32 %v2306, %v2450
        %v2452 = vpop.f32.mrb[0].mxu0
        %2453 = vmatprep.mubr.f32.mxu0 %v1958
        %2454 = vmatmul.mubr.f32.gmra.mrb[0].mxu0 %v1938
        %v2455 = vpop.f32.mrb[0].mxu0
        %v2456 = vadd.f32 %v2311, %v2455
        %v2457 = vpop.f32.mrb[0].mxu0
        %2458 = vmatprep.mubr.f32.mxu0 %v1959
        %2459 = vmatmul.mubr.f32.gmra.mrb[0].mxu0 %v1939
        %v2460 = vpop.f32.mrb[0].mxu0
        %v2461 = vadd.f32 %v2316, %v2460
        %v2462 = vpop.f32.mrb[0].mxu0
        %2463 = vmatprep.mubr.f32.mxu0 %v1960
        %2464 = vmatmul.mubr.f32.gmra.mrb[0].mxu0 %v1940
        %v2465 = vpop.f32.mrb[0].mxu0
        %v2466 = vadd.f32 %v2321, %v2465
        %v2467 = vpop.f32.mrb[0].mxu0
        %2468 = vmatprep.mubr.f32.mxu0 %v1961
        %2469 = vmatmul.mubr.f32.gmra.mrb[0].mxu0 %v1941
        %v2470 = vpop.f32.mrb[0].mxu0
        %v2471 = vadd.f32 %v2326, %v2470
        %v2472 = vpop.f32.mrb[0].mxu0
        %2473 = vmatprep.mubr.f32.mxu0 %v1962
        %2474 = vmatmul.mubr.f32.gmra.mrb[0].mxu0 %v1942
        %v2475 = vpop.f32.mrb[0].mxu0
        %v2476 = vadd.f32 %v2331, %v2475
        %v2477 = vpop.f32.mrb[0].mxu0
        %2478 = vmatprep.mubr.f32.mxu0 %v1963
        %2479 = vmatmul.mubr.f32.gmra.mrb[0].mxu0 %v1943
        %v2480 = vpop.f32.mrb[0].mxu0
        %v2481 = vadd.f32 %v2336, %v2480
        %v2482 = vpop.f32.mrb[0].mxu0
        %2483 = vmatprep.mubr.f32.mxu0 %v1964
        %2484 = vmatmul.mubr.f32.gmra.mrb[0].mxu0 %v1944
        %v2485 = vpop.f32.mrb[0].mxu0
        %v2486 = vadd.f32 %v2341, %v2485
        %v2487 = vpop.f32.mrb[0].mxu0
        %2488 = vmatprep.mubr.f32.mxu0 %v1965
        %2489 = vmatmul.mubr.f32.gmra.mrb[0].mxu0 %v1945
        %v2490 = vpop.f32.mrb[0].mxu0
        %v2491 = vadd.f32 %v2346, %v2490
        %v2492 = vpop.f32.mrb[0].mxu0
        %2493 = vmatprep.mubr.f32.mxu0 %v1966
        %2494 = vmatmul.mubr.f32.gmra.mrb[0].mxu0 %v1946
        %v2495 = vpop.f32.mrb[0].mxu0
        %v2496 = vadd.f32 %v2351, %v2495
        %v2497 = vpop.f32.mrb[0].mxu0
        %2498 = vmatprep.mubr.f32.mxu0 %v1967
        %2499 = vmatmul.mubr.f32.gmra.mrb[0].mxu0 %v1947
        %v2500 = vpop.f32.mrb[0].mxu0
        %v2501 = vadd.f32 %v2356, %v2500
        %v2502 = vpop.f32.mrb[0].mxu0
        %2503 = vmatprep.mubr.f32.mxu0 %v1968
        %2504 = vmatmul.mubr.f32.gmra.mrb[0].mxu0 %v1948
        %v2505 = vpop.f32.mrb[0].mxu0
        %v2506 = vadd.f32 %v2361, %v2505
        %v2507 = vpop.f32.mrb[0].mxu0
        %2508 = vmatprep.mubr.f32.mxu0 %v1969
        %2509 = vmatmul.mubr.f32.gmra.mrb[0].mxu0 %v1949
        %v2510 = vpop.f32.mrb[0].mxu0
        %v2511 = vadd.f32 %v2366, %v2510
        %v2512 = vpop.f32.mrb[0].mxu0
        %2513 = vmatprep.mubr.f32.mxu0 %v1970
        %2514 = vmatmul.mubr.f32.gmra.mrb[0].mxu0 %v1950
        %v2515 = vpop.f32.mrb[0].mxu0
        %v2516 = vadd.f32 %v2371, %v2515
        %v2517 = vpop.f32.mrb[0].mxu0
        %2518 = vmatprep.mubr.f32.mxu0 %v1971
        %2519 = vmatmul.mubr.f32.gmra.mrb[0].mxu0 %v1951
        %v2520 = vpop.f32.mrb[0].mxu0
        %v2521 = vadd.f32 %v2376, %v2520
        %v2522 = vpop.f32.mrb[0].mxu0
        %2523 = vmatprep.mubr.f32.mxu0 %v1972
        %2524 = vmatmul.mubr.f32.gmra.mrb[0].mxu0 %v1952
        %v2525 = vpop.f32.mrb[0].mxu0
        %v2526 = vadd.f32 %v2381, %v2525
        %v2527 = vpop.f32.mrb[0].mxu0
        %2528 = vdwg.mxu0
        %2529 = vmatprep.subr.mxu0 0.0
        %2530 = vmatpush1.msra.mxu0 %v2029
        %2531 = vmatprep.subr.mxu0 0.0
        %2532 = vmatpush1.msra.mxu0 %v2030
        %2533 = vmatprep.subr.mxu0 0.0
        %2534 = vmatpush1.msra.mxu0 %v2031
        %2535 = vmatprep.subr.mxu0 0.0
        %2536 = vmatpush1.msra.mxu0 %v2032
        %2537 = vmatprep.subr.mxu0 0.0
        %2538 = vmatpush1.msra.mxu0 %v2033
        %2539 = vmatprep.subr.mxu0 0.0
        %2540 = vmatpush1.msra.mxu0 %v2034
        %2541 = vmatprep.subr.mxu0 0.0
        %2542 = vmatpush1.msra.mxu0 %v2035
        %2543 = vmatprep.subr.mxu0 0.0
        %2544 = vmatpush1.msra.mxu0 %v2036
        %2545 = vmatprep.subr.mxu0 0.0
        %2546 = vmatpush1.msra.mxu0 %v2037
        %2547 = vmatprep.subr.mxu0 0.0
        %2548 = vmatpush1.msra.mxu0 %v2038
        %2549 = vmatprep.subr.mxu0 0.0
        %2550 = vmatpush1.msra.mxu0 %v2039
        %2551 = vmatprep.subr.mxu0 0.0
        %2552 = vmatpush1.msra.mxu0 %v2040
        %2553 = vmatprep.subr.mxu0 0.0
        %2554 = vmatpush1.msra.mxu0 %v2041
        %2555 = vmatprep.subr.mxu0 0.0
        %2556 = vmatpush1.msra.mxu0 %v2042
        %2557 = vmatprep.subr.mxu0 0.0
        %2558 = vmatpush1.msra.mxu0 %v2043
        %2559 = vmatprep.subr.mxu0 0.0
        %2560 = vmatpush1.msra.mxu0 %v2044
        %2561 = vmatprep.subr.mxu0 0.0
        %2562 = vmatpush1.msra.mxu0 0.0
        %2563 = vmatprep.subr.mxu0 0.0
        %2564 = vmatpush1.msra.mxu0 0.0
        %2565 = vmatprep.subr.mxu0 0.0
        %2566 = vmatpush1.msra.mxu0 0.0
        %2567 = vmatprep.subr.mxu0 0.0
        %2568 = vmatpush1.msra.mxu0 0.0
        %2569 = vmatprep.subr.mxu0 0.0
        %2570 = vmatpush1.msra.mxu0 0.0
        %2571 = vmatprep.subr.mxu0 0.0
        %2572 = vmatpush1.msra.mxu0 0.0
        %2573 = vmatprep.subr.mxu0 0.0
        %2574 = vmatpush1.msra.mxu0 0.0
        %2575 = vmatprep.subr.mxu0 0.0
        %2576 = vmatpush1.msra.mxu0 0.0
        %2577 = vmatprep.subr.mxu0 0.0
        %2578 = vmatpush1.msra.mxu0 0.0
        %2579 = vmatprep.subr.mxu0 0.0
        %2580 = vmatpush1.msra.mxu0 0.0
        %2581 = vmatprep.subr.mxu0 0.0
        %2582 = vmatpush1.msra.mxu0 0.0
        %2583 = vmatprep.subr.mxu0 0.0
        %2584 = vmatpush1.msra.mxu0 0.0
        %2585 = vmatprep.subr.mxu0 0.0
        %2586 = vmatpush1.msra.mxu0 0.0
        %2587 = vmatprep.subr.mxu0 0.0
        %2588 = vmatpush1.msra.mxu0 0.0
        %2589 = vmatprep.subr.mxu0 0.0
        %2590 = vmatpush1.msra.mxu0 0.0
        %2591 = vmatprep.subr.mxu0 0.0
        %2592 = vmatpush1.msra.mxu0 0.0
        %2593 = vmatprep.mubr.f32.mxu0 0.0
        %2594 = vmatmul.mubr.f32.gmra.mrb[0].mxu0 %v1977
        %v2595 = vpop.f32.mrb[0].mxu0
        %v2596 = vadd.f32 %v2451, %v2595
        %v2597 = vpop.f32.mrb[0].mxu0
        %2598 = vmatprep.mubr.f32.mxu0 0.0
        %2599 = vmatmul.mubr.f32.gmra.mrb[0].mxu0 %v1978
        %v2600 = vpop.f32.mrb[0].mxu0
        %v2601 = vadd.f32 %v2456, %v2600
        %v2602 = vpop.f32.mrb[0].mxu0
        %2603 = vmatprep.mubr.f32.mxu0 0.0
        %2604 = vmatmul.mubr.f32.gmra.mrb[0].mxu0 %v1979
        %v2605 = vpop.f32.mrb[0].mxu0
        %v2606 = vadd.f32 %v2461, %v2605
        %v2607 = vpop.f32.mrb[0].mxu0
        %2608 = vmatprep.mubr.f32.mxu0 0.0
        %2609 = vmatmul.mubr.f32.gmra.mrb[0].mxu0 %v1980
        %v2610 = vpop.f32.mrb[0].mxu0
        %v2611 = vadd.f32 %v2466, %v2610
        %v2612 = vpop.f32.mrb[0].mxu0
        %2613 = vmatprep.mubr.f32.mxu0 0.0
        %2614 = vmatmul.mubr.f32.gmra.mrb[0].mxu0 %v1981
        %v2615 = vpop.f32.mrb[0].mxu0
        %v2616 = vadd.f32 %v2471, %v2615
        %v2617 = vpop.f32.mrb[0].mxu0
        %2618 = vmatprep.mubr.f32.mxu0 0.0
        %2619 = vmatmul.mubr.f32.gmra.mrb[0].mxu0 %v1982
        %v2620 = vpop.f32.mrb[0].mxu0
        %v2621 = vadd.f32 %v2476, %v2620
        %v2622 = vpop.f32.mrb[0].mxu0
        %2623 = vmatprep.mubr.f32.mxu0 0.0
        %2624 = vmatmul.mubr.f32.gmra.mrb[0].mxu0 %v1983
        %v2625 = vpop.f32.mrb[0].mxu0
        %v2626 = vadd.f32 %v2481, %v2625
        %v2627 = vpop.f32.mrb[0].mxu0
        %2628 = vmatprep.mubr.f32.mxu0 0.0
        %2629 = vmatmul.mubr.f32.gmra.mrb[0].mxu0 %v1984
        %v2630 = vpop.f32.mrb[0].mxu0
        %v2631 = vadd.f32 %v2486, %v2630
        %v2632 = vpop.f32.mrb[0].mxu0
        %2633 = vmatprep.mubr.f32.mxu0 0.0
        %2634 = vmatmul.mubr.f32.gmra.mrb[0].mxu0 %v1985
        %v2635 = vpop.f32.mrb[0].mxu0
        %v2636 = vadd.f32 %v2491, %v2635
        %v2637 = vpop.f32.mrb[0].mxu0
        %2638 = vmatprep.mubr.f32.mxu0 0.0
        %2639 = vmatmul.mubr.f32.gmra.mrb[0].mxu0 %v1986
        %v2640 = vpop.f32.mrb[0].mxu0
        %v2641 = vadd.f32 %v2496, %v2640
        %v2642 = vpop.f32.mrb[0].mxu0
        %2643 = vmatprep.mubr.f32.mxu0 0.0
        %2644 = vmatmul.mubr.f32.gmra.mrb[0].mxu0 %v1987
        %v2645 = vpop.f32.mrb[0].mxu0
        %v2646 = vadd.f32 %v2501, %v2645
        %v2647 = vpop.f32.mrb[0].mxu0
        %2648 = vmatprep.mubr.f32.mxu0 0.0
        %2649 = vmatmul.mubr.f32.gmra.mrb[0].mxu0 %v1988
        %v2650 = vpop.f32.mrb[0].mxu0
        %v2651 = vadd.f32 %v2506, %v2650
        %v2652 = vpop.f32.mrb[0].mxu0
        %2653 = vmatprep.mubr.f32.mxu0 0.0
        %2654 = vmatmul.mubr.f32.gmra.mrb[0].mxu0 %v1989
        %v2655 = vpop.f32.mrb[0].mxu0
        %v2656 = vadd.f32 %v2511, %v2655
        %v2657 = vpop.f32.mrb[0].mxu0
        %2658 = vmatprep.mubr.f32.mxu0 0.0
        %2659 = vmatmul.mubr.f32.gmra.mrb[0].mxu0 %v1990
        %v2660 = vpop.f32.mrb[0].mxu0
        %v2661 = vadd.f32 %v2516, %v2660
        %v2662 = vpop.f32.mrb[0].mxu0
        %2663 = vmatprep.mubr.f32.mxu0 0.0
        %2664 = vmatmul.mubr.f32.gmra.mrb[0].mxu0 %v1991
        %v2665 = vpop.f32.mrb[0].mxu0
        %v2666 = vadd.f32 %v2521, %v2665
        %v2667 = vpop.f32.mrb[0].mxu0
        %2668 = vmatprep.mubr.f32.mxu0 0.0
        %2669 = vmatmul.mubr.f32.gmra.mrb[0].mxu0 %v1992
        %v2670 = vpop.f32.mrb[0].mxu0
        %v2671 = vadd.f32 %v2526, %v2670
        %v2672 = vpop.f32.mrb[0].mxu0
        %2673 = vdwg.mxu0
        %s2674 = scalar_lea.vmem [#allocation9], 768
        %v2675 = vld [vmem:[%s2674] sm:$0xff]
        %v2676 = vld [vmem:[%s2674 + $0x8] sm:$0xff]
        %v2677 = vld [vmem:[%s2674 + $0x10] sm:$0xff]
        %v2678 = vld [vmem:[%s2674 + $0x18] sm:$0xff]
        %v2679 = vld [vmem:[%s2674 + $0x20] sm:$0xff]
        %v2680 = vld [vmem:[%s2674 + $0x28] sm:$0xff]
        %v2681 = vld [vmem:[%s2674 + $0x30] sm:$0xff]
        %v2682 = vld [vmem:[%s2674 + $0x38] sm:$0xff]
        %v2683 = vld [vmem:[%s2674 + $0x40] sm:$0xff]
        %v2684 = vld [vmem:[%s2674 + $0x48] sm:$0xff]
        %v2685 = vld [vmem:[%s2674 + $0x50] sm:$0xff]
        %v2686 = vld [vmem:[%s2674 + $0x58] sm:$0xff]
        %v2687 = vld [vmem:[%s2674 + $0x60] sm:$0xff]
        %v2688 = vld [vmem:[%s2674 + $0x68] sm:$0xff]
        %v2689 = vld [vmem:[%s2674 + $0x70] sm:$0xff]
        %v2690 = vld [vmem:[%s2674 + $0x78] sm:$0xff]
        %v2691 = vld [vmem:[%s2674 + $0x80] sm:$0xff]
        %v2692 = vld [vmem:[%s2674 + $0x88] sm:$0xff]
        %v2693 = vld [vmem:[%s2674 + $0x90] sm:$0xff]
        %v2694 = vld [vmem:[%s2674 + $0x98] sm:$0xff]
        %v2695 = vld [vmem:[%s2674 + $0xa0] sm:$0xff]
        %v2696 = vld [vmem:[%s2674 + $0xa8] sm:$0xff]
        %v2697 = vld [vmem:[%s2674 + $0xb0] sm:$0xff]
        %v2698 = vld [vmem:[%s2674 + $0xb8] sm:$0xff]
        %v2699 = vld [vmem:[%s2674 + $0xc0] sm:$0xff]
        %v2700 = vld [vmem:[%s2674 + $0xc8] sm:$0xff]
        %v2701 = vld [vmem:[%s2674 + $0xd0] sm:$0xff]
        %v2702 = vld [vmem:[%s2674 + $0xd8] sm:$0xff]
        %v2703 = vld [vmem:[%s2674 + $0xe0] sm:$0xff]
        %v2704 = vld [vmem:[%s2674 + $0xe8] sm:$0xff]
        %v2705 = vld [vmem:[%s2674 + $0xf0] sm:$0xff]
        %v2706 = vld [vmem:[%s2674 + $0xf8] sm:$0xff]
        %v2707 = vld [vmem:[%s2674 + $0x100] sm:$0xff]
        %v2708 = vld [vmem:[%s2674 + $0x108] sm:$0xff]
        %v2709 = vld [vmem:[%s2674 + $0x110] sm:$0xff]
        %v2710 = vld [vmem:[%s2674 + $0x118] sm:$0xff]
        %v2711 = vld [vmem:[%s2674 + $0x120] sm:$0xff]
        %v2712 = vld [vmem:[%s2674 + $0x128] sm:$0xff]
        %v2713 = vld [vmem:[%s2674 + $0x130] sm:$0xff]
        %v2714 = vld [vmem:[%s2674 + $0x138] sm:$0xff]
        %v2715 = vld [vmem:[%s2674 + $0x140] sm:$0xff]
        %v2716 = vld [vmem:[%s2674 + $0x148] sm:$0xff]
        %v2717 = vld [vmem:[%s2674 + $0x150] sm:$0xff]
        %v2718 = vld [vmem:[%s2674 + $0x158] sm:$0xff]
        %v2719 = vld [vmem:[%s2674 + $0x160] sm:$0xff]
        %v2720 = vld [vmem:[%s2674 + $0x168] sm:$0xff]
        %v2721 = vld [vmem:[%s2674 + $0x170] sm:$0xff]
        %v2722 = vld [vmem:[%s2674 + $0x178] sm:$0xff]
        %2723 = vmatprep.subr.mxu0 0.0
        %2724 = vmatpush1.msra.mxu0 %v2675
        %2725 = vmatprep.subr.mxu0 0.0
        %2726 = vmatpush1.msra.mxu0 %v2676
        %2727 = vmatprep.subr.mxu0 0.0
        %2728 = vmatpush1.msra.mxu0 %v2677
        %2729 = vmatprep.subr.mxu0 0.0
        %2730 = vmatpush1.msra.mxu0 %v2678
        %2731 = vmatprep.subr.mxu0 0.0
        %2732 = vmatpush1.msra.mxu0 %v2679
        %2733 = vmatprep.subr.mxu0 0.0
        %2734 = vmatpush1.msra.mxu0 %v2680
        %2735 = vmatprep.subr.mxu0 0.0
        %2736 = vmatpush1.msra.mxu0 %v2681
        %2737 = vmatprep.subr.mxu0 0.0
        %2738 = vmatpush1.msra.mxu0 %v2682
        %2739 = vmatprep.subr.mxu0 0.0
        %2740 = vmatpush1.msra.mxu0 %v2683
        %2741 = vmatprep.subr.mxu0 0.0
        %2742 = vmatpush1.msra.mxu0 %v2684
        %2743 = vmatprep.subr.mxu0 0.0
        %2744 = vmatpush1.msra.mxu0 %v2685
        %2745 = vmatprep.subr.mxu0 0.0
        %2746 = vmatpush1.msra.mxu0 %v2686
        %2747 = vmatprep.subr.mxu0 0.0
        %2748 = vmatpush1.msra.mxu0 %v2687
        %2749 = vmatprep.subr.mxu0 0.0
        %2750 = vmatpush1.msra.mxu0 %v2688
        %2751 = vmatprep.subr.mxu0 0.0
        %2752 = vmatpush1.msra.mxu0 %v2689
        %2753 = vmatprep.subr.mxu0 0.0
        %2754 = vmatpush1.msra.mxu0 %v2690
        %2755 = vmatprep.subr.mxu0 0.0
        %2756 = vmatpush1.msra.mxu0 %v2691
        %2757 = vmatprep.subr.mxu0 0.0
        %2758 = vmatpush1.msra.mxu0 %v2692
        %2759 = vmatprep.subr.mxu0 0.0
        %2760 = vmatpush1.msra.mxu0 %v2693
        %2761 = vmatprep.subr.mxu0 0.0
        %2762 = vmatpush1.msra.mxu0 %v2694
        %2763 = vmatprep.subr.mxu0 0.0
        %2764 = vmatpush1.msra.mxu0 %v2695
        %2765 = vmatprep.subr.mxu0 0.0
        %2766 = vmatpush1.msra.mxu0 %v2696
        %2767 = vmatprep.subr.mxu0 0.0
        %2768 = vmatpush1.msra.mxu0 %v2697
        %2769 = vmatprep.subr.mxu0 0.0
        %2770 = vmatpush1.msra.mxu0 %v2698
        %2771 = vmatprep.subr.mxu0 0.0
        %2772 = vmatpush1.msra.mxu0 %v2699
        %2773 = vmatprep.subr.mxu0 0.0
        %2774 = vmatpush1.msra.mxu0 %v2700
        %2775 = vmatprep.subr.mxu0 0.0
        %2776 = vmatpush1.msra.mxu0 %v2701
        %2777 = vmatprep.subr.mxu0 0.0
        %2778 = vmatpush1.msra.mxu0 %v2702
        %2779 = vmatprep.subr.mxu0 0.0
        %2780 = vmatpush1.msra.mxu0 %v2703
        %2781 = vmatprep.subr.mxu0 0.0
        %2782 = vmatpush1.msra.mxu0 %v2704
        %2783 = vmatprep.subr.mxu0 0.0
        %2784 = vmatpush1.msra.mxu0 %v2705
        %2785 = vmatprep.subr.mxu0 0.0
        %2786 = vmatpush1.msra.mxu0 %v2706
        %2787 = vmatprep.mubr.f32.mxu0 %v1961
        %2788 = vmatmul.mubr.f32.gmra.mrb[0].mxu0 %v1941
        %v2789 = vpop.f32.mrb[0].mxu0
        %v2790 = vadd.f32 0.0, %v2789
        %v2791 = vpop.f32.mrb[0].mxu0
        %2792 = vmatprep.mubr.f32.mxu0 %v1962
        %2793 = vmatmul.mubr.f32.gmra.mrb[0].mxu0 %v1942
        %v2794 = vpop.f32.mrb[0].mxu0
        %v2795 = vadd.f32 0.0, %v2794
        %v2796 = vpop.f32.mrb[0].mxu0
        %2797 = vmatprep.mubr.f32.mxu0 %v1963
        %2798 = vmatmul.mubr.f32.gmra.mrb[0].mxu0 %v1943
        %v2799 = vpop.f32.mrb[0].mxu0
        %v2800 = vadd.f32 0.0, %v2799
        %v2801 = vpop.f32.mrb[0].mxu0
        %2802 = vmatprep.mubr.f32.mxu0 %v1964
        %2803 = vmatmul.mubr.f32.gmra.mrb[0].mxu0 %v1944
        %v2804 = vpop.f32.mrb[0].mxu0
        %v2805 = vadd.f32 0.0, %v2804
        %v2806 = vpop.f32.mrb[0].mxu0
        %2807 = vmatprep.mubr.f32.mxu0 %v1965
        %2808 = vmatmul.mubr.f32.gmra.mrb[0].mxu0 %v1945
        %v2809 = vpop.f32.mrb[0].mxu0
        %v2810 = vadd.f32 0.0, %v2809
        %v2811 = vpop.f32.mrb[0].mxu0
        %2812 = vmatprep.mubr.f32.mxu0 %v1966
        %2813 = vmatmul.mubr.f32.gmra.mrb[0].mxu0 %v1946
        %v2814 = vpop.f32.mrb[0].mxu0
        %v2815 = vadd.f32 0.0, %v2814
        %v2816 = vpop.f32.mrb[0].mxu0
        %2817 = vmatprep.mubr.f32.mxu0 %v1967
        %2818 = vmatmul.mubr.f32.gmra.mrb[0].mxu0 %v1947
        %v2819 = vpop.f32.mrb[0].mxu0
        %v2820 = vadd.f32 0.0, %v2819
        %v2821 = vpop.f32.mrb[0].mxu0
        %2822 = vmatprep.mubr.f32.mxu0 %v1968
        %2823 = vmatmul.mubr.f32.gmra.mrb[0].mxu0 %v1948
        %v2824 = vpop.f32.mrb[0].mxu0
        %v2825 = vadd.f32 0.0, %v2824
        %v2826 = vpop.f32.mrb[0].mxu0
        %2827 = vmatprep.mubr.f32.mxu0 %v1969
        %2828 = vmatmul.mubr.f32.gmra.mrb[0].mxu0 %v1949
        %v2829 = vpop.f32.mrb[0].mxu0
        %v2830 = vadd.f32 0.0, %v2829
        %v2831 = vpop.f32.mrb[0].mxu0
        %2832 = vmatprep.mubr.f32.mxu0 %v1970
        %2833 = vmatmul.mubr.f32.gmra.mrb[0].mxu0 %v1950
        %v2834 = vpop.f32.mrb[0].mxu0
        %v2835 = vadd.f32 0.0, %v2834
        %v2836 = vpop.f32.mrb[0].mxu0
        %2837 = vmatprep.mubr.f32.mxu0 %v1971
        %2838 = vmatmul.mubr.f32.gmra.mrb[0].mxu0 %v1951
        %v2839 = vpop.f32.mrb[0].mxu0
        %v2840 = vadd.f32 0.0, %v2839
        %v2841 = vpop.f32.mrb[0].mxu0
        %2842 = vmatprep.mubr.f32.mxu0 %v1972
        %2843 = vmatmul.mubr.f32.gmra.mrb[0].mxu0 %v1952
        %v2844 = vpop.f32.mrb[0].mxu0
        %v2845 = vadd.f32 0.0, %v2844
        %v2846 = vpop.f32.mrb[0].mxu0
        %2847 = vmatprep.mubr.f32.mxu0 %v1973
        %2848 = vmatmul.mubr.f32.gmra.mrb[0].mxu0 %v1953
        %v2849 = vpop.f32.mrb[0].mxu0
        %v2850 = vadd.f32 0.0, %v2849
        %v2851 = vpop.f32.mrb[0].mxu0
        %2852 = vmatprep.mubr.f32.mxu0 %v1974
        %2853 = vmatmul.mubr.f32.gmra.mrb[0].mxu0 %v1954
        %v2854 = vpop.f32.mrb[0].mxu0
        %v2855 = vadd.f32 0.0, %v2854
        %v2856 = vpop.f32.mrb[0].mxu0
        %2857 = vmatprep.mubr.f32.mxu0 %v1975
        %2858 = vmatmul.mubr.f32.gmra.mrb[0].mxu0 %v1955
        %v2859 = vpop.f32.mrb[0].mxu0
        %v2860 = vadd.f32 0.0, %v2859
        %v2861 = vpop.f32.mrb[0].mxu0
        %2862 = vmatprep.mubr.f32.mxu0 %v1976
        %2863 = vmatmul.mubr.f32.gmra.mrb[0].mxu0 %v1956
        %v2864 = vpop.f32.mrb[0].mxu0
        %v2865 = vadd.f32 0.0, %v2864
        %v2866 = vpop.f32.mrb[0].mxu0
        %2867 = vdwg.mxu0
        %2868 = vmatprep.subr.mxu0 0.0
        %2869 = vmatpush1.msra.mxu0 %v2707
        %2870 = vmatprep.subr.mxu0 0.0
        %2871 = vmatpush1.msra.mxu0 %v2708
        %2872 = vmatprep.subr.mxu0 0.0
        %2873 = vmatpush1.msra.mxu0 %v2709
        %2874 = vmatprep.subr.mxu0 0.0
        %2875 = vmatpush1.msra.mxu0 %v2710
        %2876 = vmatprep.subr.mxu0 0.0
        %2877 = vmatpush1.msra.mxu0 %v2711
        %2878 = vmatprep.subr.mxu0 0.0
        %2879 = vmatpush1.msra.mxu0 %v2712
        %2880 = vmatprep.subr.mxu0 0.0
        %2881 = vmatpush1.msra.mxu0 %v2713
        %2882 = vmatprep.subr.mxu0 0.0
        %2883 = vmatpush1.msra.mxu0 %v2714
        %2884 = vmatprep.subr.mxu0 0.0
        %2885 = vmatpush1.msra.mxu0 %v2715
        %2886 = vmatprep.subr.mxu0 0.0
        %2887 = vmatpush1.msra.mxu0 %v2716
        %2888 = vmatprep.subr.mxu0 0.0
        %2889 = vmatpush1.msra.mxu0 %v2717
        %2890 = vmatprep.subr.mxu0 0.0
        %2891 = vmatpush1.msra.mxu0 %v2718
        %2892 = vmatprep.subr.mxu0 0.0
        %2893 = vmatpush1.msra.mxu0 %v2719
        %2894 = vmatprep.subr.mxu0 0.0
        %2895 = vmatpush1.msra.mxu0 %v2720
        %2896 = vmatprep.subr.mxu0 0.0
        %2897 = vmatpush1.msra.mxu0 %v2721
        %2898 = vmatprep.subr.mxu0 0.0
        %2899 = vmatpush1.msra.mxu0 %v2722
        %2900 = vmatprep.subr.mxu0 0.0
        %2901 = vmatpush1.msra.mxu0 0.0
        %2902 = vmatprep.subr.mxu0 0.0
        %2903 = vmatpush1.msra.mxu0 0.0
        %2904 = vmatprep.subr.mxu0 0.0
        %2905 = vmatpush1.msra.mxu0 0.0
        %2906 = vmatprep.subr.mxu0 0.0
        %2907 = vmatpush1.msra.mxu0 0.0
        %2908 = vmatprep.subr.mxu0 0.0
        %2909 = vmatpush1.msra.mxu0 0.0
        %2910 = vmatprep.subr.mxu0 0.0
        %2911 = vmatpush1.msra.mxu0 0.0
        %2912 = vmatprep.subr.mxu0 0.0
        %2913 = vmatpush1.msra.mxu0 0.0
        %2914 = vmatprep.subr.mxu0 0.0
        %2915 = vmatpush1.msra.mxu0 0.0
        %2916 = vmatprep.subr.mxu0 0.0
        %2917 = vmatpush1.msra.mxu0 0.0
        %2918 = vmatprep.subr.mxu0 0.0
        %2919 = vmatpush1.msra.mxu0 0.0
        %2920 = vmatprep.subr.mxu0 0.0
        %2921 = vmatpush1.msra.mxu0 0.0
        %2922 = vmatprep.subr.mxu0 0.0
        %2923 = vmatpush1.msra.mxu0 0.0
        %2924 = vmatprep.subr.mxu0 0.0
        %2925 = vmatpush1.msra.mxu0 0.0
        %2926 = vmatprep.subr.mxu0 0.0
        %2927 = vmatpush1.msra.mxu0 0.0
        %2928 = vmatprep.subr.mxu0 0.0
        %2929 = vmatpush1.msra.mxu0 0.0
        %2930 = vmatprep.subr.mxu0 0.0
        %2931 = vmatpush1.msra.mxu0 0.0
        %2932 = vmatprep.mubr.f32.mxu0 0.0
        %2933 = vmatmul.mubr.f32.gmra.mrb[0].mxu0 %v1981
        %v2934 = vpop.f32.mrb[0].mxu0
        %v2935 = vadd.f32 %v2790, %v2934
        %v2936 = vpop.f32.mrb[0].mxu0
        %2937 = vmatprep.mubr.f32.mxu0 0.0
        %2938 = vmatmul.mubr.f32.gmra.mrb[0].mxu0 %v1982
        %v2939 = vpop.f32.mrb[0].mxu0
        %v2940 = vadd.f32 %v2795, %v2939
        %v2941 = vpop.f32.mrb[0].mxu0
        %2942 = vmatprep.mubr.f32.mxu0 0.0
        %2943 = vmatmul.mubr.f32.gmra.mrb[0].mxu0 %v1983
        %v2944 = vpop.f32.mrb[0].mxu0
        %v2945 = vadd.f32 %v2800, %v2944
        %v2946 = vpop.f32.mrb[0].mxu0
        %2947 = vmatprep.mubr.f32.mxu0 0.0
        %2948 = vmatmul.mubr.f32.gmra.mrb[0].mxu0 %v1984
        %v2949 = vpop.f32.mrb[0].mxu0
        %v2950 = vadd.f32 %v2805, %v2949
        %v2951 = vpop.f32.mrb[0].mxu0
        %2952 = vmatprep.mubr.f32.mxu0 0.0
        %2953 = vmatmul.mubr.f32.gmra.mrb[0].mxu0 %v1985
        %v2954 = vpop.f32.mrb[0].mxu0
        %v2955 = vadd.f32 %v2810, %v2954
        %v2956 = vpop.f32.mrb[0].mxu0
        %2957 = vmatprep.mubr.f32.mxu0 0.0
        %2958 = vmatmul.mubr.f32.gmra.mrb[0].mxu0 %v1986
        %v2959 = vpop.f32.mrb[0].mxu0
        %v2960 = vadd.f32 %v2815, %v2959
        %v2961 = vpop.f32.mrb[0].mxu0
        %2962 = vmatprep.mubr.f32.mxu0 0.0
        %2963 = vmatmul.mubr.f32.gmra.mrb[0].mxu0 %v1987
        %v2964 = vpop.f32.mrb[0].mxu0
        %v2965 = vadd.f32 %v2820, %v2964
        %v2966 = vpop.f32.mrb[0].mxu0
        %2967 = vmatprep.mubr.f32.mxu0 0.0
        %2968 = vmatmul.mubr.f32.gmra.mrb[0].mxu0 %v1988
        %v2969 = vpop.f32.mrb[0].mxu0
        %v2970 = vadd.f32 %v2825, %v2969
        %v2971 = vpop.f32.mrb[0].mxu0
        %2972 = vmatprep.mubr.f32.mxu0 0.0
        %2973 = vmatmul.mubr.f32.gmra.mrb[0].mxu0 %v1989
        %v2974 = vpop.f32.mrb[0].mxu0
        %v2975 = vadd.f32 %v2830, %v2974
        %v2976 = vpop.f32.mrb[0].mxu0
        %2977 = vmatprep.mubr.f32.mxu0 0.0
        %2978 = vmatmul.mubr.f32.gmra.mrb[0].mxu0 %v1990
        %v2979 = vpop.f32.mrb[0].mxu0
        %v2980 = vadd.f32 %v2835, %v2979
        %v2981 = vpop.f32.mrb[0].mxu0
        %2982 = vmatprep.mubr.f32.mxu0 0.0
        %2983 = vmatmul.mubr.f32.gmra.mrb[0].mxu0 %v1991
        %v2984 = vpop.f32.mrb[0].mxu0
        %v2985 = vadd.f32 %v2840, %v2984
        %v2986 = vpop.f32.mrb[0].mxu0
        %2987 = vmatprep.mubr.f32.mxu0 0.0
        %2988 = vmatmul.mubr.f32.gmra.mrb[0].mxu0 %v1992
        %v2989 = vpop.f32.mrb[0].mxu0
        %v2990 = vadd.f32 %v2845, %v2989
        %v2991 = vpop.f32.mrb[0].mxu0
        %2992 = vmatprep.mubr.f32.mxu0 0.0
        %2993 = vmatmul.mubr.f32.gmra.mrb[0].mxu0 %v1993
        %v2994 = vpop.f32.mrb[0].mxu0
        %v2995 = vadd.f32 %v2850, %v2994
        %v2996 = vpop.f32.mrb[0].mxu0
        %2997 = vmatprep.mubr.f32.mxu0 0.0
        %2998 = vmatmul.mubr.f32.gmra.mrb[0].mxu0 %v1994
        %v2999 = vpop.f32.mrb[0].mxu0
        %v3000 = vadd.f32 %v2855, %v2999
        %v3001 = vpop.f32.mrb[0].mxu0
        %3002 = vmatprep.mubr.f32.mxu0 0.0
        %3003 = vmatmul.mubr.f32.gmra.mrb[0].mxu0 %v1995
        %v3004 = vpop.f32.mrb[0].mxu0
        %v3005 = vadd.f32 %v2860, %v3004
        %v3006 = vpop.f32.mrb[0].mxu0
        %3007 = vmatprep.mubr.f32.mxu0 0.0
        %3008 = vmatmul.mubr.f32.gmra.mrb[0].mxu0 %v1996
        %v3009 = vpop.f32.mrb[0].mxu0
        %v3010 = vadd.f32 %v2865, %v3009
        %v3011 = vpop.f32.mrb[0].mxu0
        %3012 = vdwg.mxu0
        %v3013 = vadd.f32 %v2596, %v2935
        %v3014 = vadd.f32 %v2601, %v2940
        %v3015 = vadd.f32 %v2606, %v2945
        %v3016 = vadd.f32 %v2611, %v2950
        %v3017 = vadd.f32 %v2616, %v2955
        %v3018 = vadd.f32 %v2621, %v2960
        %v3019 = vadd.f32 %v2626, %v2965
        %v3020 = vadd.f32 %v2631, %v2970
        %v3021 = vadd.f32 %v2636, %v2975
        %v3022 = vadd.f32 %v2641, %v2980
        %v3023 = vadd.f32 %v2646, %v2985
        %v3024 = vadd.f32 %v2651, %v2990
        %v3025 = vadd.f32 %v2656, %v2995
        %v3026 = vadd.f32 %v2661, %v3000
        %v3027 = vadd.f32 %v2666, %v3005
        %v3028 = vadd.f32 %v2671, %v3010
        %s3029 = smul.u32 %s341, 16
        %s3030 = scalar_lea.vmem %s301, %s3029 [#allocation4]
        %v3031 = vld [vmem:[%s3030] sm:$0xff]
        %v3032 = vld [vmem:[%s3030 + $0x8] sm:$0xff]
        %v3033 = vld [vmem:[%s3030 + $0x10] sm:$0xff]
        %v3034 = vld [vmem:[%s3030 + $0x18] sm:$0xff]
        %v3035 = vld [vmem:[%s3030 + $0x20] sm:$0xff]
        %v3036 = vld [vmem:[%s3030 + $0x28] sm:$0xff]
        %v3037 = vld [vmem:[%s3030 + $0x30] sm:$0xff]
        %v3038 = vld [vmem:[%s3030 + $0x38] sm:$0xff]
        %v3039 = vld [vmem:[%s3030 + $0x40] sm:$0xff]
        %v3040 = vld [vmem:[%s3030 + $0x48] sm:$0xff]
        %v3041 = vld [vmem:[%s3030 + $0x50] sm:$0xff]
        %v3042 = vld [vmem:[%s3030 + $0x58] sm:$0xff]
        %v3043 = vld [vmem:[%s3030 + $0x60] sm:$0xff]
        %v3044 = vld [vmem:[%s3030 + $0x68] sm:$0xff]
        %v3045 = vld [vmem:[%s3030 + $0x70] sm:$0xff]
        %v3046 = vld [vmem:[%s3030 + $0x78] sm:$0xff]
        %v3047 = vld [vmem:[%s5] sm:$0x1]
        %v3049 = vlaneseq
        %v3050 = vshrl.u32 %v3049, 7
        %v3051 = vsub.s32 0, %v3050
        %v3052 = vrot.slane %v3047, %v3051
        %v3054 = vmul.f32 %v3013, %v3052
        %v3055 = vmul.f32 %v3014, %v3052
        %v3056 = vmul.f32 %v3015, %v3052
        %v3057 = vmul.f32 %v3016, %v3052
        %v3058 = vmul.f32 %v3017, %v3052
        %v3059 = vmul.f32 %v3018, %v3052
        %v3060 = vmul.f32 %v3019, %v3052
        %v3061 = vmul.f32 %v3020, %v3052
        %v3062 = vmul.f32 %v3021, %v3052
        %v3063 = vmul.f32 %v3022, %v3052
        %v3064 = vmul.f32 %v3023, %v3052
        %v3065 = vmul.f32 %v3024, %v3052
        %v3066 = vmul.f32 %v3025, %v3052
        %v3067 = vmul.f32 %v3026, %v3052
        %v3068 = vmul.f32 %v3027, %v3052
        %v3069 = vmul.f32 %v3028, %v3052
        %v3070 = vld [vmem:[%s6] sm:$0x1]
        %v3072 = vlaneseq
        %v3073 = vshrl.u32 %v3072, 7
        %v3074 = vsub.s32 0, %v3073
        %v3075 = vrot.slane %v3070, %v3074
        %v3077 = vadd.f32 %v3054, %v3075
        %v3078 = vadd.f32 %v3055, %v3075
        %v3079 = vadd.f32 %v3056, %v3075
        %v3080 = vadd.f32 %v3057, %v3075
        %v3081 = vadd.f32 %v3058, %v3075
        %v3082 = vadd.f32 %v3059, %v3075
        %v3083 = vadd.f32 %v3060, %v3075
        %v3084 = vadd.f32 %v3061, %v3075
        %v3085 = vadd.f32 %v3062, %v3075
        %v3086 = vadd.f32 %v3063, %v3075
        %v3087 = vadd.f32 %v3064, %v3075
        %v3088 = vadd.f32 %v3065, %v3075
        %v3089 = vadd.f32 %v3066, %v3075
        %v3090 = vadd.f32 %v3067, %v3075
        %v3091 = vadd.f32 %v3068, %v3075
        %v3092 = vadd.f32 %v3069, %v3075
        %v3093 = vadd.f32 %v3077, %v3031
        %v3094 = vadd.f32 %v3078, %v3032
        %v3095 = vadd.f32 %v3079, %v3033
        %v3096 = vadd.f32 %v3080, %v3034
        %v3097 = vadd.f32 %v3081, %v3035
        %v3098 = vadd.f32 %v3082, %v3036
        %v3099 = vadd.f32 %v3083, %v3037
        %v3100 = vadd.f32 %v3084, %v3038
        %v3101 = vadd.f32 %v3085, %v3039
        %v3102 = vadd.f32 %v3086, %v3040
        %v3103 = vadd.f32 %v3087, %v3041
        %v3104 = vadd.f32 %v3088, %v3042
        %v3105 = vadd.f32 %v3089, %v3043
        %v3106 = vadd.f32 %v3090, %v3044
        %v3107 = vadd.f32 %v3091, %v3045
        %v3108 = vadd.f32 %v3092, %v3046
        %v3109 = vmax.f32 %v3093, 0.0
        %v3110 = vmax.f32 %v3094, 0.0
        %v3111 = vmax.f32 %v3095, 0.0
        %v3112 = vmax.f32 %v3096, 0.0
        %v3113 = vmax.f32 %v3097, 0.0
        %v3114 = vmax.f32 %v3098, 0.0
        %v3115 = vmax.f32 %v3099, 0.0
        %v3116 = vmax.f32 %v3100, 0.0
        %v3117 = vmax.f32 %v3101, 0.0
        %v3118 = vmax.f32 %v3102, 0.0
        %v3119 = vmax.f32 %v3103, 0.0
        %v3120 = vmax.f32 %v3104, 0.0
        %v3121 = vmax.f32 %v3105, 0.0
        %v3122 = vmax.f32 %v3106, 0.0
        %v3123 = vmax.f32 %v3107, 0.0
        %v3124 = vmax.f32 %v3108, 0.0
        %3125 = vst [vmem:[%s339] sm:$0xff] %v3109
        %3126 = vst [vmem:[%s339 + $0x8] sm:$0xff] %v3110
        %3127 = vst [vmem:[%s339 + $0x10] sm:$0xff] %v3111
        %3128 = vst [vmem:[%s339 + $0x18] sm:$0xff] %v3112
        %3129 = vst [vmem:[%s339 + $0x20] sm:$0xff] %v3113
        %3130 = vst [vmem:[%s339 + $0x28] sm:$0xff] %v3114
        %3131 = vst [vmem:[%s339 + $0x30] sm:$0xff] %v3115
        %3132 = vst [vmem:[%s339 + $0x38] sm:$0xff] %v3116
        %3133 = vst [vmem:[%s339 + $0x40] sm:$0xff] %v3117
        %3134 = vst [vmem:[%s339 + $0x48] sm:$0xff] %v3118
        %3135 = vst [vmem:[%s339 + $0x50] sm:$0xff] %v3119
        %3136 = vst [vmem:[%s339 + $0x58] sm:$0xff] %v3120
        %3137 = vst [vmem:[%s339 + $0x60] sm:$0xff] %v3121
        %3138 = vst [vmem:[%s339 + $0x68] sm:$0xff] %v3122
        %3139 = vst [vmem:[%s339 + $0x70] sm:$0xff] %v3123
        %3140 = vst [vmem:[%s339 + $0x78] sm:$0xff] %v3124
        %s3141 = sand.u32 %s199, 1
        %s3142 = scalar_lea.sflag [#allocation6], %s3141
        %s3143 = sand.u32 %s199, 1
        %s3144 = smul.addr %s3143, 128
        %s3145 = scalar_lea.vmem [#allocation10], %s3144
        // Predicated region
        $region109: #{tpu_custom_call.1} parent=47 // pred_check
          %p3146 = pneg %p209
        $region110: #{tpu_custom_call.1} parent=47 // pred_check_branch
          %3148 = sbr.rel (%p3146) target = $region112
        $region111: #{tpu_custom_call.1} parent=47 // pred_region
          %s3149 = smul.u32 8, %s30
          %s3151 = ssub.s32 2048, 2048
          %3152 = vsyncadd %s3142, %s3151
          %s3153 = smul.addr %s3149, 2
          %s3154 = smul.addr %s29, 32
          %s3155 = sadd.s32 %s3153, %s3154
          %s3156 = smul.addr %s3155, 128
          %s3157 = scalar_lea.hbm %s7, %s3156
          %s3158 = sshll.u32 %s3145, 4
          %s3159 = int_to_ptr.vmem [resolvable:$true] %s3158
          %3164 = dma.vmem_to_hbm [thread:$0]  %s3159, 2048, %s3157, %s3142, 128, 128, 8
        $region112: #{tpu_custom_call.1} parent=47 // pred_fallthru
          _
      $region48: #{tpu_custom_call.1} parent=5 // pred_fallthru
        _
      %p3165 = scmp.le.s32.totalorder 2, %s20
      // Predicated region
      $region113: #{tpu_custom_call.1} parent=5 // pred_check
        %p3166 = pneg %p3165
      $region114: #{tpu_custom_call.1} parent=5 // pred_check_branch
        %3168 = sbr.rel (%p3166) target = $region116
      $region115: #{tpu_custom_call.1} parent=5 // pred_region
        %s3169 = ssub.s32 %s20, 2
        // Predicated region
        $region117: #{tpu_custom_call.1} parent=115 // pred_check
          %p3170 = pneg %p215
        $region118: #{tpu_custom_call.1} parent=115 // pred_check_branch
          %3172 = sbr.rel (%p3170) target = $region120
        $region119: #{tpu_custom_call.1} parent=115 // pred_region
          %s3173 = sand.u32 %s200, 1
          %s3174 = scalar_lea.sflag [#allocation6], %s3173
          %s3175 = sand.u32 %s200, 1
          %s3176 = smul.addr %s3175, 128
          %s3177 = scalar_lea.vmem [#allocation10], %s3176
          %3178 = dma.done %s3174, 2048
        $region120: #{tpu_custom_call.1} parent=115 // pred_fallthru
          _
      $region116: #{tpu_custom_call.1} parent=5 // pred_fallthru
        _
    $region6: #{tpu_custom_call.1} parent=1 // loop_footer
      %s24 = sadd.s32 1, %s20
    $region7: #{tpu_custom_call.1} parent=1 // loop_footer_branch
      %19 = sbr.rel target = $region3
    $region8: #{tpu_custom_call.1} parent=1 // loop_exit
      _
    %3179 = vsyncpa [#allocation5], 1
    %s3180 = scalar_lea.sflag [#allocation5], 1
    %3181 = vsyncpa %s3180, 1
    %3182 = vsyncpa [#allocation8], 1
    %3183 = vsyncpa [#allocation6], 1
    %s3184 = scalar_lea.sflag [#allocation6], 1
    %3185 = vsyncpa %s3184, 1

</llo_original>
